<compile_context>
chip_gen: v7x
topology: tpu7x:2x2x1
jax: 0.10.0
libtpu: 0.0.40
codegen_flags: <defaults>
</compile_context>

<pallas_src>
import jax
import jax.numpy as jnp
from jax.experimental import pallas as pl
from jax.experimental.pallas import tpu as pltpu

MAXPAD = 3                 # max(k // 2) for kernel_sizes (3, 5, 7)
NTAP = 2 * MAXPAD + 1      # 7 taps in the unified window


# ---------------------------------------------------------------------------
# Fused kernel: embed -> +pos -> im2col conv (x3) -> relu/maxpool -> MLP head
# ---------------------------------------------------------------------------
def fused_kernel(tok_ref, emb_ref, pos_ref, wconv_ref, bconv_ref,
                 w1_ref, b1_ref, s1_ref, t1_ref,
                 w2_ref, b2_ref, s2_ref, t2_ref,
                 w3_ref, b3_ref,
                 out_ref, xpad_ref, win_ref):
    BL = tok_ref.shape[0]
    V, E = emb_ref.shape
    B, Lp, _ = xpad_ref.shape
    L = Lp - 2 * MAXPAD
    H3 = wconv_ref.shape[1]                      # 3 * conv_channels

    # ---- embedding lookup as a one-hot f32 MXU matmul (exact-enough gather) --
    tok = tok_ref[...]                                            # (B*L, 1) i32
    iota = jax.lax.broadcasted_iota(jnp.int32, (BL, V), 1)
    onehot = (iota == tok).astype(jnp.float32)                    # (B*L, V)
    xg = jnp.dot(onehot, emb_ref[...],
                 preferred_element_type=jnp.float32)              # (B*L, E)

    # ---- add positional embedding; build padded seq, zeroing ONLY the halos --
    x3 = xg.reshape(B, L, E) + pos_ref[...]                       # (B, L, E) f32
    halo = jnp.zeros((B, MAXPAD, E), jnp.float32)
    xpad_ref[:, 0:MAXPAD, :] = halo
    xpad_ref[:, MAXPAD + L:MAXPAD + L + MAXPAD, :] = halo
    xpad_ref[:, MAXPAD:MAXPAD + L, :] = x3

    # ---- im2col window: 7 lane-aligned (t*E multiple of 128) bf16 stores -----
    for t in range(NTAP):
        win_ref[:, :, t * E:(t + 1) * E] = (
            xpad_ref[:, t:t + L, :].astype(jnp.bfloat16))

    # ---- all three Conv1d branches as ONE matmul: (B*L,7E)@(7E,3C) -----------
    conv = jnp.dot(win_ref[...].reshape(BL, NTAP * E), wconv_ref[...],
                   preferred_element_type=jnp.float32)            # (B*L, 3C) f32

    # ---- global max pool, THEN bias + ReLU (equivalent: bias constant over L,
    #      ReLU monotone) -----------------------------------------------------
    pooled = jnp.max(conv.reshape(B, L, H3), axis=1)              # (B, 3C)
    feats = jnp.maximum(pooled + bconv_ref[...], 0.0)             # (B, 3C) f32
    # dropout = identity (inference)

    # ---- classifier: Linear -> BN -> ReLU -> Linear -> BN -> ReLU -> Linear --
    h = jnp.dot(feats.astype(jnp.bfloat16), w1_ref[...],
                preferred_element_type=jnp.float32) + b1_ref[...]
    h = jnp.maximum(h * s1_ref[...] + t1_ref[...], 0.0)
    h = jnp.dot(h.astype(jnp.bfloat16), w2_ref[...],
                preferred_element_type=jnp.float32) + b2_ref[...]
    h = jnp.maximum(h * s2_ref[...] + t2_ref[...], 0.0)
    out = jnp.dot(h.astype(jnp.bfloat16), w3_ref[...],
                  preferred_element_type=jnp.float32) + b3_ref[...]
    out_ref[...] = out.astype(out_ref.dtype)


# ---------------------------------------------------------------------------
# Wrapper: weight packing + single pallas_call
# ---------------------------------------------------------------------------
def pack_conv_weights(convs, kernel_sizes, E, C):
    """Pack per-kernel (k, E, C) weights into one (7*E, 3*C) bf16 matrix."""
    mats = []
    for (w, _), k in zip(convs, kernel_sizes):
        off = MAXPAD - k // 2          # 'same' padding alignment inside MAXPAD
        w7 = jnp.zeros((NTAP, E, C), jnp.float32).at[off:off + k].set(w)
        mats.append(w7.reshape(NTAP * E, C))
    wconv = jnp.concatenate(mats, axis=1).astype(jnp.bfloat16)    # (7E, 3C)
    bconv = jnp.concatenate([b for _, b in convs], axis=1)        # (1, 3C) f32
    return wconv, bconv


def code_classifier_forward(tokens, emb_table, pos_embed, convs, kernel_sizes,
                            mlp_params):
    w1, b1, s1, t1, w2, b2, s2, t2, w3, b3 = mlp_params
    B, L = tokens.shape
    V, E = emb_table.shape
    C = convs[0][0].shape[2]
    NC = w3.shape[1]

    wconv, bconv = pack_conv_weights(convs, kernel_sizes, E, C)
    tok = tokens.reshape(B * L, 1).astype(jnp.int32)
    pos = pos_embed[:, :L, :]                                     # (1, L, E)

    args = (tok, emb_table, pos, wconv, bconv,
            w1.astype(jnp.bfloat16), b1, s1, t1,
            w2.astype(jnp.bfloat16), b2, s2, t2,
            w3.astype(jnp.bfloat16), b3)

    return pl.pallas_call(
        fused_kernel,
        out_shape=jax.ShapeDtypeStruct((B, NC), jnp.float32),
        in_specs=[pl.BlockSpec(memory_space=pltpu.MemorySpace.VMEM)] * len(args),
        out_specs=pl.BlockSpec(memory_space=pltpu.MemorySpace.VMEM),
        scratch_shapes=[
            pltpu.VMEM((B, L + 2 * MAXPAD, E), jnp.float32),      # padded seq
            pltpu.VMEM((B, L, NTAP * E), jnp.bfloat16),           # im2col window
        ],
    )(*args)


if __name__ == "__main__":
    key = jax.random.PRNGKey(0)
    V, NC = 64, 8            # vocab_size, num_classes
    E, C = 128, 128          # embed_dim, conv_channels (lane-dense test sizes)
    KS = (3, 5, 7)
    MAXLEN = 32
    B, L = 4, 16
    H = C * len(KS)          # 384

    keys = jax.random.split(key, 16)

    # Embedding table (padding_idx=0 -> row 0 is zero) and positional embedding.
    emb_table = jax.random.normal(keys[0], (V, E), jnp.float32) * 0.1
    emb_table = emb_table.at[0].set(0.0)
    pos_embed = jax.random.normal(keys[1], (1, MAXLEN, E), jnp.float32) * 0.01

    # Conv1d weights, stored as (K, E, C).
    convs = []
    for i, k in enumerate(KS):
        w = jax.random.normal(keys[2 + i], (k, E, C), jnp.float32) * 0.05
        b = jax.random.normal(keys[5 + i], (1, C), jnp.float32) * 0.05
        convs.append((w, b))

    # Classifier linear layers, stored as (in, out).
    def lin(kw, kb, din, dout, scale=0.05):
        return (jax.random.normal(kw, (din, dout), jnp.float32) * scale,
                jax.random.normal(kb, (1, dout), jnp.float32) * scale)

    w1, b1 = lin(keys[8], keys[9], H, H)
    w2, b2 = lin(keys[10], keys[11], H, H // 2)
    w3, b3 = lin(keys[12], keys[13], H // 2, NC)

    # BatchNorm1d (inference) as scale/shift: gamma=1, beta=0, mean=0, var=1.
    eps = 1e-5
    s1 = jnp.ones((1, H), jnp.float32) / jnp.sqrt(1.0 + eps)
    t1 = jnp.zeros((1, H), jnp.float32)
    s2 = jnp.ones((1, H // 2), jnp.float32) / jnp.sqrt(1.0 + eps)
    t2 = jnp.zeros((1, H // 2), jnp.float32)

    # Token ids (the module's input x: (B, L) int).
    tokens = jax.random.randint(keys[14], (B, L), 0, V)

    mlp_params = (w1, b1, s1, t1, w2, b2, s2, t2, w3, b3)
    logits = code_classifier_forward(tokens, emb_table, pos_embed, convs, KS,
                                     mlp_params)
    logits = jax.block_until_ready(logits)

    # ---- pure-JAX reference (original module structure; same bf16 matmul
    #      inputs as the kernel, f32 accumulate/epilogue) ----------------------
    bf16 = jnp.bfloat16
    x_emb = jnp.take(emb_table, tokens, axis=0)                   # (B, L, E)
    xp = x_emb + pos_embed[:, :L, :]
    xpad = jnp.pad(xp, ((0, 0), (MAXPAD, MAXPAD), (0, 0)))
    outs = []
    for (w, b), k in zip(convs, KS):
        off = MAXPAD - k // 2
        acc = jnp.zeros((B, L, C), jnp.float32)
        for t in range(k):
            acc = acc + jnp.einsum(
                'ble,ec->blc',
                xpad[:, off + t: off + t + L, :].astype(bf16),
                w[t].astype(bf16),
                preferred_element_type=jnp.float32)
        # original order: bias -> ReLU -> global max pool
        outs.append(jnp.max(jax.nn.relu(acc + b.reshape(1, 1, C)), axis=1))
    f_ref = jnp.concatenate(outs, axis=1)                         # (B, 3C)
    h = jax.nn.relu((jnp.dot(f_ref.astype(bf16), w1.astype(bf16),
                             preferred_element_type=jnp.float32) + b1) * s1 + t1)
    h = jax.nn.relu((jnp.dot(h.astype(bf16), w2.astype(bf16),
                             preferred_element_type=jnp.float32) + b2) * s2 + t2)
    ref = jnp.dot(h.astype(bf16), w3.astype(bf16),
                  preferred_element_type=jnp.float32) + b3

    assert logits.shape == (B, NC)
    assert jnp.allclose(logits, ref, atol=2e-3, rtol=2e-3), "Pallas/ref mismatch"
    # TODO(synk): dropout is modeled as identity (inference mode); no stochastic path.
    print("KERNEL_OK")
</pallas_src>

<mosaic_0001>
module attributes {stable_mosaic.version = 11 : i64} {
  func.func @fused_kernel(%arg0: memref<64x1xi32, #tpu.memory_space<vmem>>, %arg1: memref<64x128xf32, #tpu.memory_space<vmem>>, %arg2: memref<1x16x128xf32, #tpu.memory_space<vmem>>, %arg3: memref<896x384xbf16, #tpu.memory_space<vmem>>, %arg4: memref<1x384xf32, #tpu.memory_space<vmem>>, %arg5: memref<384x384xbf16, #tpu.memory_space<vmem>>, %arg6: memref<1x384xf32, #tpu.memory_space<vmem>>, %arg7: memref<1x384xf32, #tpu.memory_space<vmem>>, %arg8: memref<1x384xf32, #tpu.memory_space<vmem>>, %arg9: memref<384x192xbf16, #tpu.memory_space<vmem>>, %arg10: memref<1x192xf32, #tpu.memory_space<vmem>>, %arg11: memref<1x192xf32, #tpu.memory_space<vmem>>, %arg12: memref<1x192xf32, #tpu.memory_space<vmem>>, %arg13: memref<192x8xbf16, #tpu.memory_space<vmem>>, %arg14: memref<1x8xf32, #tpu.memory_space<vmem>>, %arg15: memref<4x8xf32, #tpu.memory_space<vmem>>, %arg16: memref<4x22x128xf32, #tpu.memory_space<vmem>>, %arg17: memref<4x16x896xbf16, #tpu.memory_space<vmem>>) attributes {dimension_semantics = [], scalar_prefetch = 0 : i64, scratch_operands = 2 : i64, tpu.core_type = #tpu.core_type<tc>} {
    %c0 = arith.constant 0 : index
    %c0_0 = arith.constant 0 : index
    %0 = vector.load %arg0[%c0, %c0_0] : memref<64x1xi32, #tpu.memory_space<vmem>>, vector<64x1xi32>
    %1 = tpu.iota {dimensions = array<i32: 1>} : vector<64x64xi32>
    %2 = vector.broadcast %0 : vector<64x1xi32> to vector<64x64xi32>
    %3 = arith.cmpi eq, %1, %2 : vector<64x64xi32>
    %4 = arith.extui %3 : vector<64x64xi1> to vector<64x64xi32>
    %5 = arith.sitofp %4 : vector<64x64xi32> to vector<64x64xf32>
    %c0_1 = arith.constant 0 : index
    %c0_2 = arith.constant 0 : index
    %6 = vector.load %arg1[%c0_1, %c0_2] : memref<64x128xf32, #tpu.memory_space<vmem>>, vector<64x128xf32>
    %cst = arith.constant dense<0.000000e+00> : vector<64x128xf32>
    %7 = tpu.matmul %5, %6, %cst {dimension_numbers = #tpu.dot_dimension_numbers<[1], [0], [0], [1], [0, 0, 1, 1], [], []>} : vector<64x64xf32>, vector<64x128xf32>, vector<64x128xf32> -> vector<64x128xf32>
    %8 = vector.shape_cast %7 : vector<64x128xf32> to vector<4x16x128xf32>
    %c0_3 = arith.constant 0 : index
    %c0_4 = arith.constant 0 : index
    %c0_5 = arith.constant 0 : index
    %9 = vector.load %arg2[%c0_3, %c0_4, %c0_5] : memref<1x16x128xf32, #tpu.memory_space<vmem>>, vector<1x16x128xf32>
    %10 = vector.broadcast %9 : vector<1x16x128xf32> to vector<4x16x128xf32>
    %11 = arith.addf %8, %10 : vector<4x16x128xf32>
    %cst_6 = arith.constant 0.000000e+00 : f32
    %12 = vector.broadcast %cst_6 : f32 to vector<4x3x128xf32>
    %c0_7 = arith.constant 0 : index
    %c0_8 = arith.constant 0 : index
    %c0_9 = arith.constant 0 : index
    %13 = vector.load %arg16[%c0_7, %c0_8, %c0_9] : memref<4x22x128xf32, #tpu.memory_space<vmem>>, vector<4x3x128xf32>
    tpu.vector_store %arg16[%c0_7, %c0_8, %c0_9], %12 {strides = array<i32>} : memref<4x22x128xf32, #tpu.memory_space<vmem>>, vector<4x3x128xf32>,
    %c0_10 = arith.constant 0 : index
    %c19 = arith.constant 19 : index
    %c0_11 = arith.constant 0 : index
    %14 = vector.load %arg16[%c0_10, %c19, %c0_11] : memref<4x22x128xf32, #tpu.memory_space<vmem>>, vector<4x3x128xf32>
    tpu.vector_store %arg16[%c0_10, %c19, %c0_11], %12 {strides = array<i32>} : memref<4x22x128xf32, #tpu.memory_space<vmem>>, vector<4x3x128xf32>,
    %c0_12 = arith.constant 0 : index
    %c3 = arith.constant 3 : index
    %c0_13 = arith.constant 0 : index
    %15 = vector.load %arg16[%c0_12, %c3, %c0_13] : memref<4x22x128xf32, #tpu.memory_space<vmem>>, vector<4x16x128xf32>
    tpu.vector_store %arg16[%c0_12, %c3, %c0_13], %11 {strides = array<i32>} : memref<4x22x128xf32, #tpu.memory_space<vmem>>, vector<4x16x128xf32>,
    %c0_14 = arith.constant 0 : index
    %c0_15 = arith.constant 0 : index
    %c0_16 = arith.constant 0 : index
    %16 = vector.load %arg16[%c0_14, %c0_15, %c0_16] : memref<4x22x128xf32, #tpu.memory_space<vmem>>, vector<4x16x128xf32>
    %17 = arith.truncf %16 : vector<4x16x128xf32> to vector<4x16x128xbf16>
    %c0_17 = arith.constant 0 : index
    %c0_18 = arith.constant 0 : index
    %c0_19 = arith.constant 0 : index
    %18 = vector.load %arg17[%c0_17, %c0_18, %c0_19] : memref<4x16x896xbf16, #tpu.memory_space<vmem>>, vector<4x16x128xbf16>
    tpu.vector_store %arg17[%c0_17, %c0_18, %c0_19], %17 {strides = array<i32>} : memref<4x16x896xbf16, #tpu.memory_space<vmem>>, vector<4x16x128xbf16>,
    %c0_20 = arith.constant 0 : index
    %c1 = arith.constant 1 : index
    %c0_21 = arith.constant 0 : index
    %19 = vector.load %arg16[%c0_20, %c1, %c0_21] : memref<4x22x128xf32, #tpu.memory_space<vmem>>, vector<4x16x128xf32>
    %20 = arith.truncf %19 : vector<4x16x128xf32> to vector<4x16x128xbf16>
    %c0_22 = arith.constant 0 : index
    %c0_23 = arith.constant 0 : index
    %c128 = arith.constant 128 : index
    %21 = vector.load %arg17[%c0_22, %c0_23, %c128] : memref<4x16x896xbf16, #tpu.memory_space<vmem>>, vector<4x16x128xbf16>
    tpu.vector_store %arg17[%c0_22, %c0_23, %c128], %20 {strides = array<i32>} : memref<4x16x896xbf16, #tpu.memory_space<vmem>>, vector<4x16x128xbf16>,
    %c0_24 = arith.constant 0 : index
    %c2 = arith.constant 2 : index
    %c0_25 = arith.constant 0 : index
    %22 = vector.load %arg16[%c0_24, %c2, %c0_25] : memref<4x22x128xf32, #tpu.memory_space<vmem>>, vector<4x16x128xf32>
    %23 = arith.truncf %22 : vector<4x16x128xf32> to vector<4x16x128xbf16>
    %c0_26 = arith.constant 0 : index
    %c0_27 = arith.constant 0 : index
    %c256 = arith.constant 256 : index
    %24 = vector.load %arg17[%c0_26, %c0_27, %c256] : memref<4x16x896xbf16, #tpu.memory_space<vmem>>, vector<4x16x128xbf16>
    tpu.vector_store %arg17[%c0_26, %c0_27, %c256], %23 {strides = array<i32>} : memref<4x16x896xbf16, #tpu.memory_space<vmem>>, vector<4x16x128xbf16>,
    %c0_28 = arith.constant 0 : index
    %c3_29 = arith.constant 3 : index
    %c0_30 = arith.constant 0 : index
    %25 = vector.load %arg16[%c0_28, %c3_29, %c0_30] : memref<4x22x128xf32, #tpu.memory_space<vmem>>, vector<4x16x128xf32>
    %26 = arith.truncf %25 : vector<4x16x128xf32> to vector<4x16x128xbf16>
    %c0_31 = arith.constant 0 : index
    %c0_32 = arith.constant 0 : index
    %c384 = arith.constant 384 : index
    %27 = vector.load %arg17[%c0_31, %c0_32, %c384] : memref<4x16x896xbf16, #tpu.memory_space<vmem>>, vector<4x16x128xbf16>
    tpu.vector_store %arg17[%c0_31, %c0_32, %c384], %26 {strides = array<i32>} : memref<4x16x896xbf16, #tpu.memory_space<vmem>>, vector<4x16x128xbf16>,
    %c0_33 = arith.constant 0 : index
    %c4 = arith.constant 4 : index
    %c0_34 = arith.constant 0 : index
    %28 = vector.load %arg16[%c0_33, %c4, %c0_34] : memref<4x22x128xf32, #tpu.memory_space<vmem>>, vector<4x16x128xf32>
    %29 = arith.truncf %28 : vector<4x16x128xf32> to vector<4x16x128xbf16>
    %c0_35 = arith.constant 0 : index
    %c0_36 = arith.constant 0 : index
    %c512 = arith.constant 512 : index
    %30 = vector.load %arg17[%c0_35, %c0_36, %c512] : memref<4x16x896xbf16, #tpu.memory_space<vmem>>, vector<4x16x128xbf16>
    tpu.vector_store %arg17[%c0_35, %c0_36, %c512], %29 {strides = array<i32>} : memref<4x16x896xbf16, #tpu.memory_space<vmem>>, vector<4x16x128xbf16>,
    %c0_37 = arith.constant 0 : index
    %c5 = arith.constant 5 : index
    %c0_38 = arith.constant 0 : index
    %31 = vector.load %arg16[%c0_37, %c5, %c0_38] : memref<4x22x128xf32, #tpu.memory_space<vmem>>, vector<4x16x128xf32>
    %32 = arith.truncf %31 : vector<4x16x128xf32> to vector<4x16x128xbf16>
    %c0_39 = arith.constant 0 : index
    %c0_40 = arith.constant 0 : index
    %c640 = arith.constant 640 : index
    %33 = vector.load %arg17[%c0_39, %c0_40, %c640] : memref<4x16x896xbf16, #tpu.memory_space<vmem>>, vector<4x16x128xbf16>
    tpu.vector_store %arg17[%c0_39, %c0_40, %c640], %32 {strides = array<i32>} : memref<4x16x896xbf16, #tpu.memory_space<vmem>>, vector<4x16x128xbf16>,
    %c0_41 = arith.constant 0 : index
    %c6 = arith.constant 6 : index
    %c0_42 = arith.constant 0 : index
    %34 = vector.load %arg16[%c0_41, %c6, %c0_42] : memref<4x22x128xf32, #tpu.memory_space<vmem>>, vector<4x16x128xf32>
    %35 = arith.truncf %34 : vector<4x16x128xf32> to vector<4x16x128xbf16>
    %c0_43 = arith.constant 0 : index
    %c0_44 = arith.constant 0 : index
    %c768 = arith.constant 768 : index
    %36 = vector.load %arg17[%c0_43, %c0_44, %c768] : memref<4x16x896xbf16, #tpu.memory_space<vmem>>, vector<4x16x128xbf16>
    tpu.vector_store %arg17[%c0_43, %c0_44, %c768], %35 {strides = array<i32>} : memref<4x16x896xbf16, #tpu.memory_space<vmem>>, vector<4x16x128xbf16>,
    %c0_45 = arith.constant 0 : index
    %c0_46 = arith.constant 0 : index
    %c0_47 = arith.constant 0 : index
    %37 = vector.load %arg17[%c0_45, %c0_46, %c0_47] : memref<4x16x896xbf16, #tpu.memory_space<vmem>>, vector<4x16x896xbf16>
    %38 = vector.shape_cast %37 : vector<4x16x896xbf16> to vector<64x896xbf16>
    %c0_48 = arith.constant 0 : index
    %c0_49 = arith.constant 0 : index
    %39 = vector.load %arg3[%c0_48, %c0_49] : memref<896x384xbf16, #tpu.memory_space<vmem>>, vector<896x384xbf16>
    %cst_50 = arith.constant dense<0.000000e+00> : vector<64x384xf32>
    %40 = tpu.matmul %38, %39, %cst_50 {dimension_numbers = #tpu.dot_dimension_numbers<[1], [0], [0], [1], [0, 0, 1, 1], [], []>} : vector<64x896xbf16>, vector<896x384xbf16>, vector<64x384xf32> -> vector<64x384xf32>
    %41 = vector.shape_cast %40 : vector<64x384xf32> to vector<4x16x384xf32>
    %cst_51 = arith.constant dense<0xFF800000> : vector<4x384xf32>
    %42 = vector.multi_reduction <maximumf>, %41, %cst_51 [1] : vector<4x16x384xf32> to vector<4x384xf32>
    %c0_52 = arith.constant 0 : index
    %c0_53 = arith.constant 0 : index
    %43 = vector.load %arg4[%c0_52, %c0_53] : memref<1x384xf32, #tpu.memory_space<vmem>>, vector<1x384xf32>
    %44 = vector.broadcast %43 : vector<1x384xf32> to vector<4x384xf32>
    %45 = arith.addf %42, %44 : vector<4x384xf32>
    %cst_54 = arith.constant 0.000000e+00 : f32
    %46 = vector.broadcast %cst_54 : f32 to vector<4x384xf32>
    %47 = arith.maximumf %45, %46 : vector<4x384xf32>
    %48 = arith.truncf %47 : vector<4x384xf32> to vector<4x384xbf16>
    %c0_55 = arith.constant 0 : index
    %c0_56 = arith.constant 0 : index
    %49 = vector.load %arg5[%c0_55, %c0_56] : memref<384x384xbf16, #tpu.memory_space<vmem>>, vector<384x384xbf16>
    %cst_57 = arith.constant dense<0.000000e+00> : vector<4x384xf32>
    %50 = tpu.matmul %48, %49, %cst_57 {dimension_numbers = #tpu.dot_dimension_numbers<[1], [0], [0], [1], [0, 0, 1, 1], [], []>} : vector<4x384xbf16>, vector<384x384xbf16>, vector<4x384xf32> -> vector<4x384xf32>
    %c0_58 = arith.constant 0 : index
    %c0_59 = arith.constant 0 : index
    %51 = vector.load %arg6[%c0_58, %c0_59] : memref<1x384xf32, #tpu.memory_space<vmem>>, vector<1x384xf32>
    %52 = vector.broadcast %51 : vector<1x384xf32> to vector<4x384xf32>
    %53 = arith.addf %50, %52 : vector<4x384xf32>
    %c0_60 = arith.constant 0 : index
    %c0_61 = arith.constant 0 : index
    %54 = vector.load %arg7[%c0_60, %c0_61] : memref<1x384xf32, #tpu.memory_space<vmem>>, vector<1x384xf32>
    %55 = vector.broadcast %54 : vector<1x384xf32> to vector<4x384xf32>
    %56 = arith.mulf %53, %55 : vector<4x384xf32>
    %c0_62 = arith.constant 0 : index
    %c0_63 = arith.constant 0 : index
    %57 = vector.load %arg8[%c0_62, %c0_63] : memref<1x384xf32, #tpu.memory_space<vmem>>, vector<1x384xf32>
    %58 = vector.broadcast %57 : vector<1x384xf32> to vector<4x384xf32>
    %59 = arith.addf %56, %58 : vector<4x384xf32>
    %cst_64 = arith.constant 0.000000e+00 : f32
    %60 = vector.broadcast %cst_64 : f32 to vector<4x384xf32>
    %61 = arith.maximumf %59, %60 : vector<4x384xf32>
    %62 = arith.truncf %61 : vector<4x384xf32> to vector<4x384xbf16>
    %c0_65 = arith.constant 0 : index
    %c0_66 = arith.constant 0 : index
    %63 = vector.load %arg9[%c0_65, %c0_66] : memref<384x192xbf16, #tpu.memory_space<vmem>>, vector<384x192xbf16>
    %cst_67 = arith.constant dense<0.000000e+00> : vector<4x192xf32>
    %64 = tpu.matmul %62, %63, %cst_67 {dimension_numbers = #tpu.dot_dimension_numbers<[1], [0], [0], [1], [0, 0, 1, 1], [], []>} : vector<4x384xbf16>, vector<384x192xbf16>, vector<4x192xf32> -> vector<4x192xf32>
    %c0_68 = arith.constant 0 : index
    %c0_69 = arith.constant 0 : index
    %65 = vector.load %arg10[%c0_68, %c0_69] : memref<1x192xf32, #tpu.memory_space<vmem>>, vector<1x192xf32>
    %66 = vector.broadcast %65 : vector<1x192xf32> to vector<4x192xf32>
    %67 = arith.addf %64, %66 : vector<4x192xf32>
    %c0_70 = arith.constant 0 : index
    %c0_71 = arith.constant 0 : index
    %68 = vector.load %arg11[%c0_70, %c0_71] : memref<1x192xf32, #tpu.memory_space<vmem>>, vector<1x192xf32>
    %69 = vector.broadcast %68 : vector<1x192xf32> to vector<4x192xf32>
    %70 = arith.mulf %67, %69 : vector<4x192xf32>
    %c0_72 = arith.constant 0 : index
    %c0_73 = arith.constant 0 : index
    %71 = vector.load %arg12[%c0_72, %c0_73] : memref<1x192xf32, #tpu.memory_space<vmem>>, vector<1x192xf32>
    %72 = vector.broadcast %71 : vector<1x192xf32> to vector<4x192xf32>
    %73 = arith.addf %70, %72 : vector<4x192xf32>
    %cst_74 = arith.constant 0.000000e+00 : f32
    %74 = vector.broadcast %cst_74 : f32 to vector<4x192xf32>
    %75 = arith.maximumf %73, %74 : vector<4x192xf32>
    %76 = arith.truncf %75 : vector<4x192xf32> to vector<4x192xbf16>
    %c0_75 = arith.constant 0 : index
    %c0_76 = arith.constant 0 : index
    %77 = vector.load %arg13[%c0_75, %c0_76] : memref<192x8xbf16, #tpu.memory_space<vmem>>, vector<192x8xbf16>
    %cst_77 = arith.constant dense<0.000000e+00> : vector<4x8xf32>
    %78 = tpu.matmul %76, %77, %cst_77 {dimension_numbers = #tpu.dot_dimension_numbers<[1], [0], [0], [1], [0, 0, 1, 1], [], []>} : vector<4x192xbf16>, vector<192x8xbf16>, vector<4x8xf32> -> vector<4x8xf32>
    %c0_78 = arith.constant 0 : index
    %c0_79 = arith.constant 0 : index
    %79 = vector.load %arg14[%c0_78, %c0_79] : memref<1x8xf32, #tpu.memory_space<vmem>>, vector<1x8xf32>
    %80 = vector.broadcast %79 : vector<1x8xf32> to vector<4x8xf32>
    %81 = arith.addf %78, %80 : vector<4x8xf32>
    %c0_80 = arith.constant 0 : index
    %c0_81 = arith.constant 0 : index
    %82 = vector.load %arg15[%c0_80, %c0_81] : memref<4x8xf32, #tpu.memory_space<vmem>>, vector<4x8xf32>
    tpu.vector_store %arg15[%c0_80, %c0_81], %81 {strides = array<i32>} : memref<4x8xf32, #tpu.memory_space<vmem>>, vector<4x8xf32>,
    return
  }
}

</mosaic_0001>

<llo_original>
// kernel: tpu_custom_call.1
$region0: #{tpu_custom_call.1}
  #allocation0 [shape = 'u32[]', space=smem, size = 0x4, offset = 0x4, fixed_abs, tag = 'smem constant byte address 0x4 - core index']
  #allocation1 [shape = 'u32[144,128]{1,0:T(1,128)}', space=vmem, size = 0x12000, scoped, tag = 'internal scratch']
  #allocation2 [shape = 'f32[4,22,128]{2,1,0:T(8,128)}', space=vmem, size = 0xc000, scoped, tag = 'scratch operand']
  #allocation3 [shape = 'bf16[4,16,896]{2,1,0:T(16,128)(2,1)}', space=vmem, size = 0x1c000, scoped, tag = 'scratch operand']
  %s0 = inlined_call_operand.vmem [shape: s32[64,1], index: 0, kind: input, shape index: {}]
  %s1 = inlined_call_operand.vmem [shape: f32[64,128], index: 1, kind: input, shape index: {}]
  %s2 = inlined_call_operand.vmem [shape: f32[1,16,128], index: 2, kind: input, shape index: {}]
  %s3 = inlined_call_operand.hbm [shape: bf16[896,384], index: 3, kind: input, shape index: {}]
  %s4 = inlined_call_operand.vmem [shape: f32[1,384], index: 4, kind: input, shape index: {}]
  %s5 = inlined_call_operand.vmem [shape: bf16[384,384], index: 5, kind: input, shape index: {}]
  %s6 = inlined_call_operand.vmem [shape: f32[1,384], index: 6, kind: input, shape index: {}]
  %s7 = inlined_call_operand.vmem [shape: f32[1,384], index: 7, kind: input, shape index: {}]
  %s8 = inlined_call_operand.vmem [shape: f32[1,384], index: 8, kind: input, shape index: {}]
  %s9 = inlined_call_operand.vmem [shape: bf16[384,192], index: 9, kind: input, shape index: {}]
  %s10 = inlined_call_operand.vmem [shape: f32[1,192], index: 10, kind: input, shape index: {}]
  %s11 = inlined_call_operand.vmem [shape: f32[1,192], index: 11, kind: input, shape index: {}]
  %s12 = inlined_call_operand.vmem [shape: f32[1,192], index: 12, kind: input, shape index: {}]
  %s13 = inlined_call_operand.vmem [shape: bf16[192,8], index: 13, kind: input, shape index: {}]
  %s14 = inlined_call_operand.vmem [shape: f32[1,8], index: 14, kind: input, shape index: {}]
  %s15 = inlined_call_operand.hbm [shape: f32[4,8], index: 15, kind: output, shape index: {}]
  %s16 = sld [smem:[#allocation0]]
  $region74: #{tpu_custom_call.1} parent=0
    _
  %s18 = ssub.s32 1, %s16
  %s19 = scalar_select 0, %s18, %s16
  $region1: #{tpu_custom_call.1} parent=0
    #allocation4 [shape = 'u8[688128]{0}', space=vmem, size = 0xa8000, scoped, tag = 'input window, operand 3, single buffered']
    #allocation5 [shape = 's32[1]{0}', space=sflag, size = 0x4, scoped, tag = 'scoped memory for tpu_custom_call.1']
    #allocation6 [shape = 's32[1]{0}', space=sflag, size = 0x4, scoped, tag = 'scoped memory for tpu_custom_call.1']
    #allocation7 [shape = 'u8[2048]{0}', space=vmem, size = 0x800, scoped, tag = 'output window, operand 0, single buffered']
    %20 = vsyncpa [#allocation5], 0
    %21 = vsyncpa [#allocation6], 0
    // Predicated region
    $region2: #{tpu_custom_call.1} parent=1 // pred_check
      _
    $region3: #{tpu_custom_call.1} parent=1 // pred_check_branch
      %23 = sbr.rel (0) target = $region5
    $region4: #{tpu_custom_call.1} parent=1 // pred_region
      _
    $region5: #{tpu_custom_call.1} parent=1 // pred_fallthru
      _
    // Predicated region
    $region6: #{tpu_custom_call.1} parent=1 // pred_check
      _
    $region7: #{tpu_custom_call.1} parent=1 // pred_check_branch
      %25 = sbr.rel (0) target = $region9
    $region8: #{tpu_custom_call.1} parent=1 // pred_region
      _
    $region9: #{tpu_custom_call.1} parent=1 // pred_fallthru
      _
    // Predicated region
    $region10: #{tpu_custom_call.1} parent=1 // pred_check
      _
    $region11: #{tpu_custom_call.1} parent=1 // pred_check_branch
      %27 = sbr.rel (0) target = $region13
    $region12: #{tpu_custom_call.1} parent=1 // pred_region
      _
    $region13: #{tpu_custom_call.1} parent=1 // pred_fallthru
      _
    // Predicated region
    $region14: #{tpu_custom_call.1} parent=1 // pred_check
      _
    $region15: #{tpu_custom_call.1} parent=1 // pred_check_branch
      %29 = sbr.rel (0) target = $region17
    $region16: #{tpu_custom_call.1} parent=1 // pred_region
      %s31 = ssub.s32 21504, 21504
      %32 = vsyncadd [#allocation5], %s31
      %s33 = sshll.u32 [#allocation4], 4
      %s34 = int_to_ptr.vmem [resolvable:$true] %s33
      %39 = dma.hbm_to_vmem [thread:$0]  %s3, 21504, %s34, [#allocation5], 192, 192, 12
    $region17: #{tpu_custom_call.1} parent=1 // pred_fallthru
      _
    // Predicated region
    $region18: #{tpu_custom_call.1} parent=1 // pred_check
      _
    $region19: #{tpu_custom_call.1} parent=1 // pred_check_branch
      %41 = sbr.rel (0) target = $region21
    $region20: #{tpu_custom_call.1} parent=1 // pred_region
      _
    $region21: #{tpu_custom_call.1} parent=1 // pred_fallthru
      _
    // Predicated region
    $region22: #{tpu_custom_call.1} parent=1 // pred_check
      _
    $region23: #{tpu_custom_call.1} parent=1 // pred_check_branch
      %43 = sbr.rel (0) target = $region25
    $region24: #{tpu_custom_call.1} parent=1 // pred_region
      _
    $region25: #{tpu_custom_call.1} parent=1 // pred_fallthru
      _
    // Predicated region
    $region26: #{tpu_custom_call.1} parent=1 // pred_check
      _
    $region27: #{tpu_custom_call.1} parent=1 // pred_check_branch
      %45 = sbr.rel (0) target = $region29
    $region28: #{tpu_custom_call.1} parent=1 // pred_region
      _
    $region29: #{tpu_custom_call.1} parent=1 // pred_fallthru
      _
    // Predicated region
    $region30: #{tpu_custom_call.1} parent=1 // pred_check
      _
    $region31: #{tpu_custom_call.1} parent=1 // pred_check_branch
      %47 = sbr.rel (0) target = $region33
    $region32: #{tpu_custom_call.1} parent=1 // pred_region
      _
    $region33: #{tpu_custom_call.1} parent=1 // pred_fallthru
      _
    // Predicated region
    $region34: #{tpu_custom_call.1} parent=1 // pred_check
      _
    $region35: #{tpu_custom_call.1} parent=1 // pred_check_branch
      %49 = sbr.rel (0) target = $region37
    $region36: #{tpu_custom_call.1} parent=1 // pred_region
      _
    $region37: #{tpu_custom_call.1} parent=1 // pred_fallthru
      _
    // Predicated region
    $region38: #{tpu_custom_call.1} parent=1 // pred_check
      _
    $region39: #{tpu_custom_call.1} parent=1 // pred_check_branch
      %51 = sbr.rel (0) target = $region41
    $region40: #{tpu_custom_call.1} parent=1 // pred_region
      _
    $region41: #{tpu_custom_call.1} parent=1 // pred_fallthru
      _
    // Predicated region
    $region42: #{tpu_custom_call.1} parent=1 // pred_check
      _
    $region43: #{tpu_custom_call.1} parent=1 // pred_check_branch
      %53 = sbr.rel (0) target = $region45
    $region44: #{tpu_custom_call.1} parent=1 // pred_region
      _
    $region45: #{tpu_custom_call.1} parent=1 // pred_fallthru
      _
    // Predicated region
    $region46: #{tpu_custom_call.1} parent=1 // pred_check
      _
    $region47: #{tpu_custom_call.1} parent=1 // pred_check_branch
      %55 = sbr.rel (0) target = $region49
    $region48: #{tpu_custom_call.1} parent=1 // pred_region
      _
    $region49: #{tpu_custom_call.1} parent=1 // pred_fallthru
      _
    // Predicated region
    $region50: #{tpu_custom_call.1} parent=1 // pred_check
      _
    $region51: #{tpu_custom_call.1} parent=1 // pred_check_branch
      %57 = sbr.rel (0) target = $region53
    $region52: #{tpu_custom_call.1} parent=1 // pred_region
      _
    $region53: #{tpu_custom_call.1} parent=1 // pred_fallthru
      _
    // Predicated region
    $region54: #{tpu_custom_call.1} parent=1 // pred_check
      _
    $region55: #{tpu_custom_call.1} parent=1 // pred_check_branch
      %59 = sbr.rel (0) target = $region57
    $region56: #{tpu_custom_call.1} parent=1 // pred_region
      _
    $region57: #{tpu_custom_call.1} parent=1 // pred_fallthru
      _
    // Predicated region
    $region58: #{tpu_custom_call.1} parent=1 // pred_check
      _
    $region59: #{tpu_custom_call.1} parent=1 // pred_check_branch
      %61 = sbr.rel (0) target = $region61
    $region60: #{tpu_custom_call.1} parent=1 // pred_region
      _
    $region61: #{tpu_custom_call.1} parent=1 // pred_fallthru
      _
    // Predicated region
    $region62: #{tpu_custom_call.1} parent=1 // pred_check
      _
    $region63: #{tpu_custom_call.1} parent=1 // pred_check_branch
      %63 = sbr.rel (0) target = $region65
    $region64: #{tpu_custom_call.1} parent=1 // pred_region
      %64 = dma.done [#allocation5], 21504
    $region65: #{tpu_custom_call.1} parent=1 // pred_fallthru
      _
    %v66 = vld [vmem:[%s0] sm:$0xff]
    %v67 = vld [vmem:[%s0 + $0x8] sm:$0xff]
    %v68 = vld [vmem:[%s0 + $0x10] sm:$0xff]
    %v69 = vld [vmem:[%s0 + $0x18] sm:$0xff]
    %v70 = vld [vmem:[%s0 + $0x20] sm:$0xff]
    %v71 = vld [vmem:[%s0 + $0x28] sm:$0xff]
    %v72 = vld [vmem:[%s0 + $0x30] sm:$0xff]
    %v73 = vld [vmem:[%s0 + $0x38] sm:$0xff]
    %v74 = vlaneseq
    %v75 = vand.u32 %v74, 127
    %76 = vset.pattern.permute.xlu0 0
    %77 = vperm.xlu0 %76, %v66
    %v78 = vpop.permute.xlu0 %77
    %79 = vset.pattern.permute.xlu0 0
    %80 = vperm.xlu0 %79, %v67
    %v81 = vpop.permute.xlu0 %80
    %82 = vset.pattern.permute.xlu0 0
    %83 = vperm.xlu0 %82, %v68
    %v84 = vpop.permute.xlu0 %83
    %85 = vset.pattern.permute.xlu0 0
    %86 = vperm.xlu0 %85, %v69
    %v87 = vpop.permute.xlu0 %86
    %88 = vset.pattern.permute.xlu0 0
    %89 = vperm.xlu0 %88, %v70
    %v90 = vpop.permute.xlu0 %89
    %91 = vset.pattern.permute.xlu0 0
    %92 = vperm.xlu0 %91, %v71
    %v93 = vpop.permute.xlu0 %92
    %94 = vset.pattern.permute.xlu0 0
    %95 = vperm.xlu0 %94, %v72
    %v96 = vpop.permute.xlu0 %95
    %97 = vset.pattern.permute.xlu0 0
    %98 = vperm.xlu0 %97, %v73
    %v99 = vpop.permute.xlu0 %98
    %vm100 = vcmp.eq.s32.totalorder %v75, %v78
    %vm101 = vcmp.eq.s32.totalorder %v75, %v81
    %vm102 = vcmp.eq.s32.totalorder %v75, %v84
    %vm103 = vcmp.eq.s32.totalorder %v75, %v87
    %vm104 = vcmp.eq.s32.totalorder %v75, %v90
    %vm105 = vcmp.eq.s32.totalorder %v75, %v93
    %vm106 = vcmp.eq.s32.totalorder %v75, %v96
    %vm107 = vcmp.eq.s32.totalorder %v75, %v99
    %v108 = vsel %vm100, 1, 0
    %v109 = vsel %vm101, 1, 0
    %v110 = vsel %vm102, 1, 0
    %v111 = vsel %vm103, 1, 0
    %v112 = vsel %vm104, 1, 0
    %v113 = vsel %vm105, 1, 0
    %v114 = vsel %vm106, 1, 0
    %v115 = vsel %vm107, 1, 0
    %v116 = vcvt.s32.f32 %v108
    %v117 = vcvt.s32.f32 %v109
    %v118 = vcvt.s32.f32 %v110
    %v119 = vcvt.s32.f32 %v111
    %v120 = vcvt.s32.f32 %v112
    %v121 = vcvt.s32.f32 %v113
    %v122 = vcvt.s32.f32 %v114
    %v123 = vcvt.s32.f32 %v115
    %v124 = vld [vmem:[%s1] sm:$0xff]
    %v125 = vld [vmem:[%s1 + $0x8] sm:$0xff]
    %v126 = vld [vmem:[%s1 + $0x10] sm:$0xff]
    %v127 = vld [vmem:[%s1 + $0x18] sm:$0xff]
    %v128 = vld [vmem:[%s1 + $0x20] sm:$0xff]
    %v129 = vld [vmem:[%s1 + $0x28] sm:$0xff]
    %v130 = vld [vmem:[%s1 + $0x30] sm:$0xff]
    %v131 = vld [vmem:[%s1 + $0x38] sm:$0xff]
    %vm132 = vcmask 523264
    %v134 = vsel %vm132, %v116, 0
    %v137 = vsel %vm132, %v117, 0
    %v140 = vsel %vm132, %v118, 0
    %v143 = vsel %vm132, %v119, 0
    %v146 = vsel %vm132, %v120, 0
    %v149 = vsel %vm132, %v121, 0
    %v152 = vsel %vm132, %v122, 0
    %v155 = vsel %vm132, %v123, 0
    %157 = vmatprep.subr.mxu0 0.0
    %158 = vmatpush1.msra.mxu0 %v124
    %159 = vmatprep.subr.mxu0 0.0
    %160 = vmatpush1.msra.mxu0 %v125
    %161 = vmatprep.subr.mxu0 0.0
    %162 = vmatpush1.msra.mxu0 %v126
    %163 = vmatprep.subr.mxu0 0.0
    %164 = vmatpush1.msra.mxu0 %v127
    %165 = vmatprep.subr.mxu0 0.0
    %166 = vmatpush1.msra.mxu0 %v128
    %167 = vmatprep.subr.mxu0 0.0
    %168 = vmatpush1.msra.mxu0 %v129
    %169 = vmatprep.subr.mxu0 0.0
    %170 = vmatpush1.msra.mxu0 %v130
    %171 = vmatprep.subr.mxu0 0.0
    %172 = vmatpush1.msra.mxu0 %v131
    %173 = vmatprep.subr.mxu0 0.0
    %174 = vmatpush1.msra.mxu0 0.0
    %175 = vmatprep.subr.mxu0 0.0
    %176 = vmatpush1.msra.mxu0 0.0
    %177 = vmatprep.subr.mxu0 0.0
    %178 = vmatpush1.msra.mxu0 0.0
    %179 = vmatprep.subr.mxu0 0.0
    %180 = vmatpush1.msra.mxu0 0.0
    %181 = vmatprep.subr.mxu0 0.0
    %182 = vmatpush1.msra.mxu0 0.0
    %183 = vmatprep.subr.mxu0 0.0
    %184 = vmatpush1.msra.mxu0 0.0
    %185 = vmatprep.subr.mxu0 0.0
    %186 = vmatpush1.msra.mxu0 0.0
    %187 = vmatprep.subr.mxu0 0.0
    %188 = vmatpush1.msra.mxu0 0.0
    %189 = vmatprep.subr.mxu0 0.0
    %190 = vmatpush1.msra.mxu0 0.0
    %191 = vmatprep.subr.mxu0 0.0
    %192 = vmatpush1.msra.mxu0 0.0
    %193 = vmatprep.subr.mxu0 0.0
    %194 = vmatpush1.msra.mxu0 0.0
    %195 = vmatprep.subr.mxu0 0.0
    %196 = vmatpush1.msra.mxu0 0.0
    %197 = vmatprep.subr.mxu0 0.0
    %198 = vmatpush1.msra.mxu0 0.0
    %199 = vmatprep.subr.mxu0 0.0
    %200 = vmatpush1.msra.mxu0 0.0
    %201 = vmatprep.subr.mxu0 0.0
    %202 = vmatpush1.msra.mxu0 0.0
    %203 = vmatprep.subr.mxu0 0.0
    %204 = vmatpush1.msra.mxu0 0.0
    %205 = vmatprep.subr.mxu0 0.0
    %206 = vmatpush1.msra.mxu0 0.0
    %207 = vmatprep.subr.mxu0 0.0
    %208 = vmatpush1.msra.mxu0 0.0
    %209 = vmatprep.subr.mxu0 0.0
    %210 = vmatpush1.msra.mxu0 0.0
    %211 = vmatprep.subr.mxu0 0.0
    %212 = vmatpush1.msra.mxu0 0.0
    %213 = vmatprep.subr.mxu0 0.0
    %214 = vmatpush1.msra.mxu0 0.0
    %215 = vmatprep.subr.mxu0 0.0
    %216 = vmatpush1.msra.mxu0 0.0
    %217 = vmatprep.subr.mxu0 0.0
    %218 = vmatpush1.msra.mxu0 0.0
    %219 = vmatprep.subr.mxu0 0.0
    %220 = vmatpush1.msra.mxu0 0.0
    %221 = vmatprep.mubr.f32.mxu0 0.0
    %222 = vmatmul.mubr.f32.gmra.mrb[0].mxu0 %v134
    %v223 = vpop.f32.mrb[0].mxu0
    %v224 = vadd.f32 0.0, %v223
    %v225 = vpop.f32.mrb[0].mxu0
    %226 = vmatprep.mubr.f32.mxu0 0.0
    %227 = vmatmul.mubr.f32.gmra.mrb[0].mxu0 %v137
    %v228 = vpop.f32.mrb[0].mxu0
    %v229 = vadd.f32 0.0, %v228
    %v230 = vpop.f32.mrb[0].mxu0
    %231 = vmatprep.mubr.f32.mxu0 0.0
    %232 = vmatmul.mubr.f32.gmra.mrb[0].mxu0 %v140
    %v233 = vpop.f32.mrb[0].mxu0
    %v234 = vadd.f32 0.0, %v233
    %v235 = vpop.f32.mrb[0].mxu0
    %236 = vmatprep.mubr.f32.mxu0 0.0
    %237 = vmatmul.mubr.f32.gmra.mrb[0].mxu0 %v143
    %v238 = vpop.f32.mrb[0].mxu0
    %v239 = vadd.f32 0.0, %v238
    %v240 = vpop.f32.mrb[0].mxu0
    %241 = vmatprep.mubr.f32.mxu0 0.0
    %242 = vmatmul.mubr.f32.gmra.mrb[0].mxu0 %v146
    %v243 = vpop.f32.mrb[0].mxu0
    %v244 = vadd.f32 0.0, %v243
    %v245 = vpop.f32.mrb[0].mxu0
    %246 = vmatprep.mubr.f32.mxu0 0.0
    %247 = vmatmul.mubr.f32.gmra.mrb[0].mxu0 %v149
    %v248 = vpop.f32.mrb[0].mxu0
    %v249 = vadd.f32 0.0, %v248
    %v250 = vpop.f32.mrb[0].mxu0
    %251 = vmatprep.mubr.f32.mxu0 0.0
    %252 = vmatmul.mubr.f32.gmra.mrb[0].mxu0 %v152
    %v253 = vpop.f32.mrb[0].mxu0
    %v254 = vadd.f32 0.0, %v253
    %v255 = vpop.f32.mrb[0].mxu0
    %256 = vmatprep.mubr.f32.mxu0 0.0
    %257 = vmatmul.mubr.f32.gmra.mrb[0].mxu0 %v155
    %v258 = vpop.f32.mrb[0].mxu0
    %v259 = vadd.f32 0.0, %v258
    %v260 = vpop.f32.mrb[0].mxu0
    %261 = vdwg.mxu0
    %v262 = vld [vmem:[%s2] sm:$0xff]
    %v263 = vld [vmem:[%s2 + $0x8] sm:$0xff]
    %v264 = vadd.f32 %v224, %v262
    %v265 = vadd.f32 %v229, %v263
    %v266 = vadd.f32 %v234, %v262
    %v267 = vadd.f32 %v239, %v263
    %v268 = vadd.f32 %v244, %v262
    %v269 = vadd.f32 %v249, %v263
    %v270 = vadd.f32 %v254, %v262
    %v271 = vadd.f32 %v259, %v263
    %272 = vst [vmem:[#allocation2] sm:$0x7] 0.0
    %273 = vst [vmem:[#allocation2 + $0x18] sm:$0x7] 0.0
    %274 = vst [vmem:[#allocation2 + $0x30] sm:$0x7] 0.0
    %275 = vst [vmem:[#allocation2 + $0x48] sm:$0x7] 0.0
    %276 = vst [vmem:[#allocation2 + $0x13] sm:$0x7] 0.0
    %277 = vst [vmem:[#allocation2 + $0x2b] sm:$0x7] 0.0
    %278 = vst [vmem:[#allocation2 + $0x43] sm:$0x7] 0.0
    %279 = vst [vmem:[#allocation2 + $0x5b] sm:$0x7] 0.0
    %280 = vst [vmem:[#allocation2 + $0x3] sm:$0xff] %v264
    %281 = vst [vmem:[#allocation2 + $0xb] sm:$0xff] %v265
    %282 = vst [vmem:[#allocation2 + $0x1b] sm:$0xff] %v266
    %283 = vst [vmem:[#allocation2 + $0x23] sm:$0xff] %v267
    %284 = vst [vmem:[#allocation2 + $0x33] sm:$0xff] %v268
    %285 = vst [vmem:[#allocation2 + $0x3b] sm:$0xff] %v269
    %286 = vst [vmem:[#allocation2 + $0x4b] sm:$0xff] %v270
    %287 = vst [vmem:[#allocation2 + $0x53] sm:$0xff] %v271
    %v288 = vld [vmem:[#allocation2] sm:$0xff]
    %v289 = vld [vmem:[#allocation2 + $0x8] sm:$0xff]
    %v290 = vld [vmem:[#allocation2 + $0x18] sm:$0xff]
    %v291 = vld [vmem:[#allocation2 + $0x20] sm:$0xff]
    %v292 = vld [vmem:[#allocation2 + $0x30] sm:$0xff]
    %v293 = vld [vmem:[#allocation2 + $0x38] sm:$0xff]
    %v294 = vld [vmem:[#allocation2 + $0x48] sm:$0xff]
    %v295 = vld [vmem:[#allocation2 + $0x50] sm:$0xff]
    %v296 = vpack.c.bf16 %v289, %v288
    %v297 = vpack.c.bf16 %v291, %v290
    %v298 = vpack.c.bf16 %v293, %v292
    %v299 = vpack.c.bf16 %v295, %v294
    %300 = vst [vmem:[#allocation3] sm:$0xff] %v296
    %301 = vst [vmem:[#allocation3 + $0x38] sm:$0xff] %v297
    %302 = vst [vmem:[#allocation3 + $0x70] sm:$0xff] %v298
    %303 = vst [vmem:[#allocation3 + $0xa8] sm:$0xff] %v299
    %v304 = vld [vmem:[#allocation2 + $0x1] sm:$0xff]
    %v305 = vld [vmem:[#allocation2 + $0x9] sm:$0xff]
    %v306 = vld [vmem:[#allocation2 + $0x19] sm:$0xff]
    %v307 = vld [vmem:[#allocation2 + $0x21] sm:$0xff]
    %v308 = vld [vmem:[#allocation2 + $0x31] sm:$0xff]
    %v309 = vld [vmem:[#allocation2 + $0x39] sm:$0xff]
    %v310 = vld [vmem:[#allocation2 + $0x49] sm:$0xff]
    %v311 = vld [vmem:[#allocation2 + $0x51] sm:$0xff]
    %v312 = vpack.c.bf16 %v305, %v304
    %v313 = vpack.c.bf16 %v307, %v306
    %v314 = vpack.c.bf16 %v309, %v308
    %v315 = vpack.c.bf16 %v311, %v310
    %316 = vst [vmem:[#allocation3 + $0x8] sm:$0xff] %v312
    %317 = vst [vmem:[#allocation3 + $0x40] sm:$0xff] %v313
    %318 = vst [vmem:[#allocation3 + $0x78] sm:$0xff] %v314
    %319 = vst [vmem:[#allocation3 + $0xb0] sm:$0xff] %v315
    %v320 = vld [vmem:[#allocation2 + $0x2] sm:$0xff]
    %v321 = vld [vmem:[#allocation2 + $0xa] sm:$0xff]
    %v322 = vld [vmem:[#allocation2 + $0x1a] sm:$0xff]
    %v323 = vld [vmem:[#allocation2 + $0x22] sm:$0xff]
    %v324 = vld [vmem:[#allocation2 + $0x32] sm:$0xff]
    %v325 = vld [vmem:[#allocation2 + $0x3a] sm:$0xff]
    %v326 = vld [vmem:[#allocation2 + $0x4a] sm:$0xff]
    %v327 = vld [vmem:[#allocation2 + $0x52] sm:$0xff]
    %v328 = vpack.c.bf16 %v321, %v320
    %v329 = vpack.c.bf16 %v323, %v322
    %v330 = vpack.c.bf16 %v325, %v324
    %v331 = vpack.c.bf16 %v327, %v326
    %332 = vst [vmem:[#allocation3 + $0x10] sm:$0xff] %v328
    %333 = vst [vmem:[#allocation3 + $0x48] sm:$0xff] %v329
    %334 = vst [vmem:[#allocation3 + $0x80] sm:$0xff] %v330
    %335 = vst [vmem:[#allocation3 + $0xb8] sm:$0xff] %v331
    %v336 = vld [vmem:[#allocation2 + $0x3] sm:$0xff]
    %v337 = vld [vmem:[#allocation2 + $0xb] sm:$0xff]
    %v338 = vld [vmem:[#allocation2 + $0x1b] sm:$0xff]
    %v339 = vld [vmem:[#allocation2 + $0x23] sm:$0xff]
    %v340 = vld [vmem:[#allocation2 + $0x33] sm:$0xff]
    %v341 = vld [vmem:[#allocation2 + $0x3b] sm:$0xff]
    %v342 = vld [vmem:[#allocation2 + $0x4b] sm:$0xff]
    %v343 = vld [vmem:[#allocation2 + $0x53] sm:$0xff]
    %v344 = vpack.c.bf16 %v337, %v336
    %v345 = vpack.c.bf16 %v339, %v338
    %v346 = vpack.c.bf16 %v341, %v340
    %v347 = vpack.c.bf16 %v343, %v342
    %348 = vst [vmem:[#allocation3 + $0x18] sm:$0xff] %v344
    %349 = vst [vmem:[#allocation3 + $0x50] sm:$0xff] %v345
    %350 = vst [vmem:[#allocation3 + $0x88] sm:$0xff] %v346
    %351 = vst [vmem:[#allocation3 + $0xc0] sm:$0xff] %v347
    %v352 = vld [vmem:[#allocation2 + $0x4] sm:$0xff]
    %v353 = vld [vmem:[#allocation2 + $0xc] sm:$0xff]
    %v354 = vld [vmem:[#allocation2 + $0x1c] sm:$0xff]
    %v355 = vld [vmem:[#allocation2 + $0x24] sm:$0xff]
    %v356 = vld [vmem:[#allocation2 + $0x34] sm:$0xff]
    %v357 = vld [vmem:[#allocation2 + $0x3c] sm:$0xff]
    %v358 = vld [vmem:[#allocation2 + $0x4c] sm:$0xff]
    %v359 = vld [vmem:[#allocation2 + $0x54] sm:$0xff]
    %v360 = vpack.c.bf16 %v353, %v352
    %v361 = vpack.c.bf16 %v355, %v354
    %v362 = vpack.c.bf16 %v357, %v356
    %v363 = vpack.c.bf16 %v359, %v358
    %364 = vst [vmem:[#allocation3 + $0x20] sm:$0xff] %v360
    %365 = vst [vmem:[#allocation3 + $0x58] sm:$0xff] %v361
    %366 = vst [vmem:[#allocation3 + $0x90] sm:$0xff] %v362
    %367 = vst [vmem:[#allocation3 + $0xc8] sm:$0xff] %v363
    %v368 = vld [vmem:[#allocation2 + $0x5] sm:$0xff]
    %v369 = vld [vmem:[#allocation2 + $0xd] sm:$0xff]
    %v370 = vld [vmem:[#allocation2 + $0x1d] sm:$0xff]
    %v371 = vld [vmem:[#allocation2 + $0x25] sm:$0xff]
    %v372 = vld [vmem:[#allocation2 + $0x35] sm:$0xff]
    %v373 = vld [vmem:[#allocation2 + $0x3d] sm:$0xff]
    %v374 = vld [vmem:[#allocation2 + $0x4d] sm:$0xff]
    %v375 = vld [vmem:[#allocation2 + $0x55] sm:$0xff]
    %v376 = vpack.c.bf16 %v369, %v368
    %v377 = vpack.c.bf16 %v371, %v370
    %v378 = vpack.c.bf16 %v373, %v372
    %v379 = vpack.c.bf16 %v375, %v374
    %380 = vst [vmem:[#allocation3 + $0x28] sm:$0xff] %v376
    %381 = vst [vmem:[#allocation3 + $0x60] sm:$0xff] %v377
    %382 = vst [vmem:[#allocation3 + $0x98] sm:$0xff] %v378
    %383 = vst [vmem:[#allocation3 + $0xd0] sm:$0xff] %v379
    %v384 = vld [vmem:[#allocation2 + $0x6] sm:$0xff]
    %v385 = vld [vmem:[#allocation2 + $0xe] sm:$0xff]
    %v386 = vld [vmem:[#allocation2 + $0x1e] sm:$0xff]
    %v387 = vld [vmem:[#allocation2 + $0x26] sm:$0xff]
    %v388 = vld [vmem:[#allocation2 + $0x36] sm:$0xff]
    %v389 = vld [vmem:[#allocation2 + $0x3e] sm:$0xff]
    %v390 = vld [vmem:[#allocation2 + $0x4e] sm:$0xff]
    %v391 = vld [vmem:[#allocation2 + $0x56] sm:$0xff]
    %v392 = vpack.c.bf16 %v385, %v384
    %v393 = vpack.c.bf16 %v387, %v386
    %v394 = vpack.c.bf16 %v389, %v388
    %v395 = vpack.c.bf16 %v391, %v390
    %396 = vst [vmem:[#allocation3 + $0x30] sm:$0xff] %v392
    %397 = vst [vmem:[#allocation3 + $0x68] sm:$0xff] %v393
    %398 = vst [vmem:[#allocation3 + $0xa0] sm:$0xff] %v394
    %399 = vst [vmem:[#allocation3 + $0xd8] sm:$0xff] %v395
    %v400 = vld [vmem:[#allocation3] sm:$0xff]
    %v401 = vld [vmem:[#allocation3 + $0x8] sm:$0xff]
    %v402 = vld [vmem:[#allocation3 + $0x10] sm:$0xff]
    %v403 = vld [vmem:[#allocation3 + $0x18] sm:$0xff]
    %v404 = vld [vmem:[#allocation3 + $0x20] sm:$0xff]
    %v405 = vld [vmem:[#allocation3 + $0x28] sm:$0xff]
    %v406 = vld [vmem:[#allocation3 + $0x30] sm:$0xff]
    %v407 = vld [vmem:[#allocation3 + $0x38] sm:$0xff]
    %v408 = vld [vmem:[#allocation3 + $0x40] sm:$0xff]
    %v409 = vld [vmem:[#allocation3 + $0x48] sm:$0xff]
    %v410 = vld [vmem:[#allocation3 + $0x50] sm:$0xff]
    %v411 = vld [vmem:[#allocation3 + $0x58] sm:$0xff]
    %v412 = vld [vmem:[#allocation3 + $0x60] sm:$0xff]
    %v413 = vld [vmem:[#allocation3 + $0x68] sm:$0xff]
    %v414 = vld [vmem:[#allocation3 + $0x70] sm:$0xff]
    %v415 = vld [vmem:[#allocation3 + $0x78] sm:$0xff]
    %v416 = vld [vmem:[#allocation3 + $0x80] sm:$0xff]
    %v417 = vld [vmem:[#allocation3 + $0x88] sm:$0xff]
    %v418 = vld [vmem:[#allocation3 + $0x90] sm:$0xff]
    %v419 = vld [vmem:[#allocation3 + $0x98] sm:$0xff]
    %v420 = vld [vmem:[#allocation3 + $0xa0] sm:$0xff]
    %v421 = vld [vmem:[#allocation3 + $0xa8] sm:$0xff]
    %v422 = vld [vmem:[#allocation3 + $0xb0] sm:$0xff]
    %v423 = vld [vmem:[#allocation3 + $0xb8] sm:$0xff]
    %v424 = vld [vmem:[#allocation3 + $0xc0] sm:$0xff]
    %v425 = vld [vmem:[#allocation3 + $0xc8] sm:$0xff]
    %v426 = vld [vmem:[#allocation3 + $0xd0] sm:$0xff]
    %v427 = vld [vmem:[#allocation3 + $0xd8] sm:$0xff]
    %v428 = vld [vmem:[#allocation4] sm:$0xff]
    %v429 = vld [vmem:[#allocation4 + $0x8] sm:$0xf]
    %v430 = vld [vmem:[#allocation4 + $0xc] sm:$0xff]
    %v431 = vld [vmem:[#allocation4 + $0x14] sm:$0xf]
    %v432 = vld [vmem:[#allocation4 + $0x18] sm:$0xff]
    %v433 = vld [vmem:[#allocation4 + $0x20] sm:$0xf]
    %v434 = vld [vmem:[#allocation4 + $0x24] sm:$0xff]
    %v435 = vld [vmem:[#allocation4 + $0x2c] sm:$0xf]
    %v436 = vld [vmem:[#allocation4 + $0x30] sm:$0xff]
    %v437 = vld [vmem:[#allocation4 + $0x38] sm:$0xf]
    %v438 = vld [vmem:[#allocation4 + $0x3c] sm:$0xff]
    %v439 = vld [vmem:[#allocation4 + $0x44] sm:$0xf]
    %v440 = vld [vmem:[#allocation4 + $0x48] sm:$0xff]
    %v441 = vld [vmem:[#allocation4 + $0x50] sm:$0xf]
    %v442 = vld [vmem:[#allocation4 + $0x54] sm:$0xff]
    %v443 = vld [vmem:[#allocation4 + $0x5c] sm:$0xf]
    %v444 = vld [vmem:[#allocation4 + $0x60] sm:$0xff]
    %v445 = vld [vmem:[#allocation4 + $0x68] sm:$0xf]
    %v446 = vld [vmem:[#allocation4 + $0x6c] sm:$0xff]
    %v447 = vld [vmem:[#allocation4 + $0x74] sm:$0xf]
    %v448 = vld [vmem:[#allocation4 + $0x78] sm:$0xff]
    %v449 = vld [vmem:[#allocation4 + $0x80] sm:$0xf]
    %v450 = vld [vmem:[#allocation4 + $0x84] sm:$0xff]
    %v451 = vld [vmem:[#allocation4 + $0x8c] sm:$0xf]
    %v452 = vld [vmem:[#allocation4 + $0x90] sm:$0xff]
    %v453 = vld [vmem:[#allocation4 + $0x98] sm:$0xf]
    %v454 = vld [vmem:[#allocation4 + $0x9c] sm:$0xff]
    %v455 = vld [vmem:[#allocation4 + $0xa4] sm:$0xf]
    %v456 = vld [vmem:[#allocation4 + $0xa8] sm:$0xff]
    %v457 = vld [vmem:[#allocation4 + $0xb0] sm:$0xf]
    %v458 = vld [vmem:[#allocation4 + $0xb4] sm:$0xff]
    %v459 = vld [vmem:[#allocation4 + $0xbc] sm:$0xf]
    %v460 = vld [vmem:[#allocation4 + $0xc0] sm:$0xff]
    %v461 = vld [vmem:[#allocation4 + $0xc8] sm:$0xf]
    %v462 = vld [vmem:[#allocation4 + $0xcc] sm:$0xff]
    %v463 = vld [vmem:[#allocation4 + $0xd4] sm:$0xf]
    %v464 = vld [vmem:[#allocation4 + $0xd8] sm:$0xff]
    %v465 = vld [vmem:[#allocation4 + $0xe0] sm:$0xf]
    %v466 = vld [vmem:[#allocation4 + $0xe4] sm:$0xff]
    %v467 = vld [vmem:[#allocation4 + $0xec] sm:$0xf]
    %v468 = vld [vmem:[#allocation4 + $0xf0] sm:$0xff]
    %v469 = vld [vmem:[#allocation4 + $0xf8] sm:$0xf]
    %v470 = vld [vmem:[#allocation4 + $0xfc] sm:$0xff]
    %v471 = vld [vmem:[#allocation4 + $0x104] sm:$0xf]
    %v472 = vld [vmem:[#allocation4 + $0x108] sm:$0xff]
    %v473 = vld [vmem:[#allocation4 + $0x110] sm:$0xf]
    %v474 = vld [vmem:[#allocation4 + $0x114] sm:$0xff]
    %v475 = vld [vmem:[#allocation4 + $0x11c] sm:$0xf]
    %v476 = vld [vmem:[#allocation4 + $0x120] sm:$0xff]
    %v477 = vld [vmem:[#allocation4 + $0x128] sm:$0xf]
    %v478 = vld [vmem:[#allocation4 + $0x12c] sm:$0xff]
    %v479 = vld [vmem:[#allocation4 + $0x134] sm:$0xf]
    %v480 = vld [vmem:[#allocation4 + $0x138] sm:$0xff]
    %v481 = vld [vmem:[#allocation4 + $0x140] sm:$0xf]
    %v482 = vld [vmem:[#allocation4 + $0x144] sm:$0xff]
    %v483 = vld [vmem:[#allocation4 + $0x14c] sm:$0xf]
    %v484 = vld [vmem:[#allocation4 + $0x150] sm:$0xff]
    %v485 = vld [vmem:[#allocation4 + $0x158] sm:$0xf]
    %v486 = vld [vmem:[#allocation4 + $0x15c] sm:$0xff]
    %v487 = vld [vmem:[#allocation4 + $0x164] sm:$0xf]
    %v488 = vld [vmem:[#allocation4 + $0x168] sm:$0xff]
    %v489 = vld [vmem:[#allocation4 + $0x170] sm:$0xf]
    %v490 = vld [vmem:[#allocation4 + $0x174] sm:$0xff]
    %v491 = vld [vmem:[#allocation4 + $0x17c] sm:$0xf]
    %v492 = vld [vmem:[#allocation4 + $0x180] sm:$0xff]
    %v493 = vld [vmem:[#allocation4 + $0x188] sm:$0xf]
    %v494 = vld [vmem:[#allocation4 + $0x18c] sm:$0xff]
    %v495 = vld [vmem:[#allocation4 + $0x194] sm:$0xf]
    %v496 = vld [vmem:[#allocation4 + $0x198] sm:$0xff]
    %v497 = vld [vmem:[#allocation4 + $0x1a0] sm:$0xf]
    %v498 = vld [vmem:[#allocation4 + $0x1a4] sm:$0xff]
    %v499 = vld [vmem:[#allocation4 + $0x1ac] sm:$0xf]
    %v500 = vld [vmem:[#allocation4 + $0x1b0] sm:$0xff]
    %v501 = vld [vmem:[#allocation4 + $0x1b8] sm:$0xf]
    %v502 = vld [vmem:[#allocation4 + $0x1bc] sm:$0xff]
    %v503 = vld [vmem:[#allocation4 + $0x1c4] sm:$0xf]
    %v504 = vld [vmem:[#allocation4 + $0x1c8] sm:$0xff]
    %v505 = vld [vmem:[#allocation4 + $0x1d0] sm:$0xf]
    %v506 = vld [vmem:[#allocation4 + $0x1d4] sm:$0xff]
    %v507 = vld [vmem:[#allocation4 + $0x1dc] sm:$0xf]
    %v508 = vld [vmem:[#allocation4 + $0x1e0] sm:$0xff]
    %v509 = vld [vmem:[#allocation4 + $0x1e8] sm:$0xf]
    %v510 = vld [vmem:[#allocation4 + $0x1ec] sm:$0xff]
    %v511 = vld [vmem:[#allocation4 + $0x1f4] sm:$0xf]
    %v512 = vld [vmem:[#allocation4 + $0x1f8] sm:$0xff]
    %v513 = vld [vmem:[#allocation4 + $0x200] sm:$0xf]
    %v514 = vld [vmem:[#allocation4 + $0x204] sm:$0xff]
    %v515 = vld [vmem:[#allocation4 + $0x20c] sm:$0xf]
    %v516 = vld [vmem:[#allocation4 + $0x210] sm:$0xff]
    %v517 = vld [vmem:[#allocation4 + $0x218] sm:$0xf]
    %v518 = vld [vmem:[#allocation4 + $0x21c] sm:$0xff]
    %v519 = vld [vmem:[#allocation4 + $0x224] sm:$0xf]
    %v520 = vld [vmem:[#allocation4 + $0x228] sm:$0xff]
    %v521 = vld [vmem:[#allocation4 + $0x230] sm:$0xf]
    %v522 = vld [vmem:[#allocation4 + $0x234] sm:$0xff]
    %v523 = vld [vmem:[#allocation4 + $0x23c] sm:$0xf]
    %v524 = vld [vmem:[#allocation4 + $0x240] sm:$0xff]
    %v525 = vld [vmem:[#allocation4 + $0x248] sm:$0xf]
    %v526 = vld [vmem:[#allocation4 + $0x24c] sm:$0xff]
    %v527 = vld [vmem:[#allocation4 + $0x254] sm:$0xf]
    %v528 = vld [vmem:[#allocation4 + $0x258] sm:$0xff]
    %v529 = vld [vmem:[#allocation4 + $0x260] sm:$0xf]
    %v530 = vld [vmem:[#allocation4 + $0x264] sm:$0xff]
    %v531 = vld [vmem:[#allocation4 + $0x26c] sm:$0xf]
    %v532 = vld [vmem:[#allocation4 + $0x270] sm:$0xff]
    %v533 = vld [vmem:[#allocation4 + $0x278] sm:$0xf]
    %v534 = vld [vmem:[#allocation4 + $0x27c] sm:$0xff]
    %v535 = vld [vmem:[#allocation4 + $0x284] sm:$0xf]
    %v536 = vld [vmem:[#allocation4 + $0x288] sm:$0xff]
    %v537 = vld [vmem:[#allocation4 + $0x290] sm:$0xf]
    %v538 = vld [vmem:[#allocation4 + $0x294] sm:$0xff]
    %v539 = vld [vmem:[#allocation4 + $0x29c] sm:$0xf]
    %v540 = vld [vmem:[#allocation4 + $0x2a0] sm:$0xff]
    %v541 = vld [vmem:[#allocation4 + $0x2a8] sm:$0xf]
    %v542 = vld [vmem:[#allocation4 + $0x2ac] sm:$0xff]
    %v543 = vld [vmem:[#allocation4 + $0x2b4] sm:$0xf]
    %v544 = vld [vmem:[#allocation4 + $0x2b8] sm:$0xff]
    %v545 = vld [vmem:[#allocation4 + $0x2c0] sm:$0xf]
    %v546 = vld [vmem:[#allocation4 + $0x2c4] sm:$0xff]
    %v547 = vld [vmem:[#allocation4 + $0x2cc] sm:$0xf]
    %v548 = vld [vmem:[#allocation4 + $0x2d0] sm:$0xff]
    %v549 = vld [vmem:[#allocation4 + $0x2d8] sm:$0xf]
    %v550 = vld [vmem:[#allocation4 + $0x2dc] sm:$0xff]
    %v551 = vld [vmem:[#allocation4 + $0x2e4] sm:$0xf]
    %v552 = vld [vmem:[#allocation4 + $0x2e8] sm:$0xff]
    %v553 = vld [vmem:[#allocation4 + $0x2f0] sm:$0xf]
    %v554 = vld [vmem:[#allocation4 + $0x2f4] sm:$0xff]
    %v555 = vld [vmem:[#allocation4 + $0x2fc] sm:$0xf]
    %v556 = vld [vmem:[#allocation4 + $0x300] sm:$0xff]
    %v557 = vld [vmem:[#allocation4 + $0x308] sm:$0xf]
    %v558 = vld [vmem:[#allocation4 + $0x30c] sm:$0xff]
    %v559 = vld [vmem:[#allocation4 + $0x314] sm:$0xf]
    %v560 = vld [vmem:[#allocation4 + $0x318] sm:$0xff]
    %v561 = vld [vmem:[#allocation4 + $0x320] sm:$0xf]
    %v562 = vld [vmem:[#allocation4 + $0x324] sm:$0xff]
    %v563 = vld [vmem:[#allocation4 + $0x32c] sm:$0xf]
    %v564 = vld [vmem:[#allocation4 + $0x330] sm:$0xff]
    %v565 = vld [vmem:[#allocation4 + $0x338] sm:$0xf]
    %v566 = vld [vmem:[#allocation4 + $0x33c] sm:$0xff]
    %v567 = vld [vmem:[#allocation4 + $0x344] sm:$0xf]
    %v568 = vld [vmem:[#allocation4 + $0x348] sm:$0xff]
    %v569 = vld [vmem:[#allocation4 + $0x350] sm:$0xf]
    %v570 = vld [vmem:[#allocation4 + $0x354] sm:$0xff]
    %v571 = vld [vmem:[#allocation4 + $0x35c] sm:$0xf]
    %v572 = vld [vmem:[#allocation4 + $0x360] sm:$0xff]
    %v573 = vld [vmem:[#allocation4 + $0x368] sm:$0xf]
    %v574 = vld [vmem:[#allocation4 + $0x36c] sm:$0xff]
    %v575 = vld [vmem:[#allocation4 + $0x374] sm:$0xf]
    %v576 = vld [vmem:[#allocation4 + $0x378] sm:$0xff]
    %v577 = vld [vmem:[#allocation4 + $0x380] sm:$0xf]
    %v578 = vld [vmem:[#allocation4 + $0x384] sm:$0xff]
    %v579 = vld [vmem:[#allocation4 + $0x38c] sm:$0xf]
    %v580 = vld [vmem:[#allocation4 + $0x390] sm:$0xff]
    %v581 = vld [vmem:[#allocation4 + $0x398] sm:$0xf]
    %v582 = vld [vmem:[#allocation4 + $0x39c] sm:$0xff]
    %v583 = vld [vmem:[#allocation4 + $0x3a4] sm:$0xf]
    %v584 = vld [vmem:[#allocation4 + $0x3a8] sm:$0xff]
    %v585 = vld [vmem:[#allocation4 + $0x3b0] sm:$0xf]
    %v586 = vld [vmem:[#allocation4 + $0x3b4] sm:$0xff]
    %v587 = vld [vmem:[#allocation4 + $0x3bc] sm:$0xf]
    %v588 = vld [vmem:[#allocation4 + $0x3c0] sm:$0xff]
    %v589 = vld [vmem:[#allocation4 + $0x3c8] sm:$0xf]
    %v590 = vld [vmem:[#allocation4 + $0x3cc] sm:$0xff]
    %v591 = vld [vmem:[#allocation4 + $0x3d4] sm:$0xf]
    %v592 = vld [vmem:[#allocation4 + $0x3d8] sm:$0xff]
    %v593 = vld [vmem:[#allocation4 + $0x3e0] sm:$0xf]
    %v594 = vld [vmem:[#allocation4 + $0x3e4] sm:$0xff]
    %v595 = vld [vmem:[#allocation4 + $0x3ec] sm:$0xf]
    %v596 = vld [vmem:[#allocation4 + $0x3f0] sm:$0xff]
    %v597 = vld [vmem:[#allocation4 + $0x3f8] sm:$0xf]
    %v598 = vld [vmem:[#allocation4 + $0x3fc] sm:$0xff]
    %v599 = vld [vmem:[#allocation4 + $0x404] sm:$0xf]
    %v600 = vld [vmem:[#allocation4 + $0x408] sm:$0xff]
    %v601 = vld [vmem:[#allocation4 + $0x410] sm:$0xf]
    %v602 = vld [vmem:[#allocation4 + $0x414] sm:$0xff]
    %v603 = vld [vmem:[#allocation4 + $0x41c] sm:$0xf]
    %v604 = vld [vmem:[#allocation4 + $0x420] sm:$0xff]
    %v605 = vld [vmem:[#allocation4 + $0x428] sm:$0xf]
    %v606 = vld [vmem:[#allocation4 + $0x42c] sm:$0xff]
    %v607 = vld [vmem:[#allocation4 + $0x434] sm:$0xf]
    %v608 = vld [vmem:[#allocation4 + $0x438] sm:$0xff]
    %v609 = vld [vmem:[#allocation4 + $0x440] sm:$0xf]
    %v610 = vld [vmem:[#allocation4 + $0x444] sm:$0xff]
    %v611 = vld [vmem:[#allocation4 + $0x44c] sm:$0xf]
    %v612 = vld [vmem:[#allocation4 + $0x450] sm:$0xff]
    %v613 = vld [vmem:[#allocation4 + $0x458] sm:$0xf]
    %v614 = vld [vmem:[#allocation4 + $0x45c] sm:$0xff]
    %v615 = vld [vmem:[#allocation4 + $0x464] sm:$0xf]
    %v616 = vld [vmem:[#allocation4 + $0x468] sm:$0xff]
    %v617 = vld [vmem:[#allocation4 + $0x470] sm:$0xf]
    %v618 = vld [vmem:[#allocation4 + $0x474] sm:$0xff]
    %v619 = vld [vmem:[#allocation4 + $0x47c] sm:$0xf]
    %v620 = vld [vmem:[#allocation4 + $0x480] sm:$0xff]
    %v621 = vld [vmem:[#allocation4 + $0x488] sm:$0xf]
    %v622 = vld [vmem:[#allocation4 + $0x48c] sm:$0xff]
    %v623 = vld [vmem:[#allocation4 + $0x494] sm:$0xf]
    %v624 = vld [vmem:[#allocation4 + $0x498] sm:$0xff]
    %v625 = vld [vmem:[#allocation4 + $0x4a0] sm:$0xf]
    %v626 = vld [vmem:[#allocation4 + $0x4a4] sm:$0xff]
    %v627 = vld [vmem:[#allocation4 + $0x4ac] sm:$0xf]
    %v628 = vld [vmem:[#allocation4 + $0x4b0] sm:$0xff]
    %v629 = vld [vmem:[#allocation4 + $0x4b8] sm:$0xf]
    %v630 = vld [vmem:[#allocation4 + $0x4bc] sm:$0xff]
    %v631 = vld [vmem:[#allocation4 + $0x4c4] sm:$0xf]
    %v632 = vld [vmem:[#allocation4 + $0x4c8] sm:$0xff]
    %v633 = vld [vmem:[#allocation4 + $0x4d0] sm:$0xf]
    %v634 = vld [vmem:[#allocation4 + $0x4d4] sm:$0xff]
    %v635 = vld [vmem:[#allocation4 + $0x4dc] sm:$0xf]
    %v636 = vld [vmem:[#allocation4 + $0x4e0] sm:$0xff]
    %v637 = vld [vmem:[#allocation4 + $0x4e8] sm:$0xf]
    %v638 = vld [vmem:[#allocation4 + $0x4ec] sm:$0xff]
    %v639 = vld [vmem:[#allocation4 + $0x4f4] sm:$0xf]
    %v640 = vld [vmem:[#allocation4 + $0x4f8] sm:$0xff]
    %v641 = vld [vmem:[#allocation4 + $0x500] sm:$0xf]
    %v642 = vld [vmem:[#allocation4 + $0x504] sm:$0xff]
    %v643 = vld [vmem:[#allocation4 + $0x50c] sm:$0xf]
    %v644 = vld [vmem:[#allocation4 + $0x510] sm:$0xff]
    %v645 = vld [vmem:[#allocation4 + $0x518] sm:$0xf]
    %v646 = vld [vmem:[#allocation4 + $0x51c] sm:$0xff]
    %v647 = vld [vmem:[#allocation4 + $0x524] sm:$0xf]
    %v648 = vld [vmem:[#allocation4 + $0x528] sm:$0xff]
    %v649 = vld [vmem:[#allocation4 + $0x530] sm:$0xf]
    %v650 = vld [vmem:[#allocation4 + $0x534] sm:$0xff]
    %v651 = vld [vmem:[#allocation4 + $0x53c] sm:$0xf]
    %v876 = vunpack.c.l.b16 %v428
    %v877 = vunpack.c.h.b16 %v428
    %v878 = vunpack.c.l.b16 %v429
    %v879 = vunpack.c.l.b16 %v430
    %v880 = vunpack.c.h.b16 %v430
    %v881 = vunpack.c.l.b16 %v431
    %v882 = vunpack.c.l.b16 %v432
    %v883 = vunpack.c.h.b16 %v432
    %v884 = vunpack.c.l.b16 %v433
    %v885 = vunpack.c.l.b16 %v434
    %v886 = vunpack.c.h.b16 %v434
    %v887 = vunpack.c.l.b16 %v435
    %v888 = vunpack.c.l.b16 %v436
    %v889 = vunpack.c.h.b16 %v436
    %v890 = vunpack.c.l.b16 %v437
    %v891 = vunpack.c.l.b16 %v438
    %v892 = vunpack.c.h.b16 %v438
    %v893 = vunpack.c.l.b16 %v439
    %v894 = vunpack.c.l.b16 %v440
    %v895 = vunpack.c.h.b16 %v440
    %v896 = vunpack.c.l.b16 %v441
    %v897 = vunpack.c.l.b16 %v442
    %v898 = vunpack.c.h.b16 %v442
    %v899 = vunpack.c.l.b16 %v443
    %v900 = vunpack.c.l.b16 %v444
    %v901 = vunpack.c.h.b16 %v444
    %v902 = vunpack.c.l.b16 %v445
    %v903 = vunpack.c.l.b16 %v446
    %v904 = vunpack.c.h.b16 %v446
    %v905 = vunpack.c.l.b16 %v447
    %v906 = vunpack.c.l.b16 %v448
    %v907 = vunpack.c.h.b16 %v448
    %v908 = vunpack.c.l.b16 %v449
    %v909 = vunpack.c.l.b16 %v450
    %v910 = vunpack.c.h.b16 %v450
    %v911 = vunpack.c.l.b16 %v451
    %v912 = vunpack.c.l.b16 %v452
    %v913 = vunpack.c.h.b16 %v452
    %v914 = vunpack.c.l.b16 %v453
    %v915 = vunpack.c.l.b16 %v454
    %v916 = vunpack.c.h.b16 %v454
    %v917 = vunpack.c.l.b16 %v455
    %v918 = vunpack.c.l.b16 %v456
    %v919 = vunpack.c.h.b16 %v456
    %v920 = vunpack.c.l.b16 %v457
    %v921 = vunpack.c.l.b16 %v458
    %v922 = vunpack.c.h.b16 %v458
    %v923 = vunpack.c.l.b16 %v459
    %v924 = vunpack.c.l.b16 %v460
    %v925 = vunpack.c.h.b16 %v460
    %v926 = vunpack.c.l.b16 %v461
    %v927 = vunpack.c.l.b16 %v462
    %v928 = vunpack.c.h.b16 %v462
    %v929 = vunpack.c.l.b16 %v463
    %v930 = vunpack.c.l.b16 %v464
    %v931 = vunpack.c.h.b16 %v464
    %v932 = vunpack.c.l.b16 %v465
    %v933 = vunpack.c.l.b16 %v466
    %v934 = vunpack.c.h.b16 %v466
    %v935 = vunpack.c.l.b16 %v467
    %v936 = vunpack.c.l.b16 %v468
    %v937 = vunpack.c.h.b16 %v468
    %v938 = vunpack.c.l.b16 %v469
    %v939 = vunpack.c.l.b16 %v470
    %v940 = vunpack.c.h.b16 %v470
    %v941 = vunpack.c.l.b16 %v471
    %v942 = vunpack.c.l.b16 %v472
    %v943 = vunpack.c.h.b16 %v472
    %v944 = vunpack.c.l.b16 %v473
    %v945 = vunpack.c.l.b16 %v474
    %v946 = vunpack.c.h.b16 %v474
    %v947 = vunpack.c.l.b16 %v475
    %v948 = vunpack.c.l.b16 %v476
    %v949 = vunpack.c.h.b16 %v476
    %v950 = vunpack.c.l.b16 %v477
    %v951 = vunpack.c.l.b16 %v478
    %v952 = vunpack.c.h.b16 %v478
    %v953 = vunpack.c.l.b16 %v479
    %v954 = vunpack.c.l.b16 %v480
    %v955 = vunpack.c.h.b16 %v480
    %v956 = vunpack.c.l.b16 %v481
    %v957 = vunpack.c.l.b16 %v482
    %v958 = vunpack.c.h.b16 %v482
    %v959 = vunpack.c.l.b16 %v483
    %v960 = vunpack.c.l.b16 %v484
    %v961 = vunpack.c.h.b16 %v484
    %v962 = vunpack.c.l.b16 %v485
    %v963 = vunpack.c.l.b16 %v486
    %v964 = vunpack.c.h.b16 %v486
    %v965 = vunpack.c.l.b16 %v487
    %v966 = vunpack.c.l.b16 %v488
    %v967 = vunpack.c.h.b16 %v488
    %v968 = vunpack.c.l.b16 %v489
    %v969 = vunpack.c.l.b16 %v490
    %v970 = vunpack.c.h.b16 %v490
    %v971 = vunpack.c.l.b16 %v491
    %v972 = vunpack.c.l.b16 %v492
    %v973 = vunpack.c.h.b16 %v492
    %v974 = vunpack.c.l.b16 %v493
    %v975 = vunpack.c.l.b16 %v494
    %v976 = vunpack.c.h.b16 %v494
    %v977 = vunpack.c.l.b16 %v495
    %v978 = vunpack.c.l.b16 %v496
    %v979 = vunpack.c.h.b16 %v496
    %v980 = vunpack.c.l.b16 %v497
    %v981 = vunpack.c.l.b16 %v498
    %v982 = vunpack.c.h.b16 %v498
    %v983 = vunpack.c.l.b16 %v499
    %v984 = vunpack.c.l.b16 %v500
    %v985 = vunpack.c.h.b16 %v500
    %v986 = vunpack.c.l.b16 %v501
    %v987 = vunpack.c.l.b16 %v502
    %v988 = vunpack.c.h.b16 %v502
    %v989 = vunpack.c.l.b16 %v503
    %v990 = vunpack.c.l.b16 %v504
    %v991 = vunpack.c.h.b16 %v504
    %v992 = vunpack.c.l.b16 %v505
    %v993 = vunpack.c.l.b16 %v506
    %v994 = vunpack.c.h.b16 %v506
    %v995 = vunpack.c.l.b16 %v507
    %v996 = vunpack.c.l.b16 %v508
    %v997 = vunpack.c.h.b16 %v508
    %v998 = vunpack.c.l.b16 %v509
    %v999 = vunpack.c.l.b16 %v510
    %v1000 = vunpack.c.h.b16 %v510
    %v1001 = vunpack.c.l.b16 %v511
    %v1002 = vunpack.c.l.b16 %v512
    %v1003 = vunpack.c.h.b16 %v512
    %v1004 = vunpack.c.l.b16 %v513
    %v1005 = vunpack.c.l.b16 %v514
    %v1006 = vunpack.c.h.b16 %v514
    %v1007 = vunpack.c.l.b16 %v515
    %v1008 = vunpack.c.l.b16 %v516
    %v1009 = vunpack.c.h.b16 %v516
    %v1010 = vunpack.c.l.b16 %v517
    %v1011 = vunpack.c.l.b16 %v518
    %v1012 = vunpack.c.h.b16 %v518
    %v1013 = vunpack.c.l.b16 %v519
    %v1014 = vunpack.c.l.b16 %v520
    %v1015 = vunpack.c.h.b16 %v520
    %v1016 = vunpack.c.l.b16 %v521
    %v1017 = vunpack.c.l.b16 %v522
    %v1018 = vunpack.c.h.b16 %v522
    %v1019 = vunpack.c.l.b16 %v523
    %v1020 = vunpack.c.l.b16 %v524
    %v1021 = vunpack.c.h.b16 %v524
    %v1022 = vunpack.c.l.b16 %v525
    %v1023 = vunpack.c.l.b16 %v526
    %v1024 = vunpack.c.h.b16 %v526
    %v1025 = vunpack.c.l.b16 %v527
    %v1026 = vunpack.c.l.b16 %v528
    %v1027 = vunpack.c.h.b16 %v528
    %v1028 = vunpack.c.l.b16 %v529
    %v1029 = vunpack.c.l.b16 %v530
    %v1030 = vunpack.c.h.b16 %v530
    %v1031 = vunpack.c.l.b16 %v531
    %v1032 = vunpack.c.l.b16 %v532
    %v1033 = vunpack.c.h.b16 %v532
    %v1034 = vunpack.c.l.b16 %v533
    %v1035 = vunpack.c.l.b16 %v534
    %v1036 = vunpack.c.h.b16 %v534
    %v1037 = vunpack.c.l.b16 %v535
    %v1038 = vunpack.c.l.b16 %v536
    %v1039 = vunpack.c.h.b16 %v536
    %v1040 = vunpack.c.l.b16 %v537
    %v1041 = vunpack.c.l.b16 %v538
    %v1042 = vunpack.c.h.b16 %v538
    %v1043 = vunpack.c.l.b16 %v539
    %v1044 = vunpack.c.l.b16 %v540
    %v1045 = vunpack.c.h.b16 %v540
    %v1046 = vunpack.c.l.b16 %v541
    %v1047 = vunpack.c.l.b16 %v542
    %v1048 = vunpack.c.h.b16 %v542
    %v1049 = vunpack.c.l.b16 %v543
    %v1050 = vunpack.c.l.b16 %v544
    %v1051 = vunpack.c.h.b16 %v544
    %v1052 = vunpack.c.l.b16 %v545
    %v1053 = vunpack.c.l.b16 %v546
    %v1054 = vunpack.c.h.b16 %v546
    %v1055 = vunpack.c.l.b16 %v547
    %v1056 = vunpack.c.l.b16 %v548
    %v1057 = vunpack.c.h.b16 %v548
    %v1058 = vunpack.c.l.b16 %v549
    %v1059 = vunpack.c.l.b16 %v550
    %v1060 = vunpack.c.h.b16 %v550
    %v1061 = vunpack.c.l.b16 %v551
    %v1062 = vunpack.c.l.b16 %v552
    %v1063 = vunpack.c.h.b16 %v552
    %v1064 = vunpack.c.l.b16 %v553
    %v1065 = vunpack.c.l.b16 %v554
    %v1066 = vunpack.c.h.b16 %v554
    %v1067 = vunpack.c.l.b16 %v555
    %v1068 = vunpack.c.l.b16 %v556
    %v1069 = vunpack.c.h.b16 %v556
    %v1070 = vunpack.c.l.b16 %v557
    %v1071 = vunpack.c.l.b16 %v558
    %v1072 = vunpack.c.h.b16 %v558
    %v1073 = vunpack.c.l.b16 %v559
    %v1074 = vunpack.c.l.b16 %v560
    %v1075 = vunpack.c.h.b16 %v560
    %v1076 = vunpack.c.l.b16 %v561
    %v1077 = vunpack.c.l.b16 %v562
    %v1078 = vunpack.c.h.b16 %v562
    %v1079 = vunpack.c.l.b16 %v563
    %v1080 = vunpack.c.l.b16 %v564
    %v1081 = vunpack.c.h.b16 %v564
    %v1082 = vunpack.c.l.b16 %v565
    %v1083 = vunpack.c.l.b16 %v566
    %v1084 = vunpack.c.h.b16 %v566
    %v1085 = vunpack.c.l.b16 %v567
    %v1086 = vunpack.c.l.b16 %v568
    %v1087 = vunpack.c.h.b16 %v568
    %v1088 = vunpack.c.l.b16 %v569
    %v1089 = vunpack.c.l.b16 %v570
    %v1090 = vunpack.c.h.b16 %v570
    %v1091 = vunpack.c.l.b16 %v571
    %v1092 = vunpack.c.l.b16 %v572
    %v1093 = vunpack.c.h.b16 %v572
    %v1094 = vunpack.c.l.b16 %v573
    %v1095 = vunpack.c.l.b16 %v574
    %v1096 = vunpack.c.h.b16 %v574
    %v1097 = vunpack.c.l.b16 %v575
    %v1098 = vunpack.c.l.b16 %v576
    %v1099 = vunpack.c.h.b16 %v576
    %v1100 = vunpack.c.l.b16 %v577
    %v1101 = vunpack.c.l.b16 %v578
    %v1102 = vunpack.c.h.b16 %v578
    %v1103 = vunpack.c.l.b16 %v579
    %v1104 = vunpack.c.l.b16 %v580
    %v1105 = vunpack.c.h.b16 %v580
    %v1106 = vunpack.c.l.b16 %v581
    %v1107 = vunpack.c.l.b16 %v582
    %v1108 = vunpack.c.h.b16 %v582
    %v1109 = vunpack.c.l.b16 %v583
    %v1110 = vunpack.c.l.b16 %v584
    %v1111 = vunpack.c.h.b16 %v584
    %v1112 = vunpack.c.l.b16 %v585
    %v1113 = vunpack.c.l.b16 %v586
    %v1114 = vunpack.c.h.b16 %v586
    %v1115 = vunpack.c.l.b16 %v587
    %v1116 = vunpack.c.l.b16 %v588
    %v1117 = vunpack.c.h.b16 %v588
    %v1118 = vunpack.c.l.b16 %v589
    %v1119 = vunpack.c.l.b16 %v590
    %v1120 = vunpack.c.h.b16 %v590
    %v1121 = vunpack.c.l.b16 %v591
    %v1122 = vunpack.c.l.b16 %v592
    %v1123 = vunpack.c.h.b16 %v592
    %v1124 = vunpack.c.l.b16 %v593
    %v1125 = vunpack.c.l.b16 %v594
    %v1126 = vunpack.c.h.b16 %v594
    %v1127 = vunpack.c.l.b16 %v595
    %v1128 = vunpack.c.l.b16 %v596
    %v1129 = vunpack.c.h.b16 %v596
    %v1130 = vunpack.c.l.b16 %v597
    %v1131 = vunpack.c.l.b16 %v598
    %v1132 = vunpack.c.h.b16 %v598
    %v1133 = vunpack.c.l.b16 %v599
    %v1134 = vunpack.c.l.b16 %v600
    %v1135 = vunpack.c.h.b16 %v600
    %v1136 = vunpack.c.l.b16 %v601
    %v1137 = vunpack.c.l.b16 %v602
    %v1138 = vunpack.c.h.b16 %v602
    %v1139 = vunpack.c.l.b16 %v603
    %v1140 = vunpack.c.l.b16 %v604
    %v1141 = vunpack.c.h.b16 %v604
    %v1142 = vunpack.c.l.b16 %v605
    %v1143 = vunpack.c.l.b16 %v606
    %v1144 = vunpack.c.h.b16 %v606
    %v1145 = vunpack.c.l.b16 %v607
    %v1146 = vunpack.c.l.b16 %v608
    %v1147 = vunpack.c.h.b16 %v608
    %v1148 = vunpack.c.l.b16 %v609
    %v1149 = vunpack.c.l.b16 %v610
    %v1150 = vunpack.c.h.b16 %v610
    %v1151 = vunpack.c.l.b16 %v611
    %v1152 = vunpack.c.l.b16 %v612
    %v1153 = vunpack.c.h.b16 %v612
    %v1154 = vunpack.c.l.b16 %v613
    %v1155 = vunpack.c.l.b16 %v614
    %v1156 = vunpack.c.h.b16 %v614
    %v1157 = vunpack.c.l.b16 %v615
    %v1158 = vunpack.c.l.b16 %v616
    %v1159 = vunpack.c.h.b16 %v616
    %v1160 = vunpack.c.l.b16 %v617
    %v1161 = vunpack.c.l.b16 %v618
    %v1162 = vunpack.c.h.b16 %v618
    %v1163 = vunpack.c.l.b16 %v619
    %v1164 = vunpack.c.l.b16 %v620
    %v1165 = vunpack.c.h.b16 %v620
    %v1166 = vunpack.c.l.b16 %v621
    %v1167 = vunpack.c.l.b16 %v622
    %v1168 = vunpack.c.h.b16 %v622
    %v1169 = vunpack.c.l.b16 %v623
    %v1170 = vunpack.c.l.b16 %v624
    %v1171 = vunpack.c.h.b16 %v624
    %v1172 = vunpack.c.l.b16 %v625
    %v1173 = vunpack.c.l.b16 %v626
    %v1174 = vunpack.c.h.b16 %v626
    %v1175 = vunpack.c.l.b16 %v627
    %v1176 = vunpack.c.l.b16 %v628
    %v1177 = vunpack.c.h.b16 %v628
    %v1178 = vunpack.c.l.b16 %v629
    %v1179 = vunpack.c.l.b16 %v630
    %v1180 = vunpack.c.h.b16 %v630
    %v1181 = vunpack.c.l.b16 %v631
    %v1182 = vunpack.c.l.b16 %v632
    %v1183 = vunpack.c.h.b16 %v632
    %v1184 = vunpack.c.l.b16 %v633
    %v1185 = vunpack.c.l.b16 %v634
    %v1186 = vunpack.c.h.b16 %v634
    %v1187 = vunpack.c.l.b16 %v635
    %v1188 = vunpack.c.l.b16 %v636
    %v1189 = vunpack.c.h.b16 %v636
    %v1190 = vunpack.c.l.b16 %v637
    %v1191 = vunpack.c.l.b16 %v638
    %v1192 = vunpack.c.h.b16 %v638
    %v1193 = vunpack.c.l.b16 %v639
    %v1194 = vunpack.c.l.b16 %v640
    %v1195 = vunpack.c.h.b16 %v640
    %v1196 = vunpack.c.l.b16 %v641
    %v1197 = vunpack.c.l.b16 %v642
    %v1198 = vunpack.c.h.b16 %v642
    %v1199 = vunpack.c.l.b16 %v643
    %v1200 = vunpack.c.l.b16 %v644
    %v1201 = vunpack.c.h.b16 %v644
    %v1202 = vunpack.c.l.b16 %v645
    %v1203 = vunpack.c.l.b16 %v646
    %v1204 = vunpack.c.h.b16 %v646
    %v1205 = vunpack.c.l.b16 %v647
    %v1206 = vunpack.c.l.b16 %v648
    %v1207 = vunpack.c.h.b16 %v648
    %v1208 = vunpack.c.l.b16 %v649
    %v1209 = vunpack.c.l.b16 %v650
    %v1210 = vunpack.c.h.b16 %v650
    %v1211 = vunpack.c.l.b16 %v651
    %v1212 = vpack.c.b16 %v879, %v876
    %v1213 = vpack.c.b16 %v880, %v877
    %v1214 = vpack.c.b16 %v881, %v878
    %v1215 = vpack.c.b16 %v885, %v882
    %v1216 = vpack.c.b16 %v886, %v883
    %v1217 = vpack.c.b16 %v887, %v884
    %v1218 = vpack.c.b16 %v891, %v888
    %v1219 = vpack.c.b16 %v892, %v889
    %v1220 = vpack.c.b16 %v893, %v890
    %v1221 = vpack.c.b16 %v897, %v894
    %v1222 = vpack.c.b16 %v898, %v895
    %v1223 = vpack.c.b16 %v899, %v896
    %v1224 = vpack.c.b16 %v903, %v900
    %v1225 = vpack.c.b16 %v904, %v901
    %v1226 = vpack.c.b16 %v905, %v902
    %v1227 = vpack.c.b16 %v909, %v906
    %v1228 = vpack.c.b16 %v910, %v907
    %v1229 = vpack.c.b16 %v911, %v908
    %v1230 = vpack.c.b16 %v915, %v912
    %v1231 = vpack.c.b16 %v916, %v913
    %v1232 = vpack.c.b16 %v917, %v914
    %v1233 = vpack.c.b16 %v921, %v918
    %v1234 = vpack.c.b16 %v922, %v919
    %v1235 = vpack.c.b16 %v923, %v920
    %v1236 = vpack.c.b16 %v927, %v924
    %v1237 = vpack.c.b16 %v928, %v925
    %v1238 = vpack.c.b16 %v929, %v926
    %v1239 = vpack.c.b16 %v933, %v930
    %v1240 = vpack.c.b16 %v934, %v931
    %v1241 = vpack.c.b16 %v935, %v932
    %v1242 = vpack.c.b16 %v939, %v936
    %v1243 = vpack.c.b16 %v940, %v937
    %v1244 = vpack.c.b16 %v941, %v938
    %v1245 = vpack.c.b16 %v945, %v942
    %v1246 = vpack.c.b16 %v946, %v943
    %v1247 = vpack.c.b16 %v947, %v944
    %v1248 = vpack.c.b16 %v951, %v948
    %v1249 = vpack.c.b16 %v952, %v949
    %v1250 = vpack.c.b16 %v953, %v950
    %v1251 = vpack.c.b16 %v957, %v954
    %v1252 = vpack.c.b16 %v958, %v955
    %v1253 = vpack.c.b16 %v959, %v956
    %v1254 = vpack.c.b16 %v963, %v960
    %v1255 = vpack.c.b16 %v964, %v961
    %v1256 = vpack.c.b16 %v965, %v962
    %v1257 = vpack.c.b16 %v969, %v966
    %v1258 = vpack.c.b16 %v970, %v967
    %v1259 = vpack.c.b16 %v971, %v968
    %v1260 = vpack.c.b16 %v975, %v972
    %v1261 = vpack.c.b16 %v976, %v973
    %v1262 = vpack.c.b16 %v977, %v974
    %v1263 = vpack.c.b16 %v981, %v978
    %v1264 = vpack.c.b16 %v982, %v979
    %v1265 = vpack.c.b16 %v983, %v980
    %v1266 = vpack.c.b16 %v987, %v984
    %v1267 = vpack.c.b16 %v988, %v985
    %v1268 = vpack.c.b16 %v989, %v986
    %v1269 = vpack.c.b16 %v993, %v990
    %v1270 = vpack.c.b16 %v994, %v991
    %v1271 = vpack.c.b16 %v995, %v992
    %v1272 = vpack.c.b16 %v999, %v996
    %v1273 = vpack.c.b16 %v1000, %v997
    %v1274 = vpack.c.b16 %v1001, %v998
    %v1275 = vpack.c.b16 %v1005, %v1002
    %v1276 = vpack.c.b16 %v1006, %v1003
    %v1277 = vpack.c.b16 %v1007, %v1004
    %v1278 = vpack.c.b16 %v1011, %v1008
    %v1279 = vpack.c.b16 %v1012, %v1009
    %v1280 = vpack.c.b16 %v1013, %v1010
    %v1281 = vpack.c.b16 %v1017, %v1014
    %v1282 = vpack.c.b16 %v1018, %v1015
    %v1283 = vpack.c.b16 %v1019, %v1016
    %v1284 = vpack.c.b16 %v1023, %v1020
    %v1285 = vpack.c.b16 %v1024, %v1021
    %v1286 = vpack.c.b16 %v1025, %v1022
    %v1287 = vpack.c.b16 %v1029, %v1026
    %v1288 = vpack.c.b16 %v1030, %v1027
    %v1289 = vpack.c.b16 %v1031, %v1028
    %v1290 = vpack.c.b16 %v1035, %v1032
    %v1291 = vpack.c.b16 %v1036, %v1033
    %v1292 = vpack.c.b16 %v1037, %v1034
    %v1293 = vpack.c.b16 %v1041, %v1038
    %v1294 = vpack.c.b16 %v1042, %v1039
    %v1295 = vpack.c.b16 %v1043, %v1040
    %v1296 = vpack.c.b16 %v1047, %v1044
    %v1297 = vpack.c.b16 %v1048, %v1045
    %v1298 = vpack.c.b16 %v1049, %v1046
    %v1299 = vpack.c.b16 %v1053, %v1050
    %v1300 = vpack.c.b16 %v1054, %v1051
    %v1301 = vpack.c.b16 %v1055, %v1052
    %v1302 = vpack.c.b16 %v1059, %v1056
    %v1303 = vpack.c.b16 %v1060, %v1057
    %v1304 = vpack.c.b16 %v1061, %v1058
    %v1305 = vpack.c.b16 %v1065, %v1062
    %v1306 = vpack.c.b16 %v1066, %v1063
    %v1307 = vpack.c.b16 %v1067, %v1064
    %v1308 = vpack.c.b16 %v1071, %v1068
    %v1309 = vpack.c.b16 %v1072, %v1069
    %v1310 = vpack.c.b16 %v1073, %v1070
    %v1311 = vpack.c.b16 %v1077, %v1074
    %v1312 = vpack.c.b16 %v1078, %v1075
    %v1313 = vpack.c.b16 %v1079, %v1076
    %v1314 = vpack.c.b16 %v1083, %v1080
    %v1315 = vpack.c.b16 %v1084, %v1081
    %v1316 = vpack.c.b16 %v1085, %v1082
    %v1317 = vpack.c.b16 %v1089, %v1086
    %v1318 = vpack.c.b16 %v1090, %v1087
    %v1319 = vpack.c.b16 %v1091, %v1088
    %v1320 = vpack.c.b16 %v1095, %v1092
    %v1321 = vpack.c.b16 %v1096, %v1093
    %v1322 = vpack.c.b16 %v1097, %v1094
    %v1323 = vpack.c.b16 %v1101, %v1098
    %v1324 = vpack.c.b16 %v1102, %v1099
    %v1325 = vpack.c.b16 %v1103, %v1100
    %v1326 = vpack.c.b16 %v1107, %v1104
    %v1327 = vpack.c.b16 %v1108, %v1105
    %v1328 = vpack.c.b16 %v1109, %v1106
    %v1329 = vpack.c.b16 %v1113, %v1110
    %v1330 = vpack.c.b16 %v1114, %v1111
    %v1331 = vpack.c.b16 %v1115, %v1112
    %v1332 = vpack.c.b16 %v1119, %v1116
    %v1333 = vpack.c.b16 %v1120, %v1117
    %v1334 = vpack.c.b16 %v1121, %v1118
    %v1335 = vpack.c.b16 %v1125, %v1122
    %v1336 = vpack.c.b16 %v1126, %v1123
    %v1337 = vpack.c.b16 %v1127, %v1124
    %v1338 = vpack.c.b16 %v1131, %v1128
    %v1339 = vpack.c.b16 %v1132, %v1129
    %v1340 = vpack.c.b16 %v1133, %v1130
    %v1341 = vpack.c.b16 %v1137, %v1134
    %v1342 = vpack.c.b16 %v1138, %v1135
    %v1343 = vpack.c.b16 %v1139, %v1136
    %v1344 = vpack.c.b16 %v1143, %v1140
    %v1345 = vpack.c.b16 %v1144, %v1141
    %v1346 = vpack.c.b16 %v1145, %v1142
    %v1347 = vpack.c.b16 %v1149, %v1146
    %v1348 = vpack.c.b16 %v1150, %v1147
    %v1349 = vpack.c.b16 %v1151, %v1148
    %v1350 = vpack.c.b16 %v1155, %v1152
    %v1351 = vpack.c.b16 %v1156, %v1153
    %v1352 = vpack.c.b16 %v1157, %v1154
    %v1353 = vpack.c.b16 %v1161, %v1158
    %v1354 = vpack.c.b16 %v1162, %v1159
    %v1355 = vpack.c.b16 %v1163, %v1160
    %v1356 = vpack.c.b16 %v1167, %v1164
    %v1357 = vpack.c.b16 %v1168, %v1165
    %v1358 = vpack.c.b16 %v1169, %v1166
    %v1359 = vpack.c.b16 %v1173, %v1170
    %v1360 = vpack.c.b16 %v1174, %v1171
    %v1361 = vpack.c.b16 %v1175, %v1172
    %v1362 = vpack.c.b16 %v1179, %v1176
    %v1363 = vpack.c.b16 %v1180, %v1177
    %v1364 = vpack.c.b16 %v1181, %v1178
    %v1365 = vpack.c.b16 %v1185, %v1182
    %v1366 = vpack.c.b16 %v1186, %v1183
    %v1367 = vpack.c.b16 %v1187, %v1184
    %v1368 = vpack.c.b16 %v1191, %v1188
    %v1369 = vpack.c.b16 %v1192, %v1189
    %v1370 = vpack.c.b16 %v1193, %v1190
    %v1371 = vpack.c.b16 %v1197, %v1194
    %v1372 = vpack.c.b16 %v1198, %v1195
    %v1373 = vpack.c.b16 %v1199, %v1196
    %v1374 = vpack.c.b16 %v1203, %v1200
    %v1375 = vpack.c.b16 %v1204, %v1201
    %v1376 = vpack.c.b16 %v1205, %v1202
    %v1377 = vpack.c.b16 %v1209, %v1206
    %v1378 = vpack.c.b16 %v1210, %v1207
    %v1379 = vpack.c.b16 %v1211, %v1208
    %1548 = vmatprep.subr.bf16.mxu0 %v1213
    %1549 = vmatpush1.bf16.msra.mxu0 %v1212
    %1550 = vmatprep.subr.bf16.mxu0 %v1216
    %1551 = vmatpush1.bf16.msra.mxu0 %v1215
    %1552 = vmatprep.subr.bf16.mxu0 %v1219
    %1553 = vmatpush1.bf16.msra.mxu0 %v1218
    %1554 = vmatprep.subr.bf16.mxu0 %v1222
    %1555 = vmatpush1.bf16.msra.mxu0 %v1221
    %1556 = vmatprep.subr.bf16.mxu0 %v1225
    %1557 = vmatpush1.bf16.msra.mxu0 %v1224
    %1558 = vmatprep.subr.bf16.mxu0 %v1228
    %1559 = vmatpush1.bf16.msra.mxu0 %v1227
    %1560 = vmatprep.subr.bf16.mxu0 %v1231
    %1561 = vmatpush1.bf16.msra.mxu0 %v1230
    %1562 = vmatprep.subr.bf16.mxu0 %v1234
    %1563 = vmatpush1.bf16.msra.mxu0 %v1233
    %1564 = vmatprep.subr.bf16.mxu0 %v1237
    %1565 = vmatpush1.bf16.msra.mxu0 %v1236
    %1566 = vmatprep.subr.bf16.mxu0 %v1240
    %1567 = vmatpush1.bf16.msra.mxu0 %v1239
    %1568 = vmatprep.subr.bf16.mxu0 %v1243
    %1569 = vmatpush1.bf16.msra.mxu0 %v1242
    %1570 = vmatprep.subr.bf16.mxu0 %v1246
    %1571 = vmatpush1.bf16.msra.mxu0 %v1245
    %1572 = vmatprep.subr.bf16.mxu0 %v1249
    %1573 = vmatpush1.bf16.msra.mxu0 %v1248
    %1574 = vmatprep.subr.bf16.mxu0 %v1252
    %1575 = vmatpush1.bf16.msra.mxu0 %v1251
    %1576 = vmatprep.subr.bf16.mxu0 %v1255
    %1577 = vmatpush1.bf16.msra.mxu0 %v1254
    %1578 = vmatprep.subr.bf16.mxu0 %v1258
    %1579 = vmatpush1.bf16.msra.mxu0 %v1257
    %1580 = vmatprep.mubr.bf16.mxu0 %v401
    %1581 = vmatmul.mubr.bf16.gmra.mrb[0].mxu0 %v400
    %v1582 = vpop.f32.mrb[0].mxu0
    %v1583 = vadd.f32 0.0, %v1582
    %v1584 = vpop.f32.mrb[0].mxu0
    %v1585 = vadd.f32 0.0, %v1584
    %v1586 = vpop.f32.mrb[0].mxu0
    %v1587 = vadd.f32 0.0, %v1586
    %v1588 = vpop.f32.mrb[0].mxu0
    %v1589 = vadd.f32 0.0, %v1588
    %1590 = vmatprep.mubr.bf16.mxu0 %v408
    %1591 = vmatmul.mubr.bf16.gmra.mrb[0].mxu0 %v407
    %v1592 = vpop.f32.mrb[0].mxu0
    %v1593 = vadd.f32 0.0, %v1592
    %v1594 = vpop.f32.mrb[0].mxu0
    %v1595 = vadd.f32 0.0, %v1594
    %v1596 = vpop.f32.mrb[0].mxu0
    %v1597 = vadd.f32 0.0, %v1596
    %v1598 = vpop.f32.mrb[0].mxu0
    %v1599 = vadd.f32 0.0, %v1598
    %1600 = vmatprep.mubr.bf16.mxu0 %v415
    %1601 = vmatmul.mubr.bf16.gmra.mrb[0].mxu0 %v414
    %v1602 = vpop.f32.mrb[0].mxu0
    %v1603 = vadd.f32 0.0, %v1602
    %v1604 = vpop.f32.mrb[0].mxu0
    %v1605 = vadd.f32 0.0, %v1604
    %v1606 = vpop.f32.mrb[0].mxu0
    %v1607 = vadd.f32 0.0, %v1606
    %v1608 = vpop.f32.mrb[0].mxu0
    %v1609 = vadd.f32 0.0, %v1608
    %1610 = vmatprep.mubr.bf16.mxu0 %v422
    %1611 = vmatmul.mubr.bf16.gmra.mrb[0].mxu0 %v421
    %v1612 = vpop.f32.mrb[0].mxu0
    %v1613 = vadd.f32 0.0, %v1612
    %v1614 = vpop.f32.mrb[0].mxu0
    %v1615 = vadd.f32 0.0, %v1614
    %v1616 = vpop.f32.mrb[0].mxu0
    %v1617 = vadd.f32 0.0, %v1616
    %v1618 = vpop.f32.mrb[0].mxu0
    %v1619 = vadd.f32 0.0, %v1618
    %1620 = vdwg.mxu0
    %1621 = vmatprep.subr.bf16.mxu0 %v1261
    %1622 = vmatpush1.bf16.msra.mxu0 %v1260
    %1623 = vmatprep.subr.bf16.mxu0 %v1264
    %1624 = vmatpush1.bf16.msra.mxu0 %v1263
    %1625 = vmatprep.subr.bf16.mxu0 %v1267
    %1626 = vmatpush1.bf16.msra.mxu0 %v1266
    %1627 = vmatprep.subr.bf16.mxu0 %v1270
    %1628 = vmatpush1.bf16.msra.mxu0 %v1269
    %1629 = vmatprep.subr.bf16.mxu0 %v1273
    %1630 = vmatpush1.bf16.msra.mxu0 %v1272
    %1631 = vmatprep.subr.bf16.mxu0 %v1276
    %1632 = vmatpush1.bf16.msra.mxu0 %v1275
    %1633 = vmatprep.subr.bf16.mxu0 %v1279
    %1634 = vmatpush1.bf16.msra.mxu0 %v1278
    %1635 = vmatprep.subr.bf16.mxu0 %v1282
    %1636 = vmatpush1.bf16.msra.mxu0 %v1281
    %1637 = vmatprep.subr.bf16.mxu0 %v1285
    %1638 = vmatpush1.bf16.msra.mxu0 %v1284
    %1639 = vmatprep.subr.bf16.mxu0 %v1288
    %1640 = vmatpush1.bf16.msra.mxu0 %v1287
    %1641 = vmatprep.subr.bf16.mxu0 %v1291
    %1642 = vmatpush1.bf16.msra.mxu0 %v1290
    %1643 = vmatprep.subr.bf16.mxu0 %v1294
    %1644 = vmatpush1.bf16.msra.mxu0 %v1293
    %1645 = vmatprep.subr.bf16.mxu0 %v1297
    %1646 = vmatpush1.bf16.msra.mxu0 %v1296
    %1647 = vmatprep.subr.bf16.mxu0 %v1300
    %1648 = vmatpush1.bf16.msra.mxu0 %v1299
    %1649 = vmatprep.subr.bf16.mxu0 %v1303
    %1650 = vmatpush1.bf16.msra.mxu0 %v1302
    %1651 = vmatprep.subr.bf16.mxu0 %v1306
    %1652 = vmatpush1.bf16.msra.mxu0 %v1305
    %1653 = vmatprep.mubr.bf16.mxu0 %v403
    %1654 = vmatmul.mubr.bf16.gmra.mrb[0].mxu0 %v402
    %v1655 = vpop.f32.mrb[0].mxu0
    %v1656 = vadd.f32 %v1583, %v1655
    %v1657 = vpop.f32.mrb[0].mxu0
    %v1658 = vadd.f32 %v1585, %v1657
    %v1659 = vpop.f32.mrb[0].mxu0
    %v1660 = vadd.f32 %v1587, %v1659
    %v1661 = vpop.f32.mrb[0].mxu0
    %v1662 = vadd.f32 %v1589, %v1661
    %1663 = vmatprep.mubr.bf16.mxu0 %v410
    %1664 = vmatmul.mubr.bf16.gmra.mrb[0].mxu0 %v409
    %v1665 = vpop.f32.mrb[0].mxu0
    %v1666 = vadd.f32 %v1593, %v1665
    %v1667 = vpop.f32.mrb[0].mxu0
    %v1668 = vadd.f32 %v1595, %v1667
    %v1669 = vpop.f32.mrb[0].mxu0
    %v1670 = vadd.f32 %v1597, %v1669
    %v1671 = vpop.f32.mrb[0].mxu0
    %v1672 = vadd.f32 %v1599, %v1671
    %1673 = vmatprep.mubr.bf16.mxu0 %v417
    %1674 = vmatmul.mubr.bf16.gmra.mrb[0].mxu0 %v416
    %v1675 = vpop.f32.mrb[0].mxu0
    %v1676 = vadd.f32 %v1603, %v1675
    %v1677 = vpop.f32.mrb[0].mxu0
    %v1678 = vadd.f32 %v1605, %v1677
    %v1679 = vpop.f32.mrb[0].mxu0
    %v1680 = vadd.f32 %v1607, %v1679
    %v1681 = vpop.f32.mrb[0].mxu0
    %v1682 = vadd.f32 %v1609, %v1681
    %1683 = vmatprep.mubr.bf16.mxu0 %v424
    %1684 = vmatmul.mubr.bf16.gmra.mrb[0].mxu0 %v423
    %v1685 = vpop.f32.mrb[0].mxu0
    %v1686 = vadd.f32 %v1613, %v1685
    %v1687 = vpop.f32.mrb[0].mxu0
    %v1688 = vadd.f32 %v1615, %v1687
    %v1689 = vpop.f32.mrb[0].mxu0
    %v1690 = vadd.f32 %v1617, %v1689
    %v1691 = vpop.f32.mrb[0].mxu0
    %v1692 = vadd.f32 %v1619, %v1691
    %1693 = vdwg.mxu0
    %1694 = vmatprep.subr.bf16.mxu0 %v1309
    %1695 = vmatpush1.bf16.msra.mxu0 %v1308
    %1696 = vmatprep.subr.bf16.mxu0 %v1312
    %1697 = vmatpush1.bf16.msra.mxu0 %v1311
    %1698 = vmatprep.subr.bf16.mxu0 %v1315
    %1699 = vmatpush1.bf16.msra.mxu0 %v1314
    %1700 = vmatprep.subr.bf16.mxu0 %v1318
    %1701 = vmatpush1.bf16.msra.mxu0 %v1317
    %1702 = vmatprep.subr.bf16.mxu0 %v1321
    %1703 = vmatpush1.bf16.msra.mxu0 %v1320
    %1704 = vmatprep.subr.bf16.mxu0 %v1324
    %1705 = vmatpush1.bf16.msra.mxu0 %v1323
    %1706 = vmatprep.subr.bf16.mxu0 %v1327
    %1707 = vmatpush1.bf16.msra.mxu0 %v1326
    %1708 = vmatprep.subr.bf16.mxu0 %v1330
    %1709 = vmatpush1.bf16.msra.mxu0 %v1329
    %1710 = vmatprep.subr.bf16.mxu0 %v1333
    %1711 = vmatpush1.bf16.msra.mxu0 %v1332
    %1712 = vmatprep.subr.bf16.mxu0 %v1336
    %1713 = vmatpush1.bf16.msra.mxu0 %v1335
    %1714 = vmatprep.subr.bf16.mxu0 %v1339
    %1715 = vmatpush1.bf16.msra.mxu0 %v1338
    %1716 = vmatprep.subr.bf16.mxu0 %v1342
    %1717 = vmatpush1.bf16.msra.mxu0 %v1341
    %1718 = vmatprep.subr.bf16.mxu0 %v1345
    %1719 = vmatpush1.bf16.msra.mxu0 %v1344
    %1720 = vmatprep.subr.bf16.mxu0 %v1348
    %1721 = vmatpush1.bf16.msra.mxu0 %v1347
    %1722 = vmatprep.subr.bf16.mxu0 %v1351
    %1723 = vmatpush1.bf16.msra.mxu0 %v1350
    %1724 = vmatprep.subr.bf16.mxu0 %v1354
    %1725 = vmatpush1.bf16.msra.mxu0 %v1353
    %1726 = vmatprep.mubr.bf16.mxu0 %v405
    %1727 = vmatmul.mubr.bf16.gmra.mrb[0].mxu0 %v404
    %v1728 = vpop.f32.mrb[0].mxu0
    %v1729 = vadd.f32 %v1656, %v1728
    %v1730 = vpop.f32.mrb[0].mxu0
    %v1731 = vadd.f32 %v1658, %v1730
    %v1732 = vpop.f32.mrb[0].mxu0
    %v1733 = vadd.f32 %v1660, %v1732
    %v1734 = vpop.f32.mrb[0].mxu0
    %v1735 = vadd.f32 %v1662, %v1734
    %1736 = vmatprep.mubr.bf16.mxu0 %v412
    %1737 = vmatmul.mubr.bf16.gmra.mrb[0].mxu0 %v411
    %v1738 = vpop.f32.mrb[0].mxu0
    %v1739 = vadd.f32 %v1666, %v1738
    %v1740 = vpop.f32.mrb[0].mxu0
    %v1741 = vadd.f32 %v1668, %v1740
    %v1742 = vpop.f32.mrb[0].mxu0
    %v1743 = vadd.f32 %v1670, %v1742
    %v1744 = vpop.f32.mrb[0].mxu0
    %v1745 = vadd.f32 %v1672, %v1744
    %1746 = vmatprep.mubr.bf16.mxu0 %v419
    %1747 = vmatmul.mubr.bf16.gmra.mrb[0].mxu0 %v418
    %v1748 = vpop.f32.mrb[0].mxu0
    %v1749 = vadd.f32 %v1676, %v1748
    %v1750 = vpop.f32.mrb[0].mxu0
    %v1751 = vadd.f32 %v1678, %v1750
    %v1752 = vpop.f32.mrb[0].mxu0
    %v1753 = vadd.f32 %v1680, %v1752
    %v1754 = vpop.f32.mrb[0].mxu0
    %v1755 = vadd.f32 %v1682, %v1754
    %1756 = vmatprep.mubr.bf16.mxu0 %v426
    %1757 = vmatmul.mubr.bf16.gmra.mrb[0].mxu0 %v425
    %v1758 = vpop.f32.mrb[0].mxu0
    %v1759 = vadd.f32 %v1686, %v1758
    %v1760 = vpop.f32.mrb[0].mxu0
    %v1761 = vadd.f32 %v1688, %v1760
    %v1762 = vpop.f32.mrb[0].mxu0
    %v1763 = vadd.f32 %v1690, %v1762
    %v1764 = vpop.f32.mrb[0].mxu0
    %v1765 = vadd.f32 %v1692, %v1764
    %1766 = vdwg.mxu0
    %1767 = vmatprep.subr.bf16.mxu0 %v1357
    %1768 = vmatpush1.bf16.msra.mxu0 %v1356
    %1769 = vmatprep.subr.bf16.mxu0 %v1360
    %1770 = vmatpush1.bf16.msra.mxu0 %v1359
    %1771 = vmatprep.subr.bf16.mxu0 %v1363
    %1772 = vmatpush1.bf16.msra.mxu0 %v1362
    %1773 = vmatprep.subr.bf16.mxu0 %v1366
    %1774 = vmatpush1.bf16.msra.mxu0 %v1365
    %1775 = vmatprep.subr.bf16.mxu0 %v1369
    %1776 = vmatpush1.bf16.msra.mxu0 %v1368
    %1777 = vmatprep.subr.bf16.mxu0 %v1372
    %1778 = vmatpush1.bf16.msra.mxu0 %v1371
    %1779 = vmatprep.subr.bf16.mxu0 %v1375
    %1780 = vmatpush1.bf16.msra.mxu0 %v1374
    %1781 = vmatprep.subr.bf16.mxu0 %v1378
    %1782 = vmatpush1.bf16.msra.mxu0 %v1377
    %1783 = vmatprep.subr.bf16.mxu0 0
    %1784 = vmatpush1.bf16.msra.mxu0 0
    %1785 = vmatprep.subr.bf16.mxu0 0
    %1786 = vmatpush1.bf16.msra.mxu0 0
    %1787 = vmatprep.subr.bf16.mxu0 0
    %1788 = vmatpush1.bf16.msra.mxu0 0
    %1789 = vmatprep.subr.bf16.mxu0 0
    %1790 = vmatpush1.bf16.msra.mxu0 0
    %1791 = vmatprep.subr.bf16.mxu0 0
    %1792 = vmatpush1.bf16.msra.mxu0 0
    %1793 = vmatprep.subr.bf16.mxu0 0
    %1794 = vmatpush1.bf16.msra.mxu0 0
    %1795 = vmatprep.subr.bf16.mxu0 0
    %1796 = vmatpush1.bf16.msra.mxu0 0
    %1797 = vmatprep.subr.bf16.mxu0 0
    %1798 = vmatpush1.bf16.msra.mxu0 0
    %1799 = vmatprep.mubr.bf16.mxu0 0
    %1800 = vmatmul.mubr.bf16.gmra.mrb[0].mxu0 %v406
    %v1801 = vpop.f32.mrb[0].mxu0
    %v1802 = vadd.f32 %v1729, %v1801
    %v1803 = vpop.f32.mrb[0].mxu0
    %v1804 = vadd.f32 %v1731, %v1803
    %v1805 = vpop.f32.mrb[0].mxu0
    %v1806 = vadd.f32 %v1733, %v1805
    %v1807 = vpop.f32.mrb[0].mxu0
    %v1808 = vadd.f32 %v1735, %v1807
    %1809 = vmatprep.mubr.bf16.mxu0 0
    %1810 = vmatmul.mubr.bf16.gmra.mrb[0].mxu0 %v413
    %v1811 = vpop.f32.mrb[0].mxu0
    %v1812 = vadd.f32 %v1739, %v1811
    %v1813 = vpop.f32.mrb[0].mxu0
    %v1814 = vadd.f32 %v1741, %v1813
    %v1815 = vpop.f32.mrb[0].mxu0
    %v1816 = vadd.f32 %v1743, %v1815
    %v1817 = vpop.f32.mrb[0].mxu0
    %v1818 = vadd.f32 %v1745, %v1817
    %1819 = vmatprep.mubr.bf16.mxu0 0
    %1820 = vmatmul.mubr.bf16.gmra.mrb[0].mxu0 %v420
    %v1821 = vpop.f32.mrb[0].mxu0
    %v1822 = vadd.f32 %v1749, %v1821
    %v1823 = vpop.f32.mrb[0].mxu0
    %v1824 = vadd.f32 %v1751, %v1823
    %v1825 = vpop.f32.mrb[0].mxu0
    %v1826 = vadd.f32 %v1753, %v1825
    %v1827 = vpop.f32.mrb[0].mxu0
    %v1828 = vadd.f32 %v1755, %v1827
    %1829 = vmatprep.mubr.bf16.mxu0 0
    %1830 = vmatmul.mubr.bf16.gmra.mrb[0].mxu0 %v427
    %v1831 = vpop.f32.mrb[0].mxu0
    %v1832 = vadd.f32 %v1759, %v1831
    %v1833 = vpop.f32.mrb[0].mxu0
    %v1834 = vadd.f32 %v1761, %v1833
    %v1835 = vpop.f32.mrb[0].mxu0
    %v1836 = vadd.f32 %v1763, %v1835
    %v1837 = vpop.f32.mrb[0].mxu0
    %v1838 = vadd.f32 %v1765, %v1837
    %1839 = vdwg.mxu0
    %1840 = vmatprep.subr.bf16.mxu0 0
    %1841 = vmatpush1.bf16.msra.mxu0 %v1214
    %1842 = vmatprep.subr.bf16.mxu0 0
    %1843 = vmatpush1.bf16.msra.mxu0 %v1217
    %1844 = vmatprep.subr.bf16.mxu0 0
    %1845 = vmatpush1.bf16.msra.mxu0 %v1220
    %1846 = vmatprep.subr.bf16.mxu0 0
    %1847 = vmatpush1.bf16.msra.mxu0 %v1223
    %1848 = vmatprep.subr.bf16.mxu0 0
    %1849 = vmatpush1.bf16.msra.mxu0 %v1226
    %1850 = vmatprep.subr.bf16.mxu0 0
    %1851 = vmatpush1.bf16.msra.mxu0 %v1229
    %1852 = vmatprep.subr.bf16.mxu0 0
    %1853 = vmatpush1.bf16.msra.mxu0 %v1232
    %1854 = vmatprep.subr.bf16.mxu0 0
    %1855 = vmatpush1.bf16.msra.mxu0 %v1235
    %1856 = vmatprep.subr.bf16.mxu0 0
    %1857 = vmatpush1.bf16.msra.mxu0 %v1238
    %1858 = vmatprep.subr.bf16.mxu0 0
    %1859 = vmatpush1.bf16.msra.mxu0 %v1241
    %1860 = vmatprep.subr.bf16.mxu0 0
    %1861 = vmatpush1.bf16.msra.mxu0 %v1244
    %1862 = vmatprep.subr.bf16.mxu0 0
    %1863 = vmatpush1.bf16.msra.mxu0 %v1247
    %1864 = vmatprep.subr.bf16.mxu0 0
    %1865 = vmatpush1.bf16.msra.mxu0 %v1250
    %1866 = vmatprep.subr.bf16.mxu0 0
    %1867 = vmatpush1.bf16.msra.mxu0 %v1253
    %1868 = vmatprep.subr.bf16.mxu0 0
    %1869 = vmatpush1.bf16.msra.mxu0 %v1256
    %1870 = vmatprep.subr.bf16.mxu0 0
    %1871 = vmatpush1.bf16.msra.mxu0 %v1259
    %1872 = vmatprep.mubr.bf16.mxu0 %v401
    %1873 = vmatmul.mubr.bf16.gmra.mrb[0].mxu0 %v400
    %v1874 = vpop.f32.mrb[0].mxu0
    %v1875 = vadd.f32 0.0, %v1874
    %v1876 = vpop.f32.mrb[0].mxu0
    %v1877 = vpop.f32.mrb[0].mxu0
    %v1878 = vadd.f32 0.0, %v1877
    %v1879 = vpop.f32.mrb[0].mxu0
    %1880 = vmatprep.mubr.bf16.mxu0 %v408
    %1881 = vmatmul.mubr.bf16.gmra.mrb[0].mxu0 %v407
    %v1882 = vpop.f32.mrb[0].mxu0
    %v1883 = vadd.f32 0.0, %v1882
    %v1884 = vpop.f32.mrb[0].mxu0
    %v1885 = vpop.f32.mrb[0].mxu0
    %v1886 = vadd.f32 0.0, %v1885
    %v1887 = vpop.f32.mrb[0].mxu0
    %1888 = vmatprep.mubr.bf16.mxu0 %v415
    %1889 = vmatmul.mubr.bf16.gmra.mrb[0].mxu0 %v414
    %v1890 = vpop.f32.mrb[0].mxu0
    %v1891 = vadd.f32 0.0, %v1890
    %v1892 = vpop.f32.mrb[0].mxu0
    %v1893 = vpop.f32.mrb[0].mxu0
    %v1894 = vadd.f32 0.0, %v1893
    %v1895 = vpop.f32.mrb[0].mxu0
    %1896 = vmatprep.mubr.bf16.mxu0 %v422
    %1897 = vmatmul.mubr.bf16.gmra.mrb[0].mxu0 %v421
    %v1898 = vpop.f32.mrb[0].mxu0
    %v1899 = vadd.f32 0.0, %v1898
    %v1900 = vpop.f32.mrb[0].mxu0
    %v1901 = vpop.f32.mrb[0].mxu0
    %v1902 = vadd.f32 0.0, %v1901
    %v1903 = vpop.f32.mrb[0].mxu0
    %1904 = vdwg.mxu0
    %1905 = vmatprep.subr.bf16.mxu0 0
    %1906 = vmatpush1.bf16.msra.mxu0 %v1262
    %1907 = vmatprep.subr.bf16.mxu0 0
    %1908 = vmatpush1.bf16.msra.mxu0 %v1265
    %1909 = vmatprep.subr.bf16.mxu0 0
    %1910 = vmatpush1.bf16.msra.mxu0 %v1268
    %1911 = vmatprep.subr.bf16.mxu0 0
    %1912 = vmatpush1.bf16.msra.mxu0 %v1271
    %1913 = vmatprep.subr.bf16.mxu0 0
    %1914 = vmatpush1.bf16.msra.mxu0 %v1274
    %1915 = vmatprep.subr.bf16.mxu0 0
    %1916 = vmatpush1.bf16.msra.mxu0 %v1277
    %1917 = vmatprep.subr.bf16.mxu0 0
    %1918 = vmatpush1.bf16.msra.mxu0 %v1280
    %1919 = vmatprep.subr.bf16.mxu0 0
    %1920 = vmatpush1.bf16.msra.mxu0 %v1283
    %1921 = vmatprep.subr.bf16.mxu0 0
    %1922 = vmatpush1.bf16.msra.mxu0 %v1286
    %1923 = vmatprep.subr.bf16.mxu0 0
    %1924 = vmatpush1.bf16.msra.mxu0 %v1289
    %1925 = vmatprep.subr.bf16.mxu0 0
    %1926 = vmatpush1.bf16.msra.mxu0 %v1292
    %1927 = vmatprep.subr.bf16.mxu0 0
    %1928 = vmatpush1.bf16.msra.mxu0 %v1295
    %1929 = vmatprep.subr.bf16.mxu0 0
    %1930 = vmatpush1.bf16.msra.mxu0 %v1298
    %1931 = vmatprep.subr.bf16.mxu0 0
    %1932 = vmatpush1.bf16.msra.mxu0 %v1301
    %1933 = vmatprep.subr.bf16.mxu0 0
    %1934 = vmatpush1.bf16.msra.mxu0 %v1304
    %1935 = vmatprep.subr.bf16.mxu0 0
    %1936 = vmatpush1.bf16.msra.mxu0 %v1307
    %1937 = vmatprep.mubr.bf16.mxu0 %v403
    %1938 = vmatmul.mubr.bf16.gmra.mrb[0].mxu0 %v402
    %v1939 = vpop.f32.mrb[0].mxu0
    %v1940 = vadd.f32 %v1875, %v1939
    %v1941 = vpop.f32.mrb[0].mxu0
    %v1942 = vpop.f32.mrb[0].mxu0
    %v1943 = vadd.f32 %v1878, %v1942
    %v1944 = vpop.f32.mrb[0].mxu0
    %1945 = vmatprep.mubr.bf16.mxu0 %v410
    %1946 = vmatmul.mubr.bf16.gmra.mrb[0].mxu0 %v409
    %v1947 = vpop.f32.mrb[0].mxu0
    %v1948 = vadd.f32 %v1883, %v1947
    %v1949 = vpop.f32.mrb[0].mxu0
    %v1950 = vpop.f32.mrb[0].mxu0
    %v1951 = vadd.f32 %v1886, %v1950
    %v1952 = vpop.f32.mrb[0].mxu0
    %1953 = vmatprep.mubr.bf16.mxu0 %v417
    %1954 = vmatmul.mubr.bf16.gmra.mrb[0].mxu0 %v416
    %v1955 = vpop.f32.mrb[0].mxu0
    %v1956 = vadd.f32 %v1891, %v1955
    %v1957 = vpop.f32.mrb[0].mxu0
    %v1958 = vpop.f32.mrb[0].mxu0
    %v1959 = vadd.f32 %v1894, %v1958
    %v1960 = vpop.f32.mrb[0].mxu0
    %1961 = vmatprep.mubr.bf16.mxu0 %v424
    %1962 = vmatmul.mubr.bf16.gmra.mrb[0].mxu0 %v423
    %v1963 = vpop.f32.mrb[0].mxu0
    %v1964 = vadd.f32 %v1899, %v1963
    %v1965 = vpop.f32.mrb[0].mxu0
    %v1966 = vpop.f32.mrb[0].mxu0
    %v1967 = vadd.f32 %v1902, %v1966
    %v1968 = vpop.f32.mrb[0].mxu0
    %1969 = vdwg.mxu0
    %1970 = vmatprep.subr.bf16.mxu0 0
    %1971 = vmatpush1.bf16.msra.mxu0 %v1310
    %1972 = vmatprep.subr.bf16.mxu0 0
    %1973 = vmatpush1.bf16.msra.mxu0 %v1313
    %1974 = vmatprep.subr.bf16.mxu0 0
    %1975 = vmatpush1.bf16.msra.mxu0 %v1316
    %1976 = vmatprep.subr.bf16.mxu0 0
    %1977 = vmatpush1.bf16.msra.mxu0 %v1319
    %1978 = vmatprep.subr.bf16.mxu0 0
    %1979 = vmatpush1.bf16.msra.mxu0 %v1322
    %1980 = vmatprep.subr.bf16.mxu0 0
    %1981 = vmatpush1.bf16.msra.mxu0 %v1325
    %1982 = vmatprep.subr.bf16.mxu0 0
    %1983 = vmatpush1.bf16.msra.mxu0 %v1328
    %1984 = vmatprep.subr.bf16.mxu0 0
    %1985 = vmatpush1.bf16.msra.mxu0 %v1331
    %1986 = vmatprep.subr.bf16.mxu0 0
    %1987 = vmatpush1.bf16.msra.mxu0 %v1334
    %1988 = vmatprep.subr.bf16.mxu0 0
    %1989 = vmatpush1.bf16.msra.mxu0 %v1337
    %1990 = vmatprep.subr.bf16.mxu0 0
    %1991 = vmatpush1.bf16.msra.mxu0 %v1340
    %1992 = vmatprep.subr.bf16.mxu0 0
    %1993 = vmatpush1.bf16.msra.mxu0 %v1343
    %1994 = vmatprep.subr.bf16.mxu0 0
    %1995 = vmatpush1.bf16.msra.mxu0 %v1346
    %1996 = vmatprep.subr.bf16.mxu0 0
    %1997 = vmatpush1.bf16.msra.mxu0 %v1349
    %1998 = vmatprep.subr.bf16.mxu0 0
    %1999 = vmatpush1.bf16.msra.mxu0 %v1352
    %2000 = vmatprep.subr.bf16.mxu0 0
    %2001 = vmatpush1.bf16.msra.mxu0 %v1355
    %2002 = vmatprep.mubr.bf16.mxu0 %v405
    %2003 = vmatmul.mubr.bf16.gmra.mrb[0].mxu0 %v404
    %v2004 = vpop.f32.mrb[0].mxu0
    %v2005 = vadd.f32 %v1940, %v2004
    %v2006 = vpop.f32.mrb[0].mxu0
    %v2007 = vpop.f32.mrb[0].mxu0
    %v2008 = vadd.f32 %v1943, %v2007
    %v2009 = vpop.f32.mrb[0].mxu0
    %2010 = vmatprep.mubr.bf16.mxu0 %v412
    %2011 = vmatmul.mubr.bf16.gmra.mrb[0].mxu0 %v411
    %v2012 = vpop.f32.mrb[0].mxu0
    %v2013 = vadd.f32 %v1948, %v2012
    %v2014 = vpop.f32.mrb[0].mxu0
    %v2015 = vpop.f32.mrb[0].mxu0
    %v2016 = vadd.f32 %v1951, %v2015
    %v2017 = vpop.f32.mrb[0].mxu0
    %2018 = vmatprep.mubr.bf16.mxu0 %v419
    %2019 = vmatmul.mubr.bf16.gmra.mrb[0].mxu0 %v418
    %v2020 = vpop.f32.mrb[0].mxu0
    %v2021 = vadd.f32 %v1956, %v2020
    %v2022 = vpop.f32.mrb[0].mxu0
    %v2023 = vpop.f32.mrb[0].mxu0
    %v2024 = vadd.f32 %v1959, %v2023
    %v2025 = vpop.f32.mrb[0].mxu0
    %2026 = vmatprep.mubr.bf16.mxu0 %v426
    %2027 = vmatmul.mubr.bf16.gmra.mrb[0].mxu0 %v425
    %v2028 = vpop.f32.mrb[0].mxu0
    %v2029 = vadd.f32 %v1964, %v2028
    %v2030 = vpop.f32.mrb[0].mxu0
    %v2031 = vpop.f32.mrb[0].mxu0
    %v2032 = vadd.f32 %v1967, %v2031
    %v2033 = vpop.f32.mrb[0].mxu0
    %2034 = vdwg.mxu0
    %2035 = vmatprep.subr.bf16.mxu0 0
    %2036 = vmatpush1.bf16.msra.mxu0 %v1358
    %2037 = vmatprep.subr.bf16.mxu0 0
    %2038 = vmatpush1.bf16.msra.mxu0 %v1361
    %2039 = vmatprep.subr.bf16.mxu0 0
    %2040 = vmatpush1.bf16.msra.mxu0 %v1364
    %2041 = vmatprep.subr.bf16.mxu0 0
    %2042 = vmatpush1.bf16.msra.mxu0 %v1367
    %2043 = vmatprep.subr.bf16.mxu0 0
    %2044 = vmatpush1.bf16.msra.mxu0 %v1370
    %2045 = vmatprep.subr.bf16.mxu0 0
    %2046 = vmatpush1.bf16.msra.mxu0 %v1373
    %2047 = vmatprep.subr.bf16.mxu0 0
    %2048 = vmatpush1.bf16.msra.mxu0 %v1376
    %2049 = vmatprep.subr.bf16.mxu0 0
    %2050 = vmatpush1.bf16.msra.mxu0 %v1379
    %2051 = vmatprep.subr.bf16.mxu0 0
    %2052 = vmatpush1.bf16.msra.mxu0 0
    %2053 = vmatprep.subr.bf16.mxu0 0
    %2054 = vmatpush1.bf16.msra.mxu0 0
    %2055 = vmatprep.subr.bf16.mxu0 0
    %2056 = vmatpush1.bf16.msra.mxu0 0
    %2057 = vmatprep.subr.bf16.mxu0 0
    %2058 = vmatpush1.bf16.msra.mxu0 0
    %2059 = vmatprep.subr.bf16.mxu0 0
    %2060 = vmatpush1.bf16.msra.mxu0 0
    %2061 = vmatprep.subr.bf16.mxu0 0
    %2062 = vmatpush1.bf16.msra.mxu0 0
    %2063 = vmatprep.subr.bf16.mxu0 0
    %2064 = vmatpush1.bf16.msra.mxu0 0
    %2065 = vmatprep.subr.bf16.mxu0 0
    %2066 = vmatpush1.bf16.msra.mxu0 0
    %2067 = vmatprep.mubr.bf16.mxu0 0
    %2068 = vmatmul.mubr.bf16.gmra.mrb[0].mxu0 %v406
    %v2069 = vpop.f32.mrb[0].mxu0
    %v2070 = vadd.f32 %v2005, %v2069
    %v2071 = vpop.f32.mrb[0].mxu0
    %v2072 = vpop.f32.mrb[0].mxu0
    %v2073 = vadd.f32 %v2008, %v2072
    %v2074 = vpop.f32.mrb[0].mxu0
    %2075 = vmatprep.mubr.bf16.mxu0 0
    %2076 = vmatmul.mubr.bf16.gmra.mrb[0].mxu0 %v413
    %v2077 = vpop.f32.mrb[0].mxu0
    %v2078 = vadd.f32 %v2013, %v2077
    %v2079 = vpop.f32.mrb[0].mxu0
    %v2080 = vpop.f32.mrb[0].mxu0
    %v2081 = vadd.f32 %v2016, %v2080
    %v2082 = vpop.f32.mrb[0].mxu0
    %2083 = vmatprep.mubr.bf16.mxu0 0
    %2084 = vmatmul.mubr.bf16.gmra.mrb[0].mxu0 %v420
    %v2085 = vpop.f32.mrb[0].mxu0
    %v2086 = vadd.f32 %v2021, %v2085
    %v2087 = vpop.f32.mrb[0].mxu0
    %v2088 = vpop.f32.mrb[0].mxu0
    %v2089 = vadd.f32 %v2024, %v2088
    %v2090 = vpop.f32.mrb[0].mxu0
    %2091 = vmatprep.mubr.bf16.mxu0 0
    %2092 = vmatmul.mubr.bf16.gmra.mrb[0].mxu0 %v427
    %v2093 = vpop.f32.mrb[0].mxu0
    %v2094 = vadd.f32 %v2029, %v2093
    %v2095 = vpop.f32.mrb[0].mxu0
    %v2096 = vpop.f32.mrb[0].mxu0
    %v2097 = vadd.f32 %v2032, %v2096
    %v2098 = vpop.f32.mrb[0].mxu0
    %2099 = vdwg.mxu0
    %v2100 = vmax.f32 %v1802, %v1806
    %v2101 = vrot.slane %v2100, 4
    %v2102 = vmax.f32 %v2100, %v2101
    %v2103 = vrot.slane %v2102, 2
    %v2104 = vmax.f32 %v2102, %v2103
    %v2105 = vrot.slane %v2104, 1
    %v2106 = vmax.f32 %v2104, %v2105
    %v2107 = vmax.f32 %v1804, %v1808
    %v2108 = vrot.slane %v2107, 4
    %v2109 = vmax.f32 %v2107, %v2108
    %v2110 = vrot.slane %v2109, 2
    %v2111 = vmax.f32 %v2109, %v2110
    %v2112 = vrot.slane %v2111, 1
    %v2113 = vmax.f32 %v2111, %v2112
    %v2114 = vmax.f32 %v2070, %v2073
    %v2115 = vrot.slane %v2114, 4
    %v2116 = vmax.f32 %v2114, %v2115
    %v2117 = vrot.slane %v2116, 2
    %v2118 = vmax.f32 %v2116, %v2117
    %v2119 = vrot.slane %v2118, 1
    %v2120 = vmax.f32 %v2118, %v2119
    %v2121 = vmax.f32 %v1812, %v1816
    %v2122 = vrot.slane %v2121, 4
    %v2123 = vmax.f32 %v2121, %v2122
    %v2124 = vrot.slane %v2123, 2
    %v2125 = vmax.f32 %v2123, %v2124
    %v2126 = vrot.slane %v2125, 1
    %v2127 = vmax.f32 %v2125, %v2126
    %v2128 = vmax.f32 %v1814, %v1818
    %v2129 = vrot.slane %v2128, 4
    %v2130 = vmax.f32 %v2128, %v2129
    %v2131 = vrot.slane %v2130, 2
    %v2132 = vmax.f32 %v2130, %v2131
    %v2133 = vrot.slane %v2132, 1
    %v2134 = vmax.f32 %v2132, %v2133
    %v2135 = vmax.f32 %v2078, %v2081
    %v2136 = vrot.slane %v2135, 4
    %v2137 = vmax.f32 %v2135, %v2136
    %v2138 = vrot.slane %v2137, 2
    %v2139 = vmax.f32 %v2137, %v2138
    %v2140 = vrot.slane %v2139, 1
    %v2141 = vmax.f32 %v2139, %v2140
    %v2142 = vmax.f32 %v1822, %v1826
    %v2143 = vrot.slane %v2142, 4
    %v2144 = vmax.f32 %v2142, %v2143
    %v2145 = vrot.slane %v2144, 2
    %v2146 = vmax.f32 %v2144, %v2145
    %v2147 = vrot.slane %v2146, 1
    %v2148 = vmax.f32 %v2146, %v2147
    %v2149 = vmax.f32 %v1824, %v1828
    %v2150 = vrot.slane %v2149, 4
    %v2151 = vmax.f32 %v2149, %v2150
    %v2152 = vrot.slane %v2151, 2
    %v2153 = vmax.f32 %v2151, %v2152
    %v2154 = vrot.slane %v2153, 1
    %v2155 = vmax.f32 %v2153, %v2154
    %v2156 = vmax.f32 %v2086, %v2089
    %v2157 = vrot.slane %v2156, 4
    %v2158 = vmax.f32 %v2156, %v2157
    %v2159 = vrot.slane %v2158, 2
    %v2160 = vmax.f32 %v2158, %v2159
    %v2161 = vrot.slane %v2160, 1
    %v2162 = vmax.f32 %v2160, %v2161
    %v2163 = vmax.f32 %v1832, %v1836
    %v2164 = vrot.slane %v2163, 4
    %v2165 = vmax.f32 %v2163, %v2164
    %v2166 = vrot.slane %v2165, 2
    %v2167 = vmax.f32 %v2165, %v2166
    %v2168 = vrot.slane %v2167, 1
    %v2169 = vmax.f32 %v2167, %v2168
    %v2170 = vmax.f32 %v1834, %v1838
    %v2171 = vrot.slane %v2170, 4
    %v2172 = vmax.f32 %v2170, %v2171
    %v2173 = vrot.slane %v2172, 2
    %v2174 = vmax.f32 %v2172, %v2173
    %v2175 = vrot.slane %v2174, 1
    %v2176 = vmax.f32 %v2174, %v2175
    %v2177 = vmax.f32 %v2094, %v2097
    %v2178 = vrot.slane %v2177, 4
    %v2179 = vmax.f32 %v2177, %v2178
    %v2180 = vrot.slane %v2179, 2
    %v2181 = vmax.f32 %v2179, %v2180
    %v2182 = vrot.slane %v2181, 1
    %v2183 = vmax.f32 %v2181, %v2182
    %v2184 = vld [vmem:[%s4] sm:$0x7]
    %v2186 = vlaneseq
    %v2187 = vshrl.u32 %v2186, 7
    %v2188 = vsub.s32 0, %v2187
    %v2189 = vrot.slane %v2184, %v2188
    %v2190 = vlaneseq
    %v2191 = vshrl.u32 %v2190, 7
    %v2192 = vsub.s32 1, %v2191
    %v2193 = vrot.slane %v2184, %v2192
    %v2194 = vlaneseq
    %v2195 = vshrl.u32 %v2194, 7
    %v2196 = vsub.s32 2, %v2195
    %v2197 = vrot.slane %v2184, %v2196
    %v2201 = vadd.f32 %v2106, %v2189
    %v2202 = vadd.f32 %v2113, %v2193
    %v2203 = vadd.f32 %v2120, %v2197
    %v2204 = vadd.f32 %v2127, %v2189
    %v2205 = vadd.f32 %v2134, %v2193
    %v2206 = vadd.f32 %v2141, %v2197
    %v2207 = vadd.f32 %v2148, %v2189
    %v2208 = vadd.f32 %v2155, %v2193
    %v2209 = vadd.f32 %v2162, %v2197
    %v2210 = vadd.f32 %v2169, %v2189
    %v2211 = vadd.f32 %v2176, %v2193
    %v2212 = vadd.f32 %v2183, %v2197
    %v2213 = vmax.f32 %v2201, 0.0
    %v2214 = vmax.f32 %v2202, 0.0
    %v2215 = vmax.f32 %v2203, 0.0
    %v2216 = vmax.f32 %v2204, 0.0
    %v2217 = vmax.f32 %v2205, 0.0
    %v2218 = vmax.f32 %v2206, 0.0
    %v2219 = vmax.f32 %v2207, 0.0
    %v2220 = vmax.f32 %v2208, 0.0
    %v2221 = vmax.f32 %v2209, 0.0
    %v2222 = vmax.f32 %v2210, 0.0
    %v2223 = vmax.f32 %v2211, 0.0
    %v2224 = vmax.f32 %v2212, 0.0
    %v2225 = vpack.c.bf16 %v2213, %v2213
    %v2226 = vpack.c.bf16 %v2214, %v2214
    %v2227 = vpack.c.bf16 %v2215, %v2215
    %v2228 = vpack.c.bf16 %v2216, %v2216
    %v2229 = vpack.c.bf16 %v2217, %v2217
    %v2230 = vpack.c.bf16 %v2218, %v2218
    %v2231 = vpack.c.bf16 %v2219, %v2219
    %v2232 = vpack.c.bf16 %v2220, %v2220
    %v2233 = vpack.c.bf16 %v2221, %v2221
    %v2234 = vpack.c.bf16 %v2222, %v2222
    %v2235 = vpack.c.bf16 %v2223, %v2223
    %v2236 = vpack.c.bf16 %v2224, %v2224
    %v2237 = vld [vmem:[%s5] sm:$0xff]
    %v2238 = vld [vmem:[%s5 + $0x8] sm:$0xf]
    %v2239 = vld [vmem:[%s5 + $0xc] sm:$0xff]
    %v2240 = vld [vmem:[%s5 + $0x14] sm:$0xf]
    %v2241 = vld [vmem:[%s5 + $0x18] sm:$0xff]
    %v2242 = vld [vmem:[%s5 + $0x20] sm:$0xf]
    %v2243 = vld [vmem:[%s5 + $0x24] sm:$0xff]
    %v2244 = vld [vmem:[%s5 + $0x2c] sm:$0xf]
    %v2245 = vld [vmem:[%s5 + $0x30] sm:$0xff]
    %v2246 = vld [vmem:[%s5 + $0x38] sm:$0xf]
    %v2247 = vld [vmem:[%s5 + $0x3c] sm:$0xff]
    %v2248 = vld [vmem:[%s5 + $0x44] sm:$0xf]
    %v2249 = vld [vmem:[%s5 + $0x48] sm:$0xff]
    %v2250 = vld [vmem:[%s5 + $0x50] sm:$0xf]
    %v2251 = vld [vmem:[%s5 + $0x54] sm:$0xff]
    %v2252 = vld [vmem:[%s5 + $0x5c] sm:$0xf]
    %v2253 = vld [vmem:[%s5 + $0x60] sm:$0xff]
    %v2254 = vld [vmem:[%s5 + $0x68] sm:$0xf]
    %v2255 = vld [vmem:[%s5 + $0x6c] sm:$0xff]
    %v2256 = vld [vmem:[%s5 + $0x74] sm:$0xf]
    %v2257 = vld [vmem:[%s5 + $0x78] sm:$0xff]
    %v2258 = vld [vmem:[%s5 + $0x80] sm:$0xf]
    %v2259 = vld [vmem:[%s5 + $0x84] sm:$0xff]
    %v2260 = vld [vmem:[%s5 + $0x8c] sm:$0xf]
    %v2261 = vld [vmem:[%s5 + $0x90] sm:$0xff]
    %v2262 = vld [vmem:[%s5 + $0x98] sm:$0xf]
    %v2263 = vld [vmem:[%s5 + $0x9c] sm:$0xff]
    %v2264 = vld [vmem:[%s5 + $0xa4] sm:$0xf]
    %v2265 = vld [vmem:[%s5 + $0xa8] sm:$0xff]
    %v2266 = vld [vmem:[%s5 + $0xb0] sm:$0xf]
    %v2267 = vld [vmem:[%s5 + $0xb4] sm:$0xff]
    %v2268 = vld [vmem:[%s5 + $0xbc] sm:$0xf]
    %v2269 = vld [vmem:[%s5 + $0xc0] sm:$0xff]
    %v2270 = vld [vmem:[%s5 + $0xc8] sm:$0xf]
    %v2271 = vld [vmem:[%s5 + $0xcc] sm:$0xff]
    %v2272 = vld [vmem:[%s5 + $0xd4] sm:$0xf]
    %v2273 = vld [vmem:[%s5 + $0xd8] sm:$0xff]
    %v2274 = vld [vmem:[%s5 + $0xe0] sm:$0xf]
    %v2275 = vld [vmem:[%s5 + $0xe4] sm:$0xff]
    %v2276 = vld [vmem:[%s5 + $0xec] sm:$0xf]
    %v2277 = vld [vmem:[%s5 + $0xf0] sm:$0xff]
    %v2278 = vld [vmem:[%s5 + $0xf8] sm:$0xf]
    %v2279 = vld [vmem:[%s5 + $0xfc] sm:$0xff]
    %v2280 = vld [vmem:[%s5 + $0x104] sm:$0xf]
    %v2281 = vld [vmem:[%s5 + $0x108] sm:$0xff]
    %v2282 = vld [vmem:[%s5 + $0x110] sm:$0xf]
    %v2283 = vld [vmem:[%s5 + $0x114] sm:$0xff]
    %v2284 = vld [vmem:[%s5 + $0x11c] sm:$0xf]
    %v2285 = vld [vmem:[%s5 + $0x120] sm:$0xff]
    %v2286 = vld [vmem:[%s5 + $0x128] sm:$0xf]
    %v2287 = vld [vmem:[%s5 + $0x12c] sm:$0xff]
    %v2288 = vld [vmem:[%s5 + $0x134] sm:$0xf]
    %v2289 = vld [vmem:[%s5 + $0x138] sm:$0xff]
    %v2290 = vld [vmem:[%s5 + $0x140] sm:$0xf]
    %v2291 = vld [vmem:[%s5 + $0x144] sm:$0xff]
    %v2292 = vld [vmem:[%s5 + $0x14c] sm:$0xf]
    %v2293 = vld [vmem:[%s5 + $0x150] sm:$0xff]
    %v2294 = vld [vmem:[%s5 + $0x158] sm:$0xf]
    %v2295 = vld [vmem:[%s5 + $0x15c] sm:$0xff]
    %v2296 = vld [vmem:[%s5 + $0x164] sm:$0xf]
    %v2297 = vld [vmem:[%s5 + $0x168] sm:$0xff]
    %v2298 = vld [vmem:[%s5 + $0x170] sm:$0xf]
    %v2299 = vld [vmem:[%s5 + $0x174] sm:$0xff]
    %v2300 = vld [vmem:[%s5 + $0x17c] sm:$0xf]
    %v2301 = vld [vmem:[%s5 + $0x180] sm:$0xff]
    %v2302 = vld [vmem:[%s5 + $0x188] sm:$0xf]
    %v2303 = vld [vmem:[%s5 + $0x18c] sm:$0xff]
    %v2304 = vld [vmem:[%s5 + $0x194] sm:$0xf]
    %v2305 = vld [vmem:[%s5 + $0x198] sm:$0xff]
    %v2306 = vld [vmem:[%s5 + $0x1a0] sm:$0xf]
    %v2307 = vld [vmem:[%s5 + $0x1a4] sm:$0xff]
    %v2308 = vld [vmem:[%s5 + $0x1ac] sm:$0xf]
    %v2309 = vld [vmem:[%s5 + $0x1b0] sm:$0xff]
    %v2310 = vld [vmem:[%s5 + $0x1b8] sm:$0xf]
    %v2311 = vld [vmem:[%s5 + $0x1bc] sm:$0xff]
    %v2312 = vld [vmem:[%s5 + $0x1c4] sm:$0xf]
    %v2313 = vld [vmem:[%s5 + $0x1c8] sm:$0xff]
    %v2314 = vld [vmem:[%s5 + $0x1d0] sm:$0xf]
    %v2315 = vld [vmem:[%s5 + $0x1d4] sm:$0xff]
    %v2316 = vld [vmem:[%s5 + $0x1dc] sm:$0xf]
    %v2317 = vld [vmem:[%s5 + $0x1e0] sm:$0xff]
    %v2318 = vld [vmem:[%s5 + $0x1e8] sm:$0xf]
    %v2319 = vld [vmem:[%s5 + $0x1ec] sm:$0xff]
    %v2320 = vld [vmem:[%s5 + $0x1f4] sm:$0xf]
    %v2321 = vld [vmem:[%s5 + $0x1f8] sm:$0xff]
    %v2322 = vld [vmem:[%s5 + $0x200] sm:$0xf]
    %v2323 = vld [vmem:[%s5 + $0x204] sm:$0xff]
    %v2324 = vld [vmem:[%s5 + $0x20c] sm:$0xf]
    %v2325 = vld [vmem:[%s5 + $0x210] sm:$0xff]
    %v2326 = vld [vmem:[%s5 + $0x218] sm:$0xf]
    %v2327 = vld [vmem:[%s5 + $0x21c] sm:$0xff]
    %v2328 = vld [vmem:[%s5 + $0x224] sm:$0xf]
    %v2329 = vld [vmem:[%s5 + $0x228] sm:$0xff]
    %v2330 = vld [vmem:[%s5 + $0x230] sm:$0xf]
    %v2331 = vld [vmem:[%s5 + $0x234] sm:$0xff]
    %v2332 = vld [vmem:[%s5 + $0x23c] sm:$0xf]
    %v2333 = vld [vmem:[%s6] sm:$0x7]
    %v2335 = vlaneseq
    %v2336 = vshrl.u32 %v2335, 7
    %v2337 = vsub.s32 0, %v2336
    %v2338 = vrot.slane %v2333, %v2337
    %v2339 = vlaneseq
    %v2340 = vshrl.u32 %v2339, 7
    %v2341 = vsub.s32 1, %v2340
    %v2342 = vrot.slane %v2333, %v2341
    %v2343 = vlaneseq
    %v2344 = vshrl.u32 %v2343, 7
    %v2345 = vsub.s32 2, %v2344
    %v2346 = vrot.slane %v2333, %v2345
    %v2362 = vunpack.c.l.b16 %v2225
    %v2363 = vunpack.c.l.b16 %v2226
    %v2364 = vunpack.c.l.b16 %v2227
    %v2365 = vunpack.c.l.b16 %v2228
    %v2366 = vunpack.c.l.b16 %v2229
    %v2367 = vunpack.c.l.b16 %v2230
    %v2368 = vunpack.c.l.b16 %v2231
    %v2369 = vunpack.c.l.b16 %v2232
    %v2370 = vunpack.c.l.b16 %v2233
    %v2371 = vunpack.c.l.b16 %v2234
    %v2372 = vunpack.c.l.b16 %v2235
    %v2373 = vunpack.c.l.b16 %v2236
    %v2374 = vrot.slane %v2365, 7
    %vm2375 = vcmask 1041409
    %v2376 = vsel %vm2375, %v2374, %v2362
    %v2377 = vrot.slane %v2368, 6
    %vm2378 = vcmask 1042434
    %v2379 = vsel %vm2378, %v2377, %v2376
    %v2380 = vrot.slane %v2371, 5
    %vm2381 = vcmask 1043459
    %v2382 = vsel %vm2381, %v2380, %v2379
    %v2383 = vrot.slane %v2366, 7
    %v2384 = vsel %vm2375, %v2383, %v2363
    %v2385 = vrot.slane %v2369, 6
    %v2386 = vsel %vm2378, %v2385, %v2384
    %v2387 = vrot.slane %v2372, 5
    %v2388 = vsel %vm2381, %v2387, %v2386
    %v2389 = vrot.slane %v2367, 7
    %v2390 = vsel %vm2375, %v2389, %v2364
    %v2391 = vrot.slane %v2370, 6
    %v2392 = vsel %vm2378, %v2391, %v2390
    %v2393 = vrot.slane %v2373, 5
    %v2394 = vsel %vm2381, %v2393, %v2392
    %v2395 = vpack.c.b16 %v2382, %v2382
    %v2396 = vpack.c.b16 %v2388, %v2388
    %v2397 = vpack.c.b16 %v2394, %v2394
    %v2497 = vunpack.c.l.b16 %v2237
    %v2498 = vunpack.c.h.b16 %v2237
    %v2499 = vunpack.c.l.b16 %v2238
    %v2500 = vunpack.c.l.b16 %v2239
    %v2501 = vunpack.c.h.b16 %v2239
    %v2502 = vunpack.c.l.b16 %v2240
    %v2503 = vunpack.c.l.b16 %v2241
    %v2504 = vunpack.c.h.b16 %v2241
    %v2505 = vunpack.c.l.b16 %v2242
    %v2506 = vunpack.c.l.b16 %v2243
    %v2507 = vunpack.c.h.b16 %v2243
    %v2508 = vunpack.c.l.b16 %v2244
    %v2509 = vunpack.c.l.b16 %v2245
    %v2510 = vunpack.c.h.b16 %v2245
    %v2511 = vunpack.c.l.b16 %v2246
    %v2512 = vunpack.c.l.b16 %v2247
    %v2513 = vunpack.c.h.b16 %v2247
    %v2514 = vunpack.c.l.b16 %v2248
    %v2515 = vunpack.c.l.b16 %v2249
    %v2516 = vunpack.c.h.b16 %v2249
    %v2517 = vunpack.c.l.b16 %v2250
    %v2518 = vunpack.c.l.b16 %v2251
    %v2519 = vunpack.c.h.b16 %v2251
    %v2520 = vunpack.c.l.b16 %v2252
    %v2521 = vunpack.c.l.b16 %v2253
    %v2522 = vunpack.c.h.b16 %v2253
    %v2523 = vunpack.c.l.b16 %v2254
    %v2524 = vunpack.c.l.b16 %v2255
    %v2525 = vunpack.c.h.b16 %v2255
    %v2526 = vunpack.c.l.b16 %v2256
    %v2527 = vunpack.c.l.b16 %v2257
    %v2528 = vunpack.c.h.b16 %v2257
    %v2529 = vunpack.c.l.b16 %v2258
    %v2530 = vunpack.c.l.b16 %v2259
    %v2531 = vunpack.c.h.b16 %v2259
    %v2532 = vunpack.c.l.b16 %v2260
    %v2533 = vunpack.c.l.b16 %v2261
    %v2534 = vunpack.c.h.b16 %v2261
    %v2535 = vunpack.c.l.b16 %v2262
    %v2536 = vunpack.c.l.b16 %v2263
    %v2537 = vunpack.c.h.b16 %v2263
    %v2538 = vunpack.c.l.b16 %v2264
    %v2539 = vunpack.c.l.b16 %v2265
    %v2540 = vunpack.c.h.b16 %v2265
    %v2541 = vunpack.c.l.b16 %v2266
    %v2542 = vunpack.c.l.b16 %v2267
    %v2543 = vunpack.c.h.b16 %v2267
    %v2544 = vunpack.c.l.b16 %v2268
    %v2545 = vunpack.c.l.b16 %v2269
    %v2546 = vunpack.c.h.b16 %v2269
    %v2547 = vunpack.c.l.b16 %v2270
    %v2548 = vunpack.c.l.b16 %v2271
    %v2549 = vunpack.c.h.b16 %v2271
    %v2550 = vunpack.c.l.b16 %v2272
    %v2551 = vunpack.c.l.b16 %v2273
    %v2552 = vunpack.c.h.b16 %v2273
    %v2553 = vunpack.c.l.b16 %v2274
    %v2554 = vunpack.c.l.b16 %v2275
    %v2555 = vunpack.c.h.b16 %v2275
    %v2556 = vunpack.c.l.b16 %v2276
    %v2557 = vunpack.c.l.b16 %v2277
    %v2558 = vunpack.c.h.b16 %v2277
    %v2559 = vunpack.c.l.b16 %v2278
    %v2560 = vunpack.c.l.b16 %v2279
    %v2561 = vunpack.c.h.b16 %v2279
    %v2562 = vunpack.c.l.b16 %v2280
    %v2563 = vunpack.c.l.b16 %v2281
    %v2564 = vunpack.c.h.b16 %v2281
    %v2565 = vunpack.c.l.b16 %v2282
    %v2566 = vunpack.c.l.b16 %v2283
    %v2567 = vunpack.c.h.b16 %v2283
    %v2568 = vunpack.c.l.b16 %v2284
    %v2569 = vunpack.c.l.b16 %v2285
    %v2570 = vunpack.c.h.b16 %v2285
    %v2571 = vunpack.c.l.b16 %v2286
    %v2572 = vunpack.c.l.b16 %v2287
    %v2573 = vunpack.c.h.b16 %v2287
    %v2574 = vunpack.c.l.b16 %v2288
    %v2575 = vunpack.c.l.b16 %v2289
    %v2576 = vunpack.c.h.b16 %v2289
    %v2577 = vunpack.c.l.b16 %v2290
    %v2578 = vunpack.c.l.b16 %v2291
    %v2579 = vunpack.c.h.b16 %v2291
    %v2580 = vunpack.c.l.b16 %v2292
    %v2581 = vunpack.c.l.b16 %v2293
    %v2582 = vunpack.c.h.b16 %v2293
    %v2583 = vunpack.c.l.b16 %v2294
    %v2584 = vunpack.c.l.b16 %v2295
    %v2585 = vunpack.c.h.b16 %v2295
    %v2586 = vunpack.c.l.b16 %v2296
    %v2587 = vunpack.c.l.b16 %v2297
    %v2588 = vunpack.c.h.b16 %v2297
    %v2589 = vunpack.c.l.b16 %v2298
    %v2590 = vunpack.c.l.b16 %v2299
    %v2591 = vunpack.c.h.b16 %v2299
    %v2592 = vunpack.c.l.b16 %v2300
    %v2593 = vunpack.c.l.b16 %v2301
    %v2594 = vunpack.c.h.b16 %v2301
    %v2595 = vunpack.c.l.b16 %v2302
    %v2596 = vunpack.c.l.b16 %v2303
    %v2597 = vunpack.c.h.b16 %v2303
    %v2598 = vunpack.c.l.b16 %v2304
    %v2599 = vunpack.c.l.b16 %v2305
    %v2600 = vunpack.c.h.b16 %v2305
    %v2601 = vunpack.c.l.b16 %v2306
    %v2602 = vunpack.c.l.b16 %v2307
    %v2603 = vunpack.c.h.b16 %v2307
    %v2604 = vunpack.c.l.b16 %v2308
    %v2605 = vunpack.c.l.b16 %v2309
    %v2606 = vunpack.c.h.b16 %v2309
    %v2607 = vunpack.c.l.b16 %v2310
    %v2608 = vunpack.c.l.b16 %v2311
    %v2609 = vunpack.c.h.b16 %v2311
    %v2610 = vunpack.c.l.b16 %v2312
    %v2611 = vunpack.c.l.b16 %v2313
    %v2612 = vunpack.c.h.b16 %v2313
    %v2613 = vunpack.c.l.b16 %v2314
    %v2614 = vunpack.c.l.b16 %v2315
    %v2615 = vunpack.c.h.b16 %v2315
    %v2616 = vunpack.c.l.b16 %v2316
    %v2617 = vunpack.c.l.b16 %v2317
    %v2618 = vunpack.c.h.b16 %v2317
    %v2619 = vunpack.c.l.b16 %v2318
    %v2620 = vunpack.c.l.b16 %v2319
    %v2621 = vunpack.c.h.b16 %v2319
    %v2622 = vunpack.c.l.b16 %v2320
    %v2623 = vunpack.c.l.b16 %v2321
    %v2624 = vunpack.c.h.b16 %v2321
    %v2625 = vunpack.c.l.b16 %v2322
    %v2626 = vunpack.c.l.b16 %v2323
    %v2627 = vunpack.c.h.b16 %v2323
    %v2628 = vunpack.c.l.b16 %v2324
    %v2629 = vunpack.c.l.b16 %v2325
    %v2630 = vunpack.c.h.b16 %v2325
    %v2631 = vunpack.c.l.b16 %v2326
    %v2632 = vunpack.c.l.b16 %v2327
    %v2633 = vunpack.c.h.b16 %v2327
    %v2634 = vunpack.c.l.b16 %v2328
    %v2635 = vunpack.c.l.b16 %v2329
    %v2636 = vunpack.c.h.b16 %v2329
    %v2637 = vunpack.c.l.b16 %v2330
    %v2638 = vunpack.c.l.b16 %v2331
    %v2639 = vunpack.c.h.b16 %v2331
    %v2640 = vunpack.c.l.b16 %v2332
    %v2641 = vpack.c.b16 %v2500, %v2497
    %v2642 = vpack.c.b16 %v2501, %v2498
    %v2643 = vpack.c.b16 %v2502, %v2499
    %v2644 = vpack.c.b16 %v2506, %v2503
    %v2645 = vpack.c.b16 %v2507, %v2504
    %v2646 = vpack.c.b16 %v2508, %v2505
    %v2647 = vpack.c.b16 %v2512, %v2509
    %v2648 = vpack.c.b16 %v2513, %v2510
    %v2649 = vpack.c.b16 %v2514, %v2511
    %v2650 = vpack.c.b16 %v2518, %v2515
    %v2651 = vpack.c.b16 %v2519, %v2516
    %v2652 = vpack.c.b16 %v2520, %v2517
    %v2653 = vpack.c.b16 %v2524, %v2521
    %v2654 = vpack.c.b16 %v2525, %v2522
    %v2655 = vpack.c.b16 %v2526, %v2523
    %v2656 = vpack.c.b16 %v2530, %v2527
    %v2657 = vpack.c.b16 %v2531, %v2528
    %v2658 = vpack.c.b16 %v2532, %v2529
    %v2659 = vpack.c.b16 %v2536, %v2533
    %v2660 = vpack.c.b16 %v2537, %v2534
    %v2661 = vpack.c.b16 %v2538, %v2535
    %v2662 = vpack.c.b16 %v2542, %v2539
    %v2663 = vpack.c.b16 %v2543, %v2540
    %v2664 = vpack.c.b16 %v2544, %v2541
    %v2665 = vpack.c.b16 %v2548, %v2545
    %v2666 = vpack.c.b16 %v2549, %v2546
    %v2667 = vpack.c.b16 %v2550, %v2547
    %v2668 = vpack.c.b16 %v2554, %v2551
    %v2669 = vpack.c.b16 %v2555, %v2552
    %v2670 = vpack.c.b16 %v2556, %v2553
    %v2671 = vpack.c.b16 %v2560, %v2557
    %v2672 = vpack.c.b16 %v2561, %v2558
    %v2673 = vpack.c.b16 %v2562, %v2559
    %v2674 = vpack.c.b16 %v2566, %v2563
    %v2675 = vpack.c.b16 %v2567, %v2564
    %v2676 = vpack.c.b16 %v2568, %v2565
    %v2677 = vpack.c.b16 %v2572, %v2569
    %v2678 = vpack.c.b16 %v2573, %v2570
    %v2679 = vpack.c.b16 %v2574, %v2571
    %v2680 = vpack.c.b16 %v2578, %v2575
    %v2681 = vpack.c.b16 %v2579, %v2576
    %v2682 = vpack.c.b16 %v2580, %v2577
    %v2683 = vpack.c.b16 %v2584, %v2581
    %v2684 = vpack.c.b16 %v2585, %v2582
    %v2685 = vpack.c.b16 %v2586, %v2583
    %v2686 = vpack.c.b16 %v2590, %v2587
    %v2687 = vpack.c.b16 %v2591, %v2588
    %v2688 = vpack.c.b16 %v2592, %v2589
    %v2689 = vpack.c.b16 %v2596, %v2593
    %v2690 = vpack.c.b16 %v2597, %v2594
    %v2691 = vpack.c.b16 %v2598, %v2595
    %v2692 = vpack.c.b16 %v2602, %v2599
    %v2693 = vpack.c.b16 %v2603, %v2600
    %v2694 = vpack.c.b16 %v2604, %v2601
    %v2695 = vpack.c.b16 %v2608, %v2605
    %v2696 = vpack.c.b16 %v2609, %v2606
    %v2697 = vpack.c.b16 %v2610, %v2607
    %v2698 = vpack.c.b16 %v2614, %v2611
    %v2699 = vpack.c.b16 %v2615, %v2612
    %v2700 = vpack.c.b16 %v2616, %v2613
    %v2701 = vpack.c.b16 %v2620, %v2617
    %v2702 = vpack.c.b16 %v2621, %v2618
    %v2703 = vpack.c.b16 %v2622, %v2619
    %v2704 = vpack.c.b16 %v2626, %v2623
    %v2705 = vpack.c.b16 %v2627, %v2624
    %v2706 = vpack.c.b16 %v2628, %v2625
    %v2707 = vpack.c.b16 %v2632, %v2629
    %v2708 = vpack.c.b16 %v2633, %v2630
    %v2709 = vpack.c.b16 %v2634, %v2631
    %v2710 = vpack.c.b16 %v2638, %v2635
    %v2711 = vpack.c.b16 %v2639, %v2636
    %v2712 = vpack.c.b16 %v2640, %v2637
    %2785 = vmatprep.subr.bf16.mxu0 %v2642
    %2786 = vmatpush1.bf16.msra.mxu0 %v2641
    %2787 = vmatprep.subr.bf16.mxu0 %v2645
    %2788 = vmatpush1.bf16.msra.mxu0 %v2644
    %2789 = vmatprep.subr.bf16.mxu0 %v2648
    %2790 = vmatpush1.bf16.msra.mxu0 %v2647
    %2791 = vmatprep.subr.bf16.mxu0 %v2651
    %2792 = vmatpush1.bf16.msra.mxu0 %v2650
    %2793 = vmatprep.subr.bf16.mxu0 %v2654
    %2794 = vmatpush1.bf16.msra.mxu0 %v2653
    %2795 = vmatprep.subr.bf16.mxu0 %v2657
    %2796 = vmatpush1.bf16.msra.mxu0 %v2656
    %2797 = vmatprep.subr.bf16.mxu0 %v2660
    %2798 = vmatpush1.bf16.msra.mxu0 %v2659
    %2799 = vmatprep.subr.bf16.mxu0 %v2663
    %2800 = vmatpush1.bf16.msra.mxu0 %v2662
    %2801 = vmatprep.subr.bf16.mxu0 %v2666
    %2802 = vmatpush1.bf16.msra.mxu0 %v2665
    %2803 = vmatprep.subr.bf16.mxu0 %v2669
    %2804 = vmatpush1.bf16.msra.mxu0 %v2668
    %2805 = vmatprep.subr.bf16.mxu0 %v2672
    %2806 = vmatpush1.bf16.msra.mxu0 %v2671
    %2807 = vmatprep.subr.bf16.mxu0 %v2675
    %2808 = vmatpush1.bf16.msra.mxu0 %v2674
    %2809 = vmatprep.subr.bf16.mxu0 %v2678
    %2810 = vmatpush1.bf16.msra.mxu0 %v2677
    %2811 = vmatprep.subr.bf16.mxu0 %v2681
    %2812 = vmatpush1.bf16.msra.mxu0 %v2680
    %2813 = vmatprep.subr.bf16.mxu0 %v2684
    %2814 = vmatpush1.bf16.msra.mxu0 %v2683
    %2815 = vmatprep.subr.bf16.mxu0 %v2687
    %2816 = vmatpush1.bf16.msra.mxu0 %v2686
    %2817 = vmatprep.mubr.bf16.mxu0 %v2396
    %2818 = vmatmul.mubr.bf16.gmra.mrb[0].mxu0 %v2395
    %v2819 = vpop.f32.mrb[0].mxu0
    %v2820 = vadd.f32 %v2338, %v2819
    %v2821 = vpop.f32.mrb[0].mxu0
    %v2822 = vadd.f32 %v2342, %v2821
    %v2823 = vpop.f32.mrb[0].mxu0
    %v2824 = vpop.f32.mrb[0].mxu0
    %2825 = vdwg.mxu0
    %2826 = vmatprep.subr.bf16.mxu0 %v2690
    %2827 = vmatpush1.bf16.msra.mxu0 %v2689
    %2828 = vmatprep.subr.bf16.mxu0 %v2693
    %2829 = vmatpush1.bf16.msra.mxu0 %v2692
    %2830 = vmatprep.subr.bf16.mxu0 %v2696
    %2831 = vmatpush1.bf16.msra.mxu0 %v2695
    %2832 = vmatprep.subr.bf16.mxu0 %v2699
    %2833 = vmatpush1.bf16.msra.mxu0 %v2698
    %2834 = vmatprep.subr.bf16.mxu0 %v2702
    %2835 = vmatpush1.bf16.msra.mxu0 %v2701
    %2836 = vmatprep.subr.bf16.mxu0 %v2705
    %2837 = vmatpush1.bf16.msra.mxu0 %v2704
    %2838 = vmatprep.subr.bf16.mxu0 %v2708
    %2839 = vmatpush1.bf16.msra.mxu0 %v2707
    %2840 = vmatprep.subr.bf16.mxu0 %v2711
    %2841 = vmatpush1.bf16.msra.mxu0 %v2710
    %2842 = vmatprep.subr.bf16.mxu0 0
    %2843 = vmatpush1.bf16.msra.mxu0 0
    %2844 = vmatprep.subr.bf16.mxu0 0
    %2845 = vmatpush1.bf16.msra.mxu0 0
    %2846 = vmatprep.subr.bf16.mxu0 0
    %2847 = vmatpush1.bf16.msra.mxu0 0
    %2848 = vmatprep.subr.bf16.mxu0 0
    %2849 = vmatpush1.bf16.msra.mxu0 0
    %2850 = vmatprep.subr.bf16.mxu0 0
    %2851 = vmatpush1.bf16.msra.mxu0 0
    %2852 = vmatprep.subr.bf16.mxu0 0
    %2853 = vmatpush1.bf16.msra.mxu0 0
    %2854 = vmatprep.subr.bf16.mxu0 0
    %2855 = vmatpush1.bf16.msra.mxu0 0
    %2856 = vmatprep.subr.bf16.mxu0 0
    %2857 = vmatpush1.bf16.msra.mxu0 0
    %2858 = vmatprep.mubr.bf16.mxu0 0
    %2859 = vmatmul.mubr.bf16.gmra.mrb[0].mxu0 %v2397
    %v2860 = vpop.f32.mrb[0].mxu0
    %v2861 = vadd.f32 %v2820, %v2860
    %v2862 = vpop.f32.mrb[0].mxu0
    %v2863 = vadd.f32 %v2822, %v2862
    %v2864 = vpop.f32.mrb[0].mxu0
    %v2865 = vpop.f32.mrb[0].mxu0
    %2866 = vdwg.mxu0
    %2867 = vmatprep.subr.bf16.mxu0 0
    %2868 = vmatpush1.bf16.msra.mxu0 %v2643
    %2869 = vmatprep.subr.bf16.mxu0 0
    %2870 = vmatpush1.bf16.msra.mxu0 %v2646
    %2871 = vmatprep.subr.bf16.mxu0 0
    %2872 = vmatpush1.bf16.msra.mxu0 %v2649
    %2873 = vmatprep.subr.bf16.mxu0 0
    %2874 = vmatpush1.bf16.msra.mxu0 %v2652
    %2875 = vmatprep.subr.bf16.mxu0 0
    %2876 = vmatpush1.bf16.msra.mxu0 %v2655
    %2877 = vmatprep.subr.bf16.mxu0 0
    %2878 = vmatpush1.bf16.msra.mxu0 %v2658
    %2879 = vmatprep.subr.bf16.mxu0 0
    %2880 = vmatpush1.bf16.msra.mxu0 %v2661
    %2881 = vmatprep.subr.bf16.mxu0 0
    %2882 = vmatpush1.bf16.msra.mxu0 %v2664
    %2883 = vmatprep.subr.bf16.mxu0 0
    %2884 = vmatpush1.bf16.msra.mxu0 %v2667
    %2885 = vmatprep.subr.bf16.mxu0 0
    %2886 = vmatpush1.bf16.msra.mxu0 %v2670
    %2887 = vmatprep.subr.bf16.mxu0 0
    %2888 = vmatpush1.bf16.msra.mxu0 %v2673
    %2889 = vmatprep.subr.bf16.mxu0 0
    %2890 = vmatpush1.bf16.msra.mxu0 %v2676
    %2891 = vmatprep.subr.bf16.mxu0 0
    %2892 = vmatpush1.bf16.msra.mxu0 %v2679
    %2893 = vmatprep.subr.bf16.mxu0 0
    %2894 = vmatpush1.bf16.msra.mxu0 %v2682
    %2895 = vmatprep.subr.bf16.mxu0 0
    %2896 = vmatpush1.bf16.msra.mxu0 %v2685
    %2897 = vmatprep.subr.bf16.mxu0 0
    %2898 = vmatpush1.bf16.msra.mxu0 %v2688
    %2899 = vmatprep.mubr.bf16.mxu0 %v2396
    %2900 = vmatmul.mubr.bf16.gmra.mrb[0].mxu0 %v2395
    %v2901 = vpop.f32.mrb[0].mxu0
    %v2902 = vadd.f32 %v2346, %v2901
    %v2903 = vpop.f32.mrb[0].mxu0
    %v2904 = vpop.f32.mrb[0].mxu0
    %v2905 = vpop.f32.mrb[0].mxu0
    %2906 = vdwg.mxu0
    %2907 = vmatprep.subr.bf16.mxu0 0
    %2908 = vmatpush1.bf16.msra.mxu0 %v2691
    %2909 = vmatprep.subr.bf16.mxu0 0
    %2910 = vmatpush1.bf16.msra.mxu0 %v2694
    %2911 = vmatprep.subr.bf16.mxu0 0
    %2912 = vmatpush1.bf16.msra.mxu0 %v2697
    %2913 = vmatprep.subr.bf16.mxu0 0
    %2914 = vmatpush1.bf16.msra.mxu0 %v2700
    %2915 = vmatprep.subr.bf16.mxu0 0
    %2916 = vmatpush1.bf16.msra.mxu0 %v2703
    %2917 = vmatprep.subr.bf16.mxu0 0
    %2918 = vmatpush1.bf16.msra.mxu0 %v2706
    %2919 = vmatprep.subr.bf16.mxu0 0
    %2920 = vmatpush1.bf16.msra.mxu0 %v2709
    %2921 = vmatprep.subr.bf16.mxu0 0
    %2922 = vmatpush1.bf16.msra.mxu0 %v2712
    %2923 = vmatprep.subr.bf16.mxu0 0
    %2924 = vmatpush1.bf16.msra.mxu0 0
    %2925 = vmatprep.subr.bf16.mxu0 0
    %2926 = vmatpush1.bf16.msra.mxu0 0
    %2927 = vmatprep.subr.bf16.mxu0 0
    %2928 = vmatpush1.bf16.msra.mxu0 0
    %2929 = vmatprep.subr.bf16.mxu0 0
    %2930 = vmatpush1.bf16.msra.mxu0 0
    %2931 = vmatprep.subr.bf16.mxu0 0
    %2932 = vmatpush1.bf16.msra.mxu0 0
    %2933 = vmatprep.subr.bf16.mxu0 0
    %2934 = vmatpush1.bf16.msra.mxu0 0
    %2935 = vmatprep.subr.bf16.mxu0 0
    %2936 = vmatpush1.bf16.msra.mxu0 0
    %2937 = vmatprep.subr.bf16.mxu0 0
    %2938 = vmatpush1.bf16.msra.mxu0 0
    %2939 = vmatprep.mubr.bf16.mxu0 0
    %2940 = vmatmul.mubr.bf16.gmra.mrb[0].mxu0 %v2397
    %v2941 = vpop.f32.mrb[0].mxu0
    %v2942 = vadd.f32 %v2902, %v2941
    %v2943 = vpop.f32.mrb[0].mxu0
    %v2944 = vpop.f32.mrb[0].mxu0
    %v2945 = vpop.f32.mrb[0].mxu0
    %2946 = vdwg.mxu0
    %v2947 = vld [vmem:[%s7] sm:$0x7]
    %v2949 = vlaneseq
    %v2950 = vshrl.u32 %v2949, 7
    %v2951 = vsub.s32 0, %v2950
    %v2952 = vrot.slane %v2947, %v2951
    %v2953 = vlaneseq
    %v2954 = vshrl.u32 %v2953, 7
    %v2955 = vsub.s32 1, %v2954
    %v2956 = vrot.slane %v2947, %v2955
    %v2957 = vlaneseq
    %v2958 = vshrl.u32 %v2957, 7
    %v2959 = vsub.s32 2, %v2958
    %v2960 = vrot.slane %v2947, %v2959
    %v2964 = vmul.f32 %v2861, %v2952
    %v2965 = vmul.f32 %v2863, %v2956
    %v2966 = vmul.f32 %v2942, %v2960
    %v2967 = vld [vmem:[%s8] sm:$0x7]
    %v2969 = vlaneseq
    %v2970 = vshrl.u32 %v2969, 7
    %v2971 = vsub.s32 0, %v2970
    %v2972 = vrot.slane %v2967, %v2971
    %v2973 = vlaneseq
    %v2974 = vshrl.u32 %v2973, 7
    %v2975 = vsub.s32 1, %v2974
    %v2976 = vrot.slane %v2967, %v2975
    %v2977 = vlaneseq
    %v2978 = vshrl.u32 %v2977, 7
    %v2979 = vsub.s32 2, %v2978
    %v2980 = vrot.slane %v2967, %v2979
    %v2984 = vadd.f32 %v2964, %v2972
    %v2985 = vadd.f32 %v2965, %v2976
    %v2986 = vadd.f32 %v2966, %v2980
    %v2987 = vmax.f32 %v2984, 0.0
    %v2988 = vmax.f32 %v2985, 0.0
    %v2989 = vmax.f32 %v2986, 0.0
    %v2990 = vpack.c.bf16 %v2987, %v2987
    %v2991 = vpack.c.bf16 %v2988, %v2988
    %v2992 = vpack.c.bf16 %v2989, %v2989
    %v2993 = vld [vmem:[%s9] sm:$0xff]
    %v2994 = vld [vmem:[%s9 + $0x8] sm:$0xff]
    %v2995 = vld [vmem:[%s9 + $0x10] sm:$0xff]
    %v2996 = vld [vmem:[%s9 + $0x18] sm:$0xff]
    %v2997 = vld [vmem:[%s9 + $0x20] sm:$0xff]
    %v2998 = vld [vmem:[%s9 + $0x28] sm:$0xff]
    %v2999 = vld [vmem:[%s9 + $0x30] sm:$0xff]
    %v3000 = vld [vmem:[%s9 + $0x38] sm:$0xff]
    %v3001 = vld [vmem:[%s9 + $0x40] sm:$0xff]
    %v3002 = vld [vmem:[%s9 + $0x48] sm:$0xff]
    %v3003 = vld [vmem:[%s9 + $0x50] sm:$0xff]
    %v3004 = vld [vmem:[%s9 + $0x58] sm:$0xff]
    %v3005 = vld [vmem:[%s9 + $0x60] sm:$0xff]
    %v3006 = vld [vmem:[%s9 + $0x68] sm:$0xff]
    %v3007 = vld [vmem:[%s9 + $0x70] sm:$0xff]
    %v3008 = vld [vmem:[%s9 + $0x78] sm:$0xff]
    %v3009 = vld [vmem:[%s9 + $0x80] sm:$0xff]
    %v3010 = vld [vmem:[%s9 + $0x88] sm:$0xff]
    %v3011 = vld [vmem:[%s9 + $0x90] sm:$0xff]
    %v3012 = vld [vmem:[%s9 + $0x98] sm:$0xff]
    %v3013 = vld [vmem:[%s9 + $0xa0] sm:$0xff]
    %v3014 = vld [vmem:[%s9 + $0xa8] sm:$0xff]
    %v3015 = vld [vmem:[%s9 + $0xb0] sm:$0xff]
    %v3016 = vld [vmem:[%s9 + $0xb8] sm:$0xff]
    %v3017 = vld [vmem:[%s9 + $0xc0] sm:$0xff]
    %v3018 = vld [vmem:[%s9 + $0xc8] sm:$0xff]
    %v3019 = vld [vmem:[%s9 + $0xd0] sm:$0xff]
    %v3020 = vld [vmem:[%s9 + $0xd8] sm:$0xff]
    %v3021 = vld [vmem:[%s9 + $0xe0] sm:$0xff]
    %v3022 = vld [vmem:[%s9 + $0xe8] sm:$0xff]
    %v3023 = vld [vmem:[%s9 + $0xf0] sm:$0xff]
    %v3024 = vld [vmem:[%s9 + $0xf8] sm:$0xff]
    %v3025 = vld [vmem:[%s9 + $0x100] sm:$0xff]
    %v3026 = vld [vmem:[%s9 + $0x108] sm:$0xff]
    %v3027 = vld [vmem:[%s9 + $0x110] sm:$0xff]
    %v3028 = vld [vmem:[%s9 + $0x118] sm:$0xff]
    %v3029 = vld [vmem:[%s9 + $0x120] sm:$0xff]
    %v3030 = vld [vmem:[%s9 + $0x128] sm:$0xff]
    %v3031 = vld [vmem:[%s9 + $0x130] sm:$0xff]
    %v3032 = vld [vmem:[%s9 + $0x138] sm:$0xff]
    %v3033 = vld [vmem:[%s9 + $0x140] sm:$0xff]
    %v3034 = vld [vmem:[%s9 + $0x148] sm:$0xff]
    %v3035 = vld [vmem:[%s9 + $0x150] sm:$0xff]
    %v3036 = vld [vmem:[%s9 + $0x158] sm:$0xff]
    %v3037 = vld [vmem:[%s9 + $0x160] sm:$0xff]
    %v3038 = vld [vmem:[%s9 + $0x168] sm:$0xff]
    %v3039 = vld [vmem:[%s9 + $0x170] sm:$0xff]
    %v3040 = vld [vmem:[%s9 + $0x178] sm:$0xff]
    %v3041 = vld [vmem:[%s10] sm:$0x3]
    %v3043 = vlaneseq
    %v3044 = vshrl.u32 %v3043, 7
    %v3045 = vsub.s32 0, %v3044
    %v3046 = vrot.slane %v3041, %v3045
    %v3047 = vlaneseq
    %v3048 = vshrl.u32 %v3047, 7
    %v3049 = vsub.s32 1, %v3048
    %v3050 = vrot.slane %v3041, %v3049
    %v3101 = vunpack.c.l.b16 %v2993
    %v3102 = vunpack.c.h.b16 %v2993
    %v3103 = vunpack.c.l.b16 %v2994
    %v3104 = vunpack.c.h.b16 %v2994
    %v3105 = vunpack.c.l.b16 %v2995
    %v3106 = vunpack.c.h.b16 %v2995
    %v3107 = vunpack.c.l.b16 %v2996
    %v3108 = vunpack.c.h.b16 %v2996
    %v3109 = vunpack.c.l.b16 %v2997
    %v3110 = vunpack.c.h.b16 %v2997
    %v3111 = vunpack.c.l.b16 %v2998
    %v3112 = vunpack.c.h.b16 %v2998
    %v3113 = vunpack.c.l.b16 %v2999
    %v3114 = vunpack.c.h.b16 %v2999
    %v3115 = vunpack.c.l.b16 %v3000
    %v3116 = vunpack.c.h.b16 %v3000
    %v3117 = vunpack.c.l.b16 %v3001
    %v3118 = vunpack.c.h.b16 %v3001
    %v3119 = vunpack.c.l.b16 %v3002
    %v3120 = vunpack.c.h.b16 %v3002
    %v3121 = vunpack.c.l.b16 %v3003
    %v3122 = vunpack.c.h.b16 %v3003
    %v3123 = vunpack.c.l.b16 %v3004
    %v3124 = vunpack.c.h.b16 %v3004
    %v3125 = vunpack.c.l.b16 %v3005
    %v3126 = vunpack.c.h.b16 %v3005
    %v3127 = vunpack.c.l.b16 %v3006
    %v3128 = vunpack.c.h.b16 %v3006
    %v3129 = vunpack.c.l.b16 %v3007
    %v3130 = vunpack.c.h.b16 %v3007
    %v3131 = vunpack.c.l.b16 %v3008
    %v3132 = vunpack.c.h.b16 %v3008
    %v3133 = vunpack.c.l.b16 %v3009
    %v3134 = vunpack.c.h.b16 %v3009
    %v3135 = vunpack.c.l.b16 %v3010
    %v3136 = vunpack.c.h.b16 %v3010
    %v3137 = vunpack.c.l.b16 %v3011
    %v3138 = vunpack.c.h.b16 %v3011
    %v3139 = vunpack.c.l.b16 %v3012
    %v3140 = vunpack.c.h.b16 %v3012
    %v3141 = vunpack.c.l.b16 %v3013
    %v3142 = vunpack.c.h.b16 %v3013
    %v3143 = vunpack.c.l.b16 %v3014
    %v3144 = vunpack.c.h.b16 %v3014
    %v3145 = vunpack.c.l.b16 %v3015
    %v3146 = vunpack.c.h.b16 %v3015
    %v3147 = vunpack.c.l.b16 %v3016
    %v3148 = vunpack.c.h.b16 %v3016
    %v3149 = vunpack.c.l.b16 %v3017
    %v3150 = vunpack.c.h.b16 %v3017
    %v3151 = vunpack.c.l.b16 %v3018
    %v3152 = vunpack.c.h.b16 %v3018
    %v3153 = vunpack.c.l.b16 %v3019
    %v3154 = vunpack.c.h.b16 %v3019
    %v3155 = vunpack.c.l.b16 %v3020
    %v3156 = vunpack.c.h.b16 %v3020
    %v3157 = vunpack.c.l.b16 %v3021
    %v3158 = vunpack.c.h.b16 %v3021
    %v3159 = vunpack.c.l.b16 %v3022
    %v3160 = vunpack.c.h.b16 %v3022
    %v3161 = vunpack.c.l.b16 %v3023
    %v3162 = vunpack.c.h.b16 %v3023
    %v3163 = vunpack.c.l.b16 %v3024
    %v3164 = vunpack.c.h.b16 %v3024
    %v3165 = vunpack.c.l.b16 %v3025
    %v3166 = vunpack.c.h.b16 %v3025
    %v3167 = vunpack.c.l.b16 %v3026
    %v3168 = vunpack.c.h.b16 %v3026
    %v3169 = vunpack.c.l.b16 %v3027
    %v3170 = vunpack.c.h.b16 %v3027
    %v3171 = vunpack.c.l.b16 %v3028
    %v3172 = vunpack.c.h.b16 %v3028
    %v3173 = vunpack.c.l.b16 %v3029
    %v3174 = vunpack.c.h.b16 %v3029
    %v3175 = vunpack.c.l.b16 %v3030
    %v3176 = vunpack.c.h.b16 %v3030
    %v3177 = vunpack.c.l.b16 %v3031
    %v3178 = vunpack.c.h.b16 %v3031
    %v3179 = vunpack.c.l.b16 %v3032
    %v3180 = vunpack.c.h.b16 %v3032
    %v3181 = vunpack.c.l.b16 %v3033
    %v3182 = vunpack.c.h.b16 %v3033
    %v3183 = vunpack.c.l.b16 %v3034
    %v3184 = vunpack.c.h.b16 %v3034
    %v3185 = vunpack.c.l.b16 %v3035
    %v3186 = vunpack.c.h.b16 %v3035
    %v3187 = vunpack.c.l.b16 %v3036
    %v3188 = vunpack.c.h.b16 %v3036
    %v3189 = vunpack.c.l.b16 %v3037
    %v3190 = vunpack.c.h.b16 %v3037
    %v3191 = vunpack.c.l.b16 %v3038
    %v3192 = vunpack.c.h.b16 %v3038
    %v3193 = vunpack.c.l.b16 %v3039
    %v3194 = vunpack.c.h.b16 %v3039
    %v3195 = vunpack.c.l.b16 %v3040
    %v3196 = vunpack.c.h.b16 %v3040
    %v3197 = vpack.c.b16 %v3103, %v3101
    %v3198 = vpack.c.b16 %v3104, %v3102
    %v3199 = vpack.c.b16 %v3107, %v3105
    %v3200 = vpack.c.b16 %v3108, %v3106
    %v3201 = vpack.c.b16 %v3111, %v3109
    %v3202 = vpack.c.b16 %v3112, %v3110
    %v3203 = vpack.c.b16 %v3115, %v3113
    %v3204 = vpack.c.b16 %v3116, %v3114
    %v3205 = vpack.c.b16 %v3119, %v3117
    %v3206 = vpack.c.b16 %v3120, %v3118
    %v3207 = vpack.c.b16 %v3123, %v3121
    %v3208 = vpack.c.b16 %v3124, %v3122
    %v3209 = vpack.c.b16 %v3127, %v3125
    %v3210 = vpack.c.b16 %v3128, %v3126
    %v3211 = vpack.c.b16 %v3131, %v3129
    %v3212 = vpack.c.b16 %v3132, %v3130
    %v3213 = vpack.c.b16 %v3135, %v3133
    %v3214 = vpack.c.b16 %v3136, %v3134
    %v3215 = vpack.c.b16 %v3139, %v3137
    %v3216 = vpack.c.b16 %v3140, %v3138
    %v3217 = vpack.c.b16 %v3143, %v3141
    %v3218 = vpack.c.b16 %v3144, %v3142
    %v3219 = vpack.c.b16 %v3147, %v3145
    %v3220 = vpack.c.b16 %v3148, %v3146
    %v3221 = vpack.c.b16 %v3151, %v3149
    %v3222 = vpack.c.b16 %v3152, %v3150
    %v3223 = vpack.c.b16 %v3155, %v3153
    %v3224 = vpack.c.b16 %v3156, %v3154
    %v3225 = vpack.c.b16 %v3159, %v3157
    %v3226 = vpack.c.b16 %v3160, %v3158
    %v3227 = vpack.c.b16 %v3163, %v3161
    %v3228 = vpack.c.b16 %v3164, %v3162
    %v3229 = vpack.c.b16 %v3167, %v3165
    %v3230 = vpack.c.b16 %v3168, %v3166
    %v3231 = vpack.c.b16 %v3171, %v3169
    %v3232 = vpack.c.b16 %v3172, %v3170
    %v3233 = vpack.c.b16 %v3175, %v3173
    %v3234 = vpack.c.b16 %v3176, %v3174
    %v3235 = vpack.c.b16 %v3179, %v3177
    %v3236 = vpack.c.b16 %v3180, %v3178
    %v3237 = vpack.c.b16 %v3183, %v3181
    %v3238 = vpack.c.b16 %v3184, %v3182
    %v3239 = vpack.c.b16 %v3187, %v3185
    %v3240 = vpack.c.b16 %v3188, %v3186
    %v3241 = vpack.c.b16 %v3191, %v3189
    %v3242 = vpack.c.b16 %v3192, %v3190
    %v3243 = vpack.c.b16 %v3195, %v3193
    %v3244 = vpack.c.b16 %v3196, %v3194
    %3293 = vmatprep.subr.bf16.mxu0 %v3198
    %3294 = vmatpush1.bf16.msra.mxu0 %v3197
    %3295 = vmatprep.subr.bf16.mxu0 %v3200
    %3296 = vmatpush1.bf16.msra.mxu0 %v3199
    %3297 = vmatprep.subr.bf16.mxu0 %v3202
    %3298 = vmatpush1.bf16.msra.mxu0 %v3201
    %3299 = vmatprep.subr.bf16.mxu0 %v3204
    %3300 = vmatpush1.bf16.msra.mxu0 %v3203
    %3301 = vmatprep.subr.bf16.mxu0 %v3206
    %3302 = vmatpush1.bf16.msra.mxu0 %v3205
    %3303 = vmatprep.subr.bf16.mxu0 %v3208
    %3304 = vmatpush1.bf16.msra.mxu0 %v3207
    %3305 = vmatprep.subr.bf16.mxu0 %v3210
    %3306 = vmatpush1.bf16.msra.mxu0 %v3209
    %3307 = vmatprep.subr.bf16.mxu0 %v3212
    %3308 = vmatpush1.bf16.msra.mxu0 %v3211
    %3309 = vmatprep.subr.bf16.mxu0 %v3214
    %3310 = vmatpush1.bf16.msra.mxu0 %v3213
    %3311 = vmatprep.subr.bf16.mxu0 %v3216
    %3312 = vmatpush1.bf16.msra.mxu0 %v3215
    %3313 = vmatprep.subr.bf16.mxu0 %v3218
    %3314 = vmatpush1.bf16.msra.mxu0 %v3217
    %3315 = vmatprep.subr.bf16.mxu0 %v3220
    %3316 = vmatpush1.bf16.msra.mxu0 %v3219
    %3317 = vmatprep.subr.bf16.mxu0 %v3222
    %3318 = vmatpush1.bf16.msra.mxu0 %v3221
    %3319 = vmatprep.subr.bf16.mxu0 %v3224
    %3320 = vmatpush1.bf16.msra.mxu0 %v3223
    %3321 = vmatprep.subr.bf16.mxu0 %v3226
    %3322 = vmatpush1.bf16.msra.mxu0 %v3225
    %3323 = vmatprep.subr.bf16.mxu0 %v3228
    %3324 = vmatpush1.bf16.msra.mxu0 %v3227
    %3325 = vmatprep.mubr.bf16.mxu0 %v2991
    %3326 = vmatmul.mubr.bf16.gmra.mrb[0].mxu0 %v2990
    %v3327 = vpop.f32.mrb[0].mxu0
    %v3328 = vadd.f32 %v3046, %v3327
    %v3329 = vpop.f32.mrb[0].mxu0
    %v3330 = vadd.f32 %v3050, %v3329
    %v3331 = vpop.f32.mrb[0].mxu0
    %v3332 = vpop.f32.mrb[0].mxu0
    %3333 = vdwg.mxu0
    %3334 = vmatprep.subr.bf16.mxu0 %v3230
    %3335 = vmatpush1.bf16.msra.mxu0 %v3229
    %3336 = vmatprep.subr.bf16.mxu0 %v3232
    %3337 = vmatpush1.bf16.msra.mxu0 %v3231
    %3338 = vmatprep.subr.bf16.mxu0 %v3234
    %3339 = vmatpush1.bf16.msra.mxu0 %v3233
    %3340 = vmatprep.subr.bf16.mxu0 %v3236
    %3341 = vmatpush1.bf16.msra.mxu0 %v3235
    %3342 = vmatprep.subr.bf16.mxu0 %v3238
    %3343 = vmatpush1.bf16.msra.mxu0 %v3237
    %3344 = vmatprep.subr.bf16.mxu0 %v3240
    %3345 = vmatpush1.bf16.msra.mxu0 %v3239
    %3346 = vmatprep.subr.bf16.mxu0 %v3242
    %3347 = vmatpush1.bf16.msra.mxu0 %v3241
    %3348 = vmatprep.subr.bf16.mxu0 %v3244
    %3349 = vmatpush1.bf16.msra.mxu0 %v3243
    %3350 = vmatprep.subr.bf16.mxu0 0
    %3351 = vmatpush1.bf16.msra.mxu0 0
    %3352 = vmatprep.subr.bf16.mxu0 0
    %3353 = vmatpush1.bf16.msra.mxu0 0
    %3354 = vmatprep.subr.bf16.mxu0 0
    %3355 = vmatpush1.bf16.msra.mxu0 0
    %3356 = vmatprep.subr.bf16.mxu0 0
    %3357 = vmatpush1.bf16.msra.mxu0 0
    %3358 = vmatprep.subr.bf16.mxu0 0
    %3359 = vmatpush1.bf16.msra.mxu0 0
    %3360 = vmatprep.subr.bf16.mxu0 0
    %3361 = vmatpush1.bf16.msra.mxu0 0
    %3362 = vmatprep.subr.bf16.mxu0 0
    %3363 = vmatpush1.bf16.msra.mxu0 0
    %3364 = vmatprep.subr.bf16.mxu0 0
    %3365 = vmatpush1.bf16.msra.mxu0 0
    %3366 = vmatprep.mubr.bf16.mxu0 0
    %3367 = vmatmul.mubr.bf16.gmra.mrb[0].mxu0 %v2992
    %v3368 = vpop.f32.mrb[0].mxu0
    %v3369 = vadd.f32 %v3328, %v3368
    %v3370 = vpop.f32.mrb[0].mxu0
    %v3371 = vadd.f32 %v3330, %v3370
    %v3372 = vpop.f32.mrb[0].mxu0
    %v3373 = vpop.f32.mrb[0].mxu0
    %3374 = vdwg.mxu0
    %v3375 = vld [vmem:[%s11] sm:$0x3]
    %v3377 = vlaneseq
    %v3378 = vshrl.u32 %v3377, 7
    %v3379 = vsub.s32 0, %v3378
    %v3380 = vrot.slane %v3375, %v3379
    %v3381 = vlaneseq
    %v3382 = vshrl.u32 %v3381, 7
    %v3383 = vsub.s32 1, %v3382
    %v3384 = vrot.slane %v3375, %v3383
    %v3387 = vmul.f32 %v3369, %v3380
    %v3388 = vmul.f32 %v3371, %v3384
    %v3389 = vld [vmem:[%s12] sm:$0x3]
    %v3391 = vlaneseq
    %v3392 = vshrl.u32 %v3391, 7
    %v3393 = vsub.s32 0, %v3392
    %v3394 = vrot.slane %v3389, %v3393
    %v3395 = vlaneseq
    %v3396 = vshrl.u32 %v3395, 7
    %v3397 = vsub.s32 1, %v3396
    %v3398 = vrot.slane %v3389, %v3397
    %v3401 = vadd.f32 %v3387, %v3394
    %v3402 = vadd.f32 %v3388, %v3398
    %v3403 = vmax.f32 %v3401, 0.0
    %v3404 = vmax.f32 %v3402, 0.0
    %v3405 = vpack.c.bf16 %v3403, %v3403
    %v3406 = vpack.c.bf16 %v3404, %v3404
    %v3407 = vld [vmem:[%s13] sm:$0xf]
    %v3408 = vld [vmem:[%s13 + $0x4] sm:$0xf]
    %v3409 = vld [vmem:[%s13 + $0x8] sm:$0xf]
    %v3410 = vld [vmem:[%s13 + $0xc] sm:$0xf]
    %v3411 = vld [vmem:[%s13 + $0x10] sm:$0xf]
    %v3412 = vld [vmem:[%s13 + $0x14] sm:$0xf]
    %v3413 = vld [vmem:[%s13 + $0x18] sm:$0xf]
    %v3414 = vld [vmem:[%s13 + $0x1c] sm:$0xf]
    %v3415 = vld [vmem:[%s13 + $0x20] sm:$0xf]
    %v3416 = vld [vmem:[%s13 + $0x24] sm:$0xf]
    %v3417 = vld [vmem:[%s13 + $0x28] sm:$0xf]
    %v3418 = vld [vmem:[%s13 + $0x2c] sm:$0xf]
    %v3419 = vld [vmem:[%s13 + $0x30] sm:$0xf]
    %v3420 = vld [vmem:[%s13 + $0x34] sm:$0xf]
    %v3421 = vld [vmem:[%s13 + $0x38] sm:$0xf]
    %v3422 = vld [vmem:[%s13 + $0x3c] sm:$0xf]
    %v3423 = vld [vmem:[%s13 + $0x40] sm:$0xf]
    %v3424 = vld [vmem:[%s13 + $0x44] sm:$0xf]
    %v3425 = vld [vmem:[%s13 + $0x48] sm:$0xf]
    %v3426 = vld [vmem:[%s13 + $0x4c] sm:$0xf]
    %v3427 = vld [vmem:[%s13 + $0x50] sm:$0xf]
    %v3428 = vld [vmem:[%s13 + $0x54] sm:$0xf]
    %v3429 = vld [vmem:[%s13 + $0x58] sm:$0xf]
    %v3430 = vld [vmem:[%s13 + $0x5c] sm:$0xf]
    %v3431 = vld [vmem:[%s14] sm:$0x1]
    %v3433 = vlaneseq
    %v3434 = vshrl.u32 %v3433, 7
    %v3435 = vsub.s32 0, %v3434
    %v3436 = vrot.slane %v3431, %v3435
    %v3462 = vunpack.c.l.b16 %v3407
    %v3463 = vunpack.c.l.b16 %v3408
    %v3464 = vunpack.c.l.b16 %v3409
    %v3465 = vunpack.c.l.b16 %v3410
    %v3466 = vunpack.c.l.b16 %v3411
    %v3467 = vunpack.c.l.b16 %v3412
    %v3468 = vunpack.c.l.b16 %v3413
    %v3469 = vunpack.c.l.b16 %v3414
    %v3470 = vunpack.c.l.b16 %v3415
    %v3471 = vunpack.c.l.b16 %v3416
    %v3472 = vunpack.c.l.b16 %v3417
    %v3473 = vunpack.c.l.b16 %v3418
    %v3474 = vunpack.c.l.b16 %v3419
    %v3475 = vunpack.c.l.b16 %v3420
    %v3476 = vunpack.c.l.b16 %v3421
    %v3477 = vunpack.c.l.b16 %v3422
    %v3478 = vunpack.c.l.b16 %v3423
    %v3479 = vunpack.c.l.b16 %v3424
    %v3480 = vunpack.c.l.b16 %v3425
    %v3481 = vunpack.c.l.b16 %v3426
    %v3482 = vunpack.c.l.b16 %v3427
    %v3483 = vunpack.c.l.b16 %v3428
    %v3484 = vunpack.c.l.b16 %v3429
    %v3485 = vunpack.c.l.b16 %v3430
    %v3486 = vpack.c.b16 %v3463, %v3462
    %v3487 = vpack.c.b16 %v3465, %v3464
    %v3488 = vpack.c.b16 %v3467, %v3466
    %v3489 = vpack.c.b16 %v3469, %v3468
    %v3490 = vpack.c.b16 %v3471, %v3470
    %v3491 = vpack.c.b16 %v3473, %v3472
    %v3492 = vpack.c.b16 %v3475, %v3474
    %v3493 = vpack.c.b16 %v3477, %v3476
    %v3494 = vpack.c.b16 %v3479, %v3478
    %v3495 = vpack.c.b16 %v3481, %v3480
    %v3496 = vpack.c.b16 %v3483, %v3482
    %v3497 = vpack.c.b16 %v3485, %v3484
    %v3511 = vsel %vm132, %v3406, 0
    %3513 = vmatprep.subr.bf16.mxu0 0
    %3514 = vmatpush1.bf16.msra.mxu0 %v3486
    %3515 = vmatprep.subr.bf16.mxu0 0
    %3516 = vmatpush1.bf16.msra.mxu0 %v3487
    %3517 = vmatprep.subr.bf16.mxu0 0
    %3518 = vmatpush1.bf16.msra.mxu0 %v3488
    %3519 = vmatprep.subr.bf16.mxu0 0
    %3520 = vmatpush1.bf16.msra.mxu0 %v3489
    %3521 = vmatprep.subr.bf16.mxu0 0
    %3522 = vmatpush1.bf16.msra.mxu0 %v3490
    %3523 = vmatprep.subr.bf16.mxu0 0
    %3524 = vmatpush1.bf16.msra.mxu0 %v3491
    %3525 = vmatprep.subr.bf16.mxu0 0
    %3526 = vmatpush1.bf16.msra.mxu0 %v3492
    %3527 = vmatprep.subr.bf16.mxu0 0
    %3528 = vmatpush1.bf16.msra.mxu0 %v3493
    %3529 = vmatprep.subr.bf16.mxu0 0
    %3530 = vmatpush1.bf16.msra.mxu0 %v3494
    %3531 = vmatprep.subr.bf16.mxu0 0
    %3532 = vmatpush1.bf16.msra.mxu0 %v3495
    %3533 = vmatprep.subr.bf16.mxu0 0
    %3534 = vmatpush1.bf16.msra.mxu0 %v3496
    %3535 = vmatprep.subr.bf16.mxu0 0
    %3536 = vmatpush1.bf16.msra.mxu0 %v3497
    %3537 = vmatprep.subr.bf16.mxu0 0
    %3538 = vmatpush1.bf16.msra.mxu0 0
    %3539 = vmatprep.subr.bf16.mxu0 0
    %3540 = vmatpush1.bf16.msra.mxu0 0
    %3541 = vmatprep.subr.bf16.mxu0 0
    %3542 = vmatpush1.bf16.msra.mxu0 0
    %3543 = vmatprep.subr.bf16.mxu0 0
    %3544 = vmatpush1.bf16.msra.mxu0 0
    %3545 = vmatprep.mubr.bf16.mxu0 %v3511
    %3546 = vmatmul.mubr.bf16.gmra.mrb[0].mxu0 %v3405
    %v3547 = vpop.f32.mrb[0].mxu0
    %v3548 = vadd.f32 %v3436, %v3547
    %v3549 = vpop.f32.mrb[0].mxu0
    %v3550 = vpop.f32.mrb[0].mxu0
    %v3551 = vpop.f32.mrb[0].mxu0
    %3552 = vdwg.mxu0
    %vm3553 = vcmask 60416
    %3554 = vst.msk [vmem:[#allocation7] sm:$0xf] %vm3553, %v3548
    // Predicated region
    $region66: #{tpu_custom_call.1} parent=1 // pred_check
      _
    $region67: #{tpu_custom_call.1} parent=1 // pred_check_branch
      %3556 = sbr.rel (0) target = $region69
    $region68: #{tpu_custom_call.1} parent=1 // pred_region
      %s3558 = ssub.s32 64, 64
      %3559 = vsyncadd [#allocation6], %s3558
      %s3561 = sshll.u32 [#allocation7], 4
      %s3562 = int_to_ptr.vmem [resolvable:$true] %s3561
      %3564 = dma.vmem_to_hbm [thread:$0]  %s3562, 64, %s15, [#allocation6]
    $region69: #{tpu_custom_call.1} parent=1 // pred_fallthru
      _
    // Predicated region
    $region70: #{tpu_custom_call.1} parent=1 // pred_check
      _
    $region71: #{tpu_custom_call.1} parent=1 // pred_check_branch
      %3566 = sbr.rel (0) target = $region73
    $region72: #{tpu_custom_call.1} parent=1 // pred_region
      %3567 = dma.done [#allocation6], 64
    $region73: #{tpu_custom_call.1} parent=1 // pred_fallthru
      _
    %3568 = vsyncpa [#allocation5], 1
    %3569 = vsyncpa [#allocation6], 1

</llo_original>
